<compile_context>
chip_gen: v5e
topology: v5e:2x2
jax: 0.10.0
libtpu: 0.0.40
codegen_flags: <defaults>
</compile_context>

<pallas_src>
import jax
import jax.numpy as jnp
from jax import lax
from jax.experimental import pallas as pl
from jax.experimental.pallas import tpu as pltpu


def _round_up(x, m):
    return (x + m - 1) // m * m


def _tpu_vmem_capacity_bytes():
    try:
        return int(pltpu.get_tpu_info().vmem_capacity_bytes)
    except Exception:
        return 64 * 1024 * 1024   # conservative fallback (= v7x per-TC VMEM)


_GATE_SCALE = (0.5, 0.5, 1.0, 0.5)   # i, f, g, o  (0.5 => sigmoid via tanh)


# ---------------------------------------------------------------------------
# Fused LSTM-layer kernel.
# Per grid step (batch block bi, time chunk ti):
#   1. gate slab xp = x_chunk @ W_ih + b   (one MXU GEMM, f32 accumulation)
#   2. serial recurrence over TT steps: gates = xp[t] + h @ W_hh (bf16 MXU),
#      one tanh pass over the whole 4*Hp slab, c/h update in f32.
# Output: full hidden sequence (bf16) if seq_out else only h_T (f32).
# ---------------------------------------------------------------------------
def _make_lstm_kernel(tt, bb, hp, seq_out, last_chunk, last_step, unroll):
    def kernel(x_ref, wih_ref, whh_ref, b_ref, out_ref, xp_s, h_s, c_s):
        @pl.when(pl.program_id(1) == 0)
        def _():
            h_s[...] = jnp.zeros_like(h_s)   # h0 = zeros
            c_s[...] = jnp.zeros_like(c_s)   # c0 = zeros

        din = x_ref.shape[-1]
        # Whole-chunk input projection + bias: (tt*bb, din) @ (din, 4hp).
        x2d = x_ref[...].reshape(tt * bb, din)
        xp = jnp.dot(x2d, wih_ref[...],
                     preferred_element_type=jnp.float32) + b_ref[...]
        xp_s[...] = xp.reshape(tt, bb, 4 * hp)

        whh = whh_ref[...]                               # resident bf16 (hp, 4hp)
        is_last_chunk = pl.program_id(1) == last_chunk

        def step(i, carry):
            h = h_s[...]
            c = c_s[...]
            gates = xp_s[i] + jnp.dot(h.astype(jnp.bfloat16), whh,
                                      preferred_element_type=jnp.float32)
            # Single EUP pass over the full (bb, 4hp) slab; the 0.5 pre-scale
            # for the sigmoid gates is already folded into the weights/bias.
            t = jnp.tanh(gates)
            i_g = t[:, 0 * hp:1 * hp] * 0.5 + 0.5
            f_g = t[:, 1 * hp:2 * hp] * 0.5 + 0.5
            g_g = t[:, 2 * hp:3 * hp]
            o_g = t[:, 3 * hp:4 * hp] * 0.5 + 0.5
            c_new = f_g * c + i_g * g_g
            h_new = o_g * jnp.tanh(c_new)
            h_s[...] = h_new
            c_s[...] = c_new
            if seq_out:
                out_ref[i] = h_new.astype(out_ref.dtype)
            else:
                @pl.when(is_last_chunk & (i == last_step))
                def _():
                    out_ref[...] = h_new.astype(out_ref.dtype)
            return carry

        lax.fori_loop(0, tt, step, 0, unroll=unroll)

    return kernel


def _lstm_layer(x_pad, wih, whh, bias, *, tt, bb, seq_out, t_real, vmem_limit):
    """x_pad: (Tp, Bp, Din_p) bf16.
    Returns (Tp, Bp, Hp) bf16 if seq_out else (Bp, Hp) f32 (= h at step t_real-1)."""
    Tp, Bp, Din = x_pad.shape
    Hp = whh.shape[0]
    nt = Tp // tt
    nb = Bp // bb
    last_chunk = (t_real - 1) // tt
    last_step = (t_real - 1) % tt
    unroll = max(1, min(tt, 8))

    kernel = _make_lstm_kernel(tt, bb, Hp, seq_out, last_chunk, last_step, unroll)

    if seq_out:
        out_shape = jax.ShapeDtypeStruct((Tp, Bp, Hp), jnp.bfloat16)
        out_spec = pl.BlockSpec((tt, bb, Hp), lambda bi, ti: (ti, bi, 0))
    else:
        out_shape = jax.ShapeDtypeStruct((Bp, Hp), jnp.float32)
        out_spec = pl.BlockSpec((bb, Hp), lambda bi, ti: (bi, 0))

    return pl.pallas_call(
        kernel,
        out_shape=out_shape,
        grid_spec=pltpu.PrefetchScalarGridSpec(
            num_scalar_prefetch=0,
            grid=(nb, nt),
            in_specs=[
                pl.BlockSpec((tt, bb, Din), lambda bi, ti: (ti, bi, 0)),
                # Weight block indices never change -> single-buffer them.
                pl.BlockSpec((Din, 4 * Hp), lambda bi, ti: (0, 0),
                             pipeline_mode=pl.Buffered(1)),
                pl.BlockSpec((Hp, 4 * Hp), lambda bi, ti: (0, 0),
                             pipeline_mode=pl.Buffered(1)),
                pl.BlockSpec((1, 4 * Hp), lambda bi, ti: (0, 0)),
            ],
            out_specs=out_spec,
            scratch_shapes=[
                pltpu.VMEM((tt, bb, 4 * Hp), jnp.float32),   # chunk gate slab
                pltpu.VMEM((bb, Hp), jnp.float32),           # h state
                pltpu.VMEM((bb, Hp), jnp.float32),           # c state
            ],
        ),
        compiler_params=pltpu.CompilerParams(
            dimension_semantics=("parallel", "arbitrary"),   # batch ∥, time serial
            vmem_limit_bytes=vmem_limit,
        ),
    )(x_pad, wih, whh, bias)


# ---------------------------------------------------------------------------
# Weight prep: transpose to (Din, 4H)/(H, 4H), pad each gate block to Hp lanes,
# pad rows, fold the 0.5 sigmoid pre-scale into i/f/o weights + bias, cast the
# matmul weights to bf16.  Zero padding + h0=c0=0 keeps padded lanes exactly 0.
# ---------------------------------------------------------------------------
def _prep_layer_weights(lp, Hp, din_pad):
    H = lp["w_hh"].shape[1]
    scale = jnp.asarray(_GATE_SCALE, jnp.float32)

    def prep(w, rows_pad):
        d = w.shape[1]                                   # PyTorch layout (4H, d)
        w4 = w.astype(jnp.float32).reshape(4, H, d) * scale[:, None, None]
        w4 = jnp.pad(w4, ((0, 0), (0, Hp - H), (0, 0)))
        w2 = jnp.transpose(w4, (2, 0, 1)).reshape(d, 4 * Hp)
        if rows_pad > d:
            w2 = jnp.pad(w2, ((0, rows_pad - d), (0, 0)))
        return w2.astype(jnp.bfloat16)

    wih = prep(lp["w_ih"], din_pad)                      # (Din_p, 4Hp) bf16
    whh = prep(lp["w_hh"], Hp)                           # (Hp,   4Hp) bf16
    b = (lp["b_ih"] + lp["b_hh"]).astype(jnp.float32).reshape(4, H)
    b = b * scale[:, None]
    b = jnp.pad(b, ((0, 0), (0, Hp - H))).reshape(1, 4 * Hp)   # f32
    return wih, whh, b


# ---------------------------------------------------------------------------
# Full module: nn.LSTM(num_layers, batch_first=True) + nn.Linear(hidden, 1)
# ---------------------------------------------------------------------------
def init_params(key, input_size, hidden_size, num_layers):
    params = {"lstm": [], "linear": {}}
    k_lstm = 1.0 / jnp.sqrt(hidden_size)
    for layer in range(num_layers):
        d_in = input_size if layer == 0 else hidden_size
        key, k1, k2, k3, k4 = jax.random.split(key, 5)
        params["lstm"].append({
            "w_ih": jax.random.uniform(k1, (4 * hidden_size, d_in),
                                       minval=-k_lstm, maxval=k_lstm),
            "w_hh": jax.random.uniform(k2, (4 * hidden_size, hidden_size),
                                       minval=-k_lstm, maxval=k_lstm),
            "b_ih": jax.random.uniform(k3, (4 * hidden_size,),
                                       minval=-k_lstm, maxval=k_lstm),
            "b_hh": jax.random.uniform(k4, (4 * hidden_size,),
                                       minval=-k_lstm, maxval=k_lstm),
        })
    key, k1, k2 = jax.random.split(key, 3)
    k_lin = 1.0 / jnp.sqrt(hidden_size)
    params["linear"]["w"] = jax.random.uniform(k1, (1, hidden_size),
                                               minval=-k_lin, maxval=k_lin)
    params["linear"]["b"] = jax.random.uniform(k2, (1,),
                                               minval=-k_lin, maxval=k_lin)
    return params


@jax.jit
def lstm_model_forward(params, x):
    """x: (B, T, input_size) batch_first. Returns (num_layers * B, 1),
    matching the PyTorch module's forward."""
    B, T, Din = x.shape
    H = params["lstm"][0]["w_hh"].shape[1]
    num_layers = len(params["lstm"])
    Hp = _round_up(H, 128)            # lane-aligned gate blocks
    Bp = _round_up(B, 8)              # sublane-aligned batch
    Din0p = _round_up(Din, 128)       # lane-aligned layer-0 input features

    # Batch blocking: 2 "parallel" blocks when the padded batch allows (keeps
    # both v7x TensorCores busy); otherwise a single block (no-op elsewhere).
    nb = 2 if (Bp >= 32 and Bp % 32 == 0) else 1
    bb = Bp // nb

    # Per-generation VMEM budget -> time-chunk size and vmem limit.
    cap = _tpu_vmem_capacity_bytes()
    vmem_limit = int(min(max(cap - 16 * 2**20, 32 * 2**20), 112 * 2**20))
    din_max = max(Din0p, Hp)
    fixed = (din_max + Hp) * 4 * Hp * 2          # single-buffered bf16 weights
    fixed += 2 * bb * Hp * 4 + 4 * Hp * 4        # h/c scratch + bias
    # per-timestep bytes: 2x input block (bf16) + 2x output block (bf16)
    # + gate-slab scratch (f32)
    per_t = bb * (4 * din_max + 4 * Hp + 16 * Hp)
    avail = vmem_limit - fixed - 8 * 2**20
    tt = int(max(1, min(min(T, 128), avail // per_t)))
    Tp = _round_up(T, tt)

    # One transpose + pad for the whole network (time-major kernel layout).
    x_tbd = jnp.transpose(x, (1, 0, 2)).astype(jnp.bfloat16)
    x_tbd = jnp.pad(x_tbd, ((0, Tp - T), (0, Bp - B), (0, Din0p - Din)))

    layer_in = x_tbd
    h_finals = []
    for li, lp in enumerate(params["lstm"]):
        din_pad = Din0p if li == 0 else Hp
        wih, whh, bias = _prep_layer_weights(lp, Hp, din_pad)
        last = (li == num_layers - 1)
        out = _lstm_layer(layer_in, wih, whh, bias, tt=tt, bb=bb,
                          seq_out=not last, t_real=T, vmem_limit=vmem_limit)
        if last:
            h_finals.append(out[:B, :H])                              # (B,H) f32
        else:
            h_finals.append(out[T - 1, :B, :H].astype(jnp.float32))   # h_T
            layer_in = out                                            # bf16 seq

    ht_flat = jnp.stack(h_finals, axis=0).reshape(-1, H)     # == ht.view(-1, H)
    # Tiny (L*B, H) @ (H, 1) head: plain jnp (a Pallas launch is pure overhead).
    w_lin = jnp.transpose(params["linear"]["w"]).astype(jnp.float32)
    b_lin = params["linear"]["b"].astype(jnp.float32)
    return ht_flat @ w_lin + b_lin


# Pure-JAX f32 reference for the sanity check.
def _reference_forward(params, x):
    x_tbd = jnp.transpose(x, (1, 0, 2))
    T, B, _ = x_tbd.shape
    H = params["lstm"][0]["w_hh"].shape[1]
    h_finals = []
    layer_in = x_tbd
    for lp in params["lstm"]:
        h = jnp.zeros((B, H), jnp.float32)
        c = jnp.zeros((B, H), jnp.float32)
        outs = []
        for t in range(T):
            g = (layer_in[t] @ lp["w_ih"].T + lp["b_ih"]
                 + h @ lp["w_hh"].T + lp["b_hh"])
            i = jax.nn.sigmoid(g[:, 0 * H:1 * H])
            f = jax.nn.sigmoid(g[:, 1 * H:2 * H])
            gg = jnp.tanh(g[:, 2 * H:3 * H])
            o = jax.nn.sigmoid(g[:, 3 * H:4 * H])
            c = f * c + i * gg
            h = o * jnp.tanh(c)
            outs.append(h)
        layer_in = jnp.stack(outs, axis=0)
        h_finals.append(h)
    ht = jnp.stack(h_finals, axis=0).reshape(-1, H)
    return ht @ params["linear"]["w"].T + params["linear"]["b"]


if __name__ == "__main__":
    B, T = 2, 8
    input_size, hidden_size, num_layers = 4, 32, 2

    key = jax.random.PRNGKey(0)
    kp, kx = jax.random.split(key)
    params = init_params(kp, input_size, hidden_size, num_layers)
    x = jax.random.normal(kx, (B, T, input_size), dtype=jnp.float32)

    out = lstm_model_forward(params, x)
    out = jax.block_until_ready(out)
    assert out.shape == (num_layers * B, 1), out.shape

    ref = _reference_forward(params, x)
    # bf16 matmul operands / bf16 intermediate sequence (f32 accumulation and
    # f32 h/c state) => loosened tolerance vs the f32 reference.
    assert jnp.allclose(out, ref, rtol=5e-2, atol=5e-2), \
        ("max abs diff", float(jnp.max(jnp.abs(out - ref))))

    print("KERNEL_OK")
</pallas_src>

<mosaic_0001>
module attributes {stable_mosaic.version = 11 : i64} {
  func.func @kernel(%arg0: i32, %arg1: i32, %arg2: memref<8x8x128xbf16, #tpu.memory_space<vmem>>, %arg3: memref<128x512xbf16, #tpu.memory_space<vmem>>, %arg4: memref<128x512xbf16, #tpu.memory_space<vmem>>, %arg5: memref<1x512xf32, #tpu.memory_space<vmem>>, %arg6: memref<8x128xf32, #tpu.memory_space<vmem>>, %arg7: memref<8x8x512xf32, #tpu.memory_space<vmem>>, %arg8: memref<8x128xf32, #tpu.memory_space<vmem>>, %arg9: memref<8x128xf32, #tpu.memory_space<vmem>>) attributes {dimension_semantics = [#tpu.dimension_semantics<parallel>, #tpu.dimension_semantics<arbitrary>], iteration_bounds = array<i64: 1, 1>, scalar_prefetch = 0 : i64, scratch_operands = 3 : i64, tpu.core_type = #tpu.core_type<tc>, window_params = [{transform_indices = @transform_0, window_bounds = array<i64: 8, 8, 128>}, {pipeline_mode = #tpu.pipeline_mode<synchronous>, transform_indices = @transform_1, window_bounds = array<i64: 128, 512>}, {pipeline_mode = #tpu.pipeline_mode<synchronous>, transform_indices = @transform_2, window_bounds = array<i64: 128, 512>}, {pipeline_mode = #tpu.pipeline_mode<synchronous>, transform_indices = @transform_3, window_bounds = array<i64: 1, 512>}, {transform_indices = @transform_4, window_bounds = array<i64: 8, 128>}]} {
    %c0_i32 = arith.constant 0 : i32
    %0 = arith.cmpi eq, %arg1, %c0_i32 : i32
    %1 = arith.extui %0 : i1 to i32
    %c0_i32_0 = arith.constant 0 : i32
    %2 = arith.cmpi ne, %1, %c0_i32_0 : i32
    scf.if %2 {
      %cst_166 = arith.constant 0.000000e+00 : f32
      %302 = vector.broadcast %cst_166 : f32 to vector<8x128xf32>
      %c0_167 = arith.constant 0 : index
      %c0_168 = arith.constant 0 : index
      %303 = vector.load %arg8[%c0_167, %c0_168] : memref<8x128xf32, #tpu.memory_space<vmem>>, vector<8x128xf32>
      tpu.vector_store %arg8[%c0_167, %c0_168], %302 {strides = array<i32>} : memref<8x128xf32, #tpu.memory_space<vmem>>, vector<8x128xf32>,
      %cst_169 = arith.constant 0.000000e+00 : f32
      %304 = vector.broadcast %cst_169 : f32 to vector<8x128xf32>
      %c0_170 = arith.constant 0 : index
      %c0_171 = arith.constant 0 : index
      %305 = vector.load %arg9[%c0_170, %c0_171] : memref<8x128xf32, #tpu.memory_space<vmem>>, vector<8x128xf32>
      tpu.vector_store %arg9[%c0_170, %c0_171], %304 {strides = array<i32>} : memref<8x128xf32, #tpu.memory_space<vmem>>, vector<8x128xf32>,
    } else {
    }
    %c0 = arith.constant 0 : index
    %c0_1 = arith.constant 0 : index
    %c0_2 = arith.constant 0 : index
    %3 = vector.load %arg2[%c0, %c0_1, %c0_2] : memref<8x8x128xbf16, #tpu.memory_space<vmem>>, vector<8x8x128xbf16>
    %4 = vector.shape_cast %3 : vector<8x8x128xbf16> to vector<64x128xbf16>
    %c0_3 = arith.constant 0 : index
    %c0_4 = arith.constant 0 : index
    %5 = vector.load %arg3[%c0_3, %c0_4] : memref<128x512xbf16, #tpu.memory_space<vmem>>, vector<128x512xbf16>
    %cst = arith.constant dense<0.000000e+00> : vector<64x512xf32>
    %6 = tpu.matmul %4, %5, %cst {dimension_numbers = #tpu.dot_dimension_numbers<[1], [0], [0], [1], [0, 0, 1, 1], [], []>} : vector<64x128xbf16>, vector<128x512xbf16>, vector<64x512xf32> -> vector<64x512xf32>
    %c0_5 = arith.constant 0 : index
    %c0_6 = arith.constant 0 : index
    %7 = vector.load %arg5[%c0_5, %c0_6] : memref<1x512xf32, #tpu.memory_space<vmem>>, vector<1x512xf32>
    %8 = vector.broadcast %7 : vector<1x512xf32> to vector<64x512xf32>
    %9 = arith.addf %6, %8 : vector<64x512xf32>
    %10 = vector.shape_cast %9 : vector<64x512xf32> to vector<8x8x512xf32>
    %c0_7 = arith.constant 0 : index
    %c0_8 = arith.constant 0 : index
    %c0_9 = arith.constant 0 : index
    %11 = vector.load %arg7[%c0_7, %c0_8, %c0_9] : memref<8x8x512xf32, #tpu.memory_space<vmem>>, vector<8x8x512xf32>
    tpu.vector_store %arg7[%c0_7, %c0_8, %c0_9], %10 {strides = array<i32>} : memref<8x8x512xf32, #tpu.memory_space<vmem>>, vector<8x8x512xf32>,
    %c0_10 = arith.constant 0 : index
    %c0_11 = arith.constant 0 : index
    %12 = vector.load %arg4[%c0_10, %c0_11] : memref<128x512xbf16, #tpu.memory_space<vmem>>, vector<128x512xbf16>
    %c0_i32_12 = arith.constant 0 : i32
    %13 = arith.cmpi eq, %arg1, %c0_i32_12 : i32
    %c0_i32_13 = arith.constant 0 : i32
    %c0_14 = arith.constant 0 : index
    %c0_15 = arith.constant 0 : index
    %14 = vector.load %arg8[%c0_14, %c0_15] : memref<8x128xf32, #tpu.memory_space<vmem>>, vector<8x128xf32>
    %c0_16 = arith.constant 0 : index
    %c0_17 = arith.constant 0 : index
    %15 = vector.load %arg9[%c0_16, %c0_17] : memref<8x128xf32, #tpu.memory_space<vmem>>, vector<8x128xf32>
    %16 = arith.index_cast %c0_i32_13 : i32 to index
    %c0_18 = arith.constant 0 : index
    %c0_19 = arith.constant 0 : index
    %17 = vector.load %arg7[%16, %c0_18, %c0_19] : memref<8x8x512xf32, #tpu.memory_space<vmem>>, vector<1x8x512xf32>
    %18 = vector.shape_cast %17 : vector<1x8x512xf32> to vector<8x512xf32>
    %19 = arith.truncf %14 : vector<8x128xf32> to vector<8x128xbf16>
    %cst_20 = arith.constant dense<0.000000e+00> : vector<8x512xf32>
    %20 = tpu.matmul %19, %12, %cst_20 {dimension_numbers = #tpu.dot_dimension_numbers<[1], [0], [0], [1], [0, 0, 1, 1], [], []>} : vector<8x128xbf16>, vector<128x512xbf16>, vector<8x512xf32> -> vector<8x512xf32>
    %21 = arith.addf %18, %20 : vector<8x512xf32>
    %22 = math.tanh %21 : vector<8x512xf32>
    %23 = vector.extract_strided_slice %22 {offsets = [0, 0], sizes = [8, 128], strides = [1, 1]} : vector<8x512xf32> to vector<8x128xf32>
    %cst_21 = arith.constant 5.000000e-01 : f32
    %24 = vector.broadcast %cst_21 : f32 to vector<8x128xf32>
    %25 = arith.mulf %23, %24 : vector<8x128xf32>
    %cst_22 = arith.constant 5.000000e-01 : f32
    %26 = vector.broadcast %cst_22 : f32 to vector<8x128xf32>
    %27 = arith.addf %25, %26 : vector<8x128xf32>
    %28 = vector.extract_strided_slice %22 {offsets = [0, 128], sizes = [8, 128], strides = [1, 1]} : vector<8x512xf32> to vector<8x128xf32>
    %cst_23 = arith.constant 5.000000e-01 : f32
    %29 = vector.broadcast %cst_23 : f32 to vector<8x128xf32>
    %30 = arith.mulf %28, %29 : vector<8x128xf32>
    %cst_24 = arith.constant 5.000000e-01 : f32
    %31 = vector.broadcast %cst_24 : f32 to vector<8x128xf32>
    %32 = arith.addf %30, %31 : vector<8x128xf32>
    %33 = vector.extract_strided_slice %22 {offsets = [0, 256], sizes = [8, 128], strides = [1, 1]} : vector<8x512xf32> to vector<8x128xf32>
    %34 = vector.extract_strided_slice %22 {offsets = [0, 384], sizes = [8, 128], strides = [1, 1]} : vector<8x512xf32> to vector<8x128xf32>
    %cst_25 = arith.constant 5.000000e-01 : f32
    %35 = vector.broadcast %cst_25 : f32 to vector<8x128xf32>
    %36 = arith.mulf %34, %35 : vector<8x128xf32>
    %cst_26 = arith.constant 5.000000e-01 : f32
    %37 = vector.broadcast %cst_26 : f32 to vector<8x128xf32>
    %38 = arith.addf %36, %37 : vector<8x128xf32>
    %39 = arith.mulf %32, %15 : vector<8x128xf32>
    %40 = arith.mulf %27, %33 : vector<8x128xf32>
    %41 = arith.addf %39, %40 : vector<8x128xf32>
    %42 = math.tanh %41 : vector<8x128xf32>
    %43 = arith.mulf %38, %42 : vector<8x128xf32>
    %c0_27 = arith.constant 0 : index
    %c0_28 = arith.constant 0 : index
    %44 = vector.load %arg8[%c0_27, %c0_28] : memref<8x128xf32, #tpu.memory_space<vmem>>, vector<8x128xf32>
    tpu.vector_store %arg8[%c0_27, %c0_28], %43 {strides = array<i32>} : memref<8x128xf32, #tpu.memory_space<vmem>>, vector<8x128xf32>,
    %c0_29 = arith.constant 0 : index
    %c0_30 = arith.constant 0 : index
    %45 = vector.load %arg9[%c0_29, %c0_30] : memref<8x128xf32, #tpu.memory_space<vmem>>, vector<8x128xf32>
    tpu.vector_store %arg9[%c0_29, %c0_30], %41 {strides = array<i32>} : memref<8x128xf32, #tpu.memory_space<vmem>>, vector<8x128xf32>,
    %c7_i32 = arith.constant 7 : i32
    %46 = arith.cmpi eq, %c0_i32_13, %c7_i32 : i32
    %47 = arith.andi %13, %46 : i1
    %48 = arith.extui %47 : i1 to i32
    %c0_i32_31 = arith.constant 0 : i32
    %49 = arith.cmpi ne, %48, %c0_i32_31 : i32
    scf.if %49 {
      %c0_166 = arith.constant 0 : index
      %c0_167 = arith.constant 0 : index
      %302 = vector.load %arg6[%c0_166, %c0_167] : memref<8x128xf32, #tpu.memory_space<vmem>>, vector<8x128xf32>
      tpu.vector_store %arg6[%c0_166, %c0_167], %43 {strides = array<i32>} : memref<8x128xf32, #tpu.memory_space<vmem>>, vector<8x128xf32>,
    } else {
    }
    %c1_i32 = arith.constant 1 : i32
    %c0_32 = arith.constant 0 : index
    %c0_33 = arith.constant 0 : index
    %50 = vector.load %arg8[%c0_32, %c0_33] : memref<8x128xf32, #tpu.memory_space<vmem>>, vector<8x128xf32>
    %c0_34 = arith.constant 0 : index
    %c0_35 = arith.constant 0 : index
    %51 = vector.load %arg9[%c0_34, %c0_35] : memref<8x128xf32, #tpu.memory_space<vmem>>, vector<8x128xf32>
    %52 = arith.index_cast %c1_i32 : i32 to index
    %c0_36 = arith.constant 0 : index
    %c0_37 = arith.constant 0 : index
    %53 = vector.load %arg7[%52, %c0_36, %c0_37] : memref<8x8x512xf32, #tpu.memory_space<vmem>>, vector<1x8x512xf32>
    %54 = vector.shape_cast %53 : vector<1x8x512xf32> to vector<8x512xf32>
    %55 = arith.truncf %50 : vector<8x128xf32> to vector<8x128xbf16>
    %cst_38 = arith.constant dense<0.000000e+00> : vector<8x512xf32>
    %56 = tpu.matmul %55, %12, %cst_38 {dimension_numbers = #tpu.dot_dimension_numbers<[1], [0], [0], [1], [0, 0, 1, 1], [], []>} : vector<8x128xbf16>, vector<128x512xbf16>, vector<8x512xf32> -> vector<8x512xf32>
    %57 = arith.addf %54, %56 : vector<8x512xf32>
    %58 = math.tanh %57 : vector<8x512xf32>
    %59 = vector.extract_strided_slice %58 {offsets = [0, 0], sizes = [8, 128], strides = [1, 1]} : vector<8x512xf32> to vector<8x128xf32>
    %cst_39 = arith.constant 5.000000e-01 : f32
    %60 = vector.broadcast %cst_39 : f32 to vector<8x128xf32>
    %61 = arith.mulf %59, %60 : vector<8x128xf32>
    %cst_40 = arith.constant 5.000000e-01 : f32
    %62 = vector.broadcast %cst_40 : f32 to vector<8x128xf32>
    %63 = arith.addf %61, %62 : vector<8x128xf32>
    %64 = vector.extract_strided_slice %58 {offsets = [0, 128], sizes = [8, 128], strides = [1, 1]} : vector<8x512xf32> to vector<8x128xf32>
    %cst_41 = arith.constant 5.000000e-01 : f32
    %65 = vector.broadcast %cst_41 : f32 to vector<8x128xf32>
    %66 = arith.mulf %64, %65 : vector<8x128xf32>
    %cst_42 = arith.constant 5.000000e-01 : f32
    %67 = vector.broadcast %cst_42 : f32 to vector<8x128xf32>
    %68 = arith.addf %66, %67 : vector<8x128xf32>
    %69 = vector.extract_strided_slice %58 {offsets = [0, 256], sizes = [8, 128], strides = [1, 1]} : vector<8x512xf32> to vector<8x128xf32>
    %70 = vector.extract_strided_slice %58 {offsets = [0, 384], sizes = [8, 128], strides = [1, 1]} : vector<8x512xf32> to vector<8x128xf32>
    %cst_43 = arith.constant 5.000000e-01 : f32
    %71 = vector.broadcast %cst_43 : f32 to vector<8x128xf32>
    %72 = arith.mulf %70, %71 : vector<8x128xf32>
    %cst_44 = arith.constant 5.000000e-01 : f32
    %73 = vector.broadcast %cst_44 : f32 to vector<8x128xf32>
    %74 = arith.addf %72, %73 : vector<8x128xf32>
    %75 = arith.mulf %68, %51 : vector<8x128xf32>
    %76 = arith.mulf %63, %69 : vector<8x128xf32>
    %77 = arith.addf %75, %76 : vector<8x128xf32>
    %78 = math.tanh %77 : vector<8x128xf32>
    %79 = arith.mulf %74, %78 : vector<8x128xf32>
    %c0_45 = arith.constant 0 : index
    %c0_46 = arith.constant 0 : index
    %80 = vector.load %arg8[%c0_45, %c0_46] : memref<8x128xf32, #tpu.memory_space<vmem>>, vector<8x128xf32>
    tpu.vector_store %arg8[%c0_45, %c0_46], %79 {strides = array<i32>} : memref<8x128xf32, #tpu.memory_space<vmem>>, vector<8x128xf32>,
    %c0_47 = arith.constant 0 : index
    %c0_48 = arith.constant 0 : index
    %81 = vector.load %arg9[%c0_47, %c0_48] : memref<8x128xf32, #tpu.memory_space<vmem>>, vector<8x128xf32>
    tpu.vector_store %arg9[%c0_47, %c0_48], %77 {strides = array<i32>} : memref<8x128xf32, #tpu.memory_space<vmem>>, vector<8x128xf32>,
    %c7_i32_49 = arith.constant 7 : i32
    %82 = arith.cmpi eq, %c1_i32, %c7_i32_49 : i32
    %83 = arith.andi %13, %82 : i1
    %84 = arith.extui %83 : i1 to i32
    %c0_i32_50 = arith.constant 0 : i32
    %85 = arith.cmpi ne, %84, %c0_i32_50 : i32
    scf.if %85 {
      %c0_166 = arith.constant 0 : index
      %c0_167 = arith.constant 0 : index
      %302 = vector.load %arg6[%c0_166, %c0_167] : memref<8x128xf32, #tpu.memory_space<vmem>>, vector<8x128xf32>
      tpu.vector_store %arg6[%c0_166, %c0_167], %79 {strides = array<i32>} : memref<8x128xf32, #tpu.memory_space<vmem>>, vector<8x128xf32>,
    } else {
    }
    %c2_i32 = arith.constant 2 : i32
    %c0_51 = arith.constant 0 : index
    %c0_52 = arith.constant 0 : index
    %86 = vector.load %arg8[%c0_51, %c0_52] : memref<8x128xf32, #tpu.memory_space<vmem>>, vector<8x128xf32>
    %c0_53 = arith.constant 0 : index
    %c0_54 = arith.constant 0 : index
    %87 = vector.load %arg9[%c0_53, %c0_54] : memref<8x128xf32, #tpu.memory_space<vmem>>, vector<8x128xf32>
    %88 = arith.index_cast %c2_i32 : i32 to index
    %c0_55 = arith.constant 0 : index
    %c0_56 = arith.constant 0 : index
    %89 = vector.load %arg7[%88, %c0_55, %c0_56] : memref<8x8x512xf32, #tpu.memory_space<vmem>>, vector<1x8x512xf32>
    %90 = vector.shape_cast %89 : vector<1x8x512xf32> to vector<8x512xf32>
    %91 = arith.truncf %86 : vector<8x128xf32> to vector<8x128xbf16>
    %cst_57 = arith.constant dense<0.000000e+00> : vector<8x512xf32>
    %92 = tpu.matmul %91, %12, %cst_57 {dimension_numbers = #tpu.dot_dimension_numbers<[1], [0], [0], [1], [0, 0, 1, 1], [], []>} : vector<8x128xbf16>, vector<128x512xbf16>, vector<8x512xf32> -> vector<8x512xf32>
    %93 = arith.addf %90, %92 : vector<8x512xf32>
    %94 = math.tanh %93 : vector<8x512xf32>
    %95 = vector.extract_strided_slice %94 {offsets = [0, 0], sizes = [8, 128], strides = [1, 1]} : vector<8x512xf32> to vector<8x128xf32>
    %cst_58 = arith.constant 5.000000e-01 : f32
    %96 = vector.broadcast %cst_58 : f32 to vector<8x128xf32>
    %97 = arith.mulf %95, %96 : vector<8x128xf32>
    %cst_59 = arith.constant 5.000000e-01 : f32
    %98 = vector.broadcast %cst_59 : f32 to vector<8x128xf32>
    %99 = arith.addf %97, %98 : vector<8x128xf32>
    %100 = vector.extract_strided_slice %94 {offsets = [0, 128], sizes = [8, 128], strides = [1, 1]} : vector<8x512xf32> to vector<8x128xf32>
    %cst_60 = arith.constant 5.000000e-01 : f32
    %101 = vector.broadcast %cst_60 : f32 to vector<8x128xf32>
    %102 = arith.mulf %100, %101 : vector<8x128xf32>
    %cst_61 = arith.constant 5.000000e-01 : f32
    %103 = vector.broadcast %cst_61 : f32 to vector<8x128xf32>
    %104 = arith.addf %102, %103 : vector<8x128xf32>
    %105 = vector.extract_strided_slice %94 {offsets = [0, 256], sizes = [8, 128], strides = [1, 1]} : vector<8x512xf32> to vector<8x128xf32>
    %106 = vector.extract_strided_slice %94 {offsets = [0, 384], sizes = [8, 128], strides = [1, 1]} : vector<8x512xf32> to vector<8x128xf32>
    %cst_62 = arith.constant 5.000000e-01 : f32
    %107 = vector.broadcast %cst_62 : f32 to vector<8x128xf32>
    %108 = arith.mulf %106, %107 : vector<8x128xf32>
    %cst_63 = arith.constant 5.000000e-01 : f32
    %109 = vector.broadcast %cst_63 : f32 to vector<8x128xf32>
    %110 = arith.addf %108, %109 : vector<8x128xf32>
    %111 = arith.mulf %104, %87 : vector<8x128xf32>
    %112 = arith.mulf %99, %105 : vector<8x128xf32>
    %113 = arith.addf %111, %112 : vector<8x128xf32>
    %114 = math.tanh %113 : vector<8x128xf32>
    %115 = arith.mulf %110, %114 : vector<8x128xf32>
    %c0_64 = arith.constant 0 : index
    %c0_65 = arith.constant 0 : index
    %116 = vector.load %arg8[%c0_64, %c0_65] : memref<8x128xf32, #tpu.memory_space<vmem>>, vector<8x128xf32>
    tpu.vector_store %arg8[%c0_64, %c0_65], %115 {strides = array<i32>} : memref<8x128xf32, #tpu.memory_space<vmem>>, vector<8x128xf32>,
    %c0_66 = arith.constant 0 : index
    %c0_67 = arith.constant 0 : index
    %117 = vector.load %arg9[%c0_66, %c0_67] : memref<8x128xf32, #tpu.memory_space<vmem>>, vector<8x128xf32>
    tpu.vector_store %arg9[%c0_66, %c0_67], %113 {strides = array<i32>} : memref<8x128xf32, #tpu.memory_space<vmem>>, vector<8x128xf32>,
    %c7_i32_68 = arith.constant 7 : i32
    %118 = arith.cmpi eq, %c2_i32, %c7_i32_68 : i32
    %119 = arith.andi %13, %118 : i1
    %120 = arith.extui %119 : i1 to i32
    %c0_i32_69 = arith.constant 0 : i32
    %121 = arith.cmpi ne, %120, %c0_i32_69 : i32
    scf.if %121 {
      %c0_166 = arith.constant 0 : index
      %c0_167 = arith.constant 0 : index
      %302 = vector.load %arg6[%c0_166, %c0_167] : memref<8x128xf32, #tpu.memory_space<vmem>>, vector<8x128xf32>
      tpu.vector_store %arg6[%c0_166, %c0_167], %115 {strides = array<i32>} : memref<8x128xf32, #tpu.memory_space<vmem>>, vector<8x128xf32>,
    } else {
    }
    %c3_i32 = arith.constant 3 : i32
    %c0_70 = arith.constant 0 : index
    %c0_71 = arith.constant 0 : index
    %122 = vector.load %arg8[%c0_70, %c0_71] : memref<8x128xf32, #tpu.memory_space<vmem>>, vector<8x128xf32>
    %c0_72 = arith.constant 0 : index
    %c0_73 = arith.constant 0 : index
    %123 = vector.load %arg9[%c0_72, %c0_73] : memref<8x128xf32, #tpu.memory_space<vmem>>, vector<8x128xf32>
    %124 = arith.index_cast %c3_i32 : i32 to index
    %c0_74 = arith.constant 0 : index
    %c0_75 = arith.constant 0 : index
    %125 = vector.load %arg7[%124, %c0_74, %c0_75] : memref<8x8x512xf32, #tpu.memory_space<vmem>>, vector<1x8x512xf32>
    %126 = vector.shape_cast %125 : vector<1x8x512xf32> to vector<8x512xf32>
    %127 = arith.truncf %122 : vector<8x128xf32> to vector<8x128xbf16>
    %cst_76 = arith.constant dense<0.000000e+00> : vector<8x512xf32>
    %128 = tpu.matmul %127, %12, %cst_76 {dimension_numbers = #tpu.dot_dimension_numbers<[1], [0], [0], [1], [0, 0, 1, 1], [], []>} : vector<8x128xbf16>, vector<128x512xbf16>, vector<8x512xf32> -> vector<8x512xf32>
    %129 = arith.addf %126, %128 : vector<8x512xf32>
    %130 = math.tanh %129 : vector<8x512xf32>
    %131 = vector.extract_strided_slice %130 {offsets = [0, 0], sizes = [8, 128], strides = [1, 1]} : vector<8x512xf32> to vector<8x128xf32>
    %cst_77 = arith.constant 5.000000e-01 : f32
    %132 = vector.broadcast %cst_77 : f32 to vector<8x128xf32>
    %133 = arith.mulf %131, %132 : vector<8x128xf32>
    %cst_78 = arith.constant 5.000000e-01 : f32
    %134 = vector.broadcast %cst_78 : f32 to vector<8x128xf32>
    %135 = arith.addf %133, %134 : vector<8x128xf32>
    %136 = vector.extract_strided_slice %130 {offsets = [0, 128], sizes = [8, 128], strides = [1, 1]} : vector<8x512xf32> to vector<8x128xf32>
    %cst_79 = arith.constant 5.000000e-01 : f32
    %137 = vector.broadcast %cst_79 : f32 to vector<8x128xf32>
    %138 = arith.mulf %136, %137 : vector<8x128xf32>
    %cst_80 = arith.constant 5.000000e-01 : f32
    %139 = vector.broadcast %cst_80 : f32 to vector<8x128xf32>
    %140 = arith.addf %138, %139 : vector<8x128xf32>
    %141 = vector.extract_strided_slice %130 {offsets = [0, 256], sizes = [8, 128], strides = [1, 1]} : vector<8x512xf32> to vector<8x128xf32>
    %142 = vector.extract_strided_slice %130 {offsets = [0, 384], sizes = [8, 128], strides = [1, 1]} : vector<8x512xf32> to vector<8x128xf32>
    %cst_81 = arith.constant 5.000000e-01 : f32
    %143 = vector.broadcast %cst_81 : f32 to vector<8x128xf32>
    %144 = arith.mulf %142, %143 : vector<8x128xf32>
    %cst_82 = arith.constant 5.000000e-01 : f32
    %145 = vector.broadcast %cst_82 : f32 to vector<8x128xf32>
    %146 = arith.addf %144, %145 : vector<8x128xf32>
    %147 = arith.mulf %140, %123 : vector<8x128xf32>
    %148 = arith.mulf %135, %141 : vector<8x128xf32>
    %149 = arith.addf %147, %148 : vector<8x128xf32>
    %150 = math.tanh %149 : vector<8x128xf32>
    %151 = arith.mulf %146, %150 : vector<8x128xf32>
    %c0_83 = arith.constant 0 : index
    %c0_84 = arith.constant 0 : index
    %152 = vector.load %arg8[%c0_83, %c0_84] : memref<8x128xf32, #tpu.memory_space<vmem>>, vector<8x128xf32>
    tpu.vector_store %arg8[%c0_83, %c0_84], %151 {strides = array<i32>} : memref<8x128xf32, #tpu.memory_space<vmem>>, vector<8x128xf32>,
    %c0_85 = arith.constant 0 : index
    %c0_86 = arith.constant 0 : index
    %153 = vector.load %arg9[%c0_85, %c0_86] : memref<8x128xf32, #tpu.memory_space<vmem>>, vector<8x128xf32>
    tpu.vector_store %arg9[%c0_85, %c0_86], %149 {strides = array<i32>} : memref<8x128xf32, #tpu.memory_space<vmem>>, vector<8x128xf32>,
    %c7_i32_87 = arith.constant 7 : i32
    %154 = arith.cmpi eq, %c3_i32, %c7_i32_87 : i32
    %155 = arith.andi %13, %154 : i1
    %156 = arith.extui %155 : i1 to i32
    %c0_i32_88 = arith.constant 0 : i32
    %157 = arith.cmpi ne, %156, %c0_i32_88 : i32
    scf.if %157 {
      %c0_166 = arith.constant 0 : index
      %c0_167 = arith.constant 0 : index
      %302 = vector.load %arg6[%c0_166, %c0_167] : memref<8x128xf32, #tpu.memory_space<vmem>>, vector<8x128xf32>
      tpu.vector_store %arg6[%c0_166, %c0_167], %151 {strides = array<i32>} : memref<8x128xf32, #tpu.memory_space<vmem>>, vector<8x128xf32>,
    } else {
    }
    %c4_i32 = arith.constant 4 : i32
    %c0_89 = arith.constant 0 : index
    %c0_90 = arith.constant 0 : index
    %158 = vector.load %arg8[%c0_89, %c0_90] : memref<8x128xf32, #tpu.memory_space<vmem>>, vector<8x128xf32>
    %c0_91 = arith.constant 0 : index
    %c0_92 = arith.constant 0 : index
    %159 = vector.load %arg9[%c0_91, %c0_92] : memref<8x128xf32, #tpu.memory_space<vmem>>, vector<8x128xf32>
    %160 = arith.index_cast %c4_i32 : i32 to index
    %c0_93 = arith.constant 0 : index
    %c0_94 = arith.constant 0 : index
    %161 = vector.load %arg7[%160, %c0_93, %c0_94] : memref<8x8x512xf32, #tpu.memory_space<vmem>>, vector<1x8x512xf32>
    %162 = vector.shape_cast %161 : vector<1x8x512xf32> to vector<8x512xf32>
    %163 = arith.truncf %158 : vector<8x128xf32> to vector<8x128xbf16>
    %cst_95 = arith.constant dense<0.000000e+00> : vector<8x512xf32>
    %164 = tpu.matmul %163, %12, %cst_95 {dimension_numbers = #tpu.dot_dimension_numbers<[1], [0], [0], [1], [0, 0, 1, 1], [], []>} : vector<8x128xbf16>, vector<128x512xbf16>, vector<8x512xf32> -> vector<8x512xf32>
    %165 = arith.addf %162, %164 : vector<8x512xf32>
    %166 = math.tanh %165 : vector<8x512xf32>
    %167 = vector.extract_strided_slice %166 {offsets = [0, 0], sizes = [8, 128], strides = [1, 1]} : vector<8x512xf32> to vector<8x128xf32>
    %cst_96 = arith.constant 5.000000e-01 : f32
    %168 = vector.broadcast %cst_96 : f32 to vector<8x128xf32>
    %169 = arith.mulf %167, %168 : vector<8x128xf32>
    %cst_97 = arith.constant 5.000000e-01 : f32
    %170 = vector.broadcast %cst_97 : f32 to vector<8x128xf32>
    %171 = arith.addf %169, %170 : vector<8x128xf32>
    %172 = vector.extract_strided_slice %166 {offsets = [0, 128], sizes = [8, 128], strides = [1, 1]} : vector<8x512xf32> to vector<8x128xf32>
    %cst_98 = arith.constant 5.000000e-01 : f32
    %173 = vector.broadcast %cst_98 : f32 to vector<8x128xf32>
    %174 = arith.mulf %172, %173 : vector<8x128xf32>
    %cst_99 = arith.constant 5.000000e-01 : f32
    %175 = vector.broadcast %cst_99 : f32 to vector<8x128xf32>
    %176 = arith.addf %174, %175 : vector<8x128xf32>
    %177 = vector.extract_strided_slice %166 {offsets = [0, 256], sizes = [8, 128], strides = [1, 1]} : vector<8x512xf32> to vector<8x128xf32>
    %178 = vector.extract_strided_slice %166 {offsets = [0, 384], sizes = [8, 128], strides = [1, 1]} : vector<8x512xf32> to vector<8x128xf32>
    %cst_100 = arith.constant 5.000000e-01 : f32
    %179 = vector.broadcast %cst_100 : f32 to vector<8x128xf32>
    %180 = arith.mulf %178, %179 : vector<8x128xf32>
    %cst_101 = arith.constant 5.000000e-01 : f32
    %181 = vector.broadcast %cst_101 : f32 to vector<8x128xf32>
    %182 = arith.addf %180, %181 : vector<8x128xf32>
    %183 = arith.mulf %176, %159 : vector<8x128xf32>
    %184 = arith.mulf %171, %177 : vector<8x128xf32>
    %185 = arith.addf %183, %184 : vector<8x128xf32>
    %186 = math.tanh %185 : vector<8x128xf32>
    %187 = arith.mulf %182, %186 : vector<8x128xf32>
    %c0_102 = arith.constant 0 : index
    %c0_103 = arith.constant 0 : index
    %188 = vector.load %arg8[%c0_102, %c0_103] : memref<8x128xf32, #tpu.memory_space<vmem>>, vector<8x128xf32>
    tpu.vector_store %arg8[%c0_102, %c0_103], %187 {strides = array<i32>} : memref<8x128xf32, #tpu.memory_space<vmem>>, vector<8x128xf32>,
    %c0_104 = arith.constant 0 : index
    %c0_105 = arith.constant 0 : index
    %189 = vector.load %arg9[%c0_104, %c0_105] : memref<8x128xf32, #tpu.memory_space<vmem>>, vector<8x128xf32>
    tpu.vector_store %arg9[%c0_104, %c0_105], %185 {strides = array<i32>} : memref<8x128xf32, #tpu.memory_space<vmem>>, vector<8x128xf32>,
    %c7_i32_106 = arith.constant 7 : i32
    %190 = arith.cmpi eq, %c4_i32, %c7_i32_106 : i32
    %191 = arith.andi %13, %190 : i1
    %192 = arith.extui %191 : i1 to i32
    %c0_i32_107 = arith.constant 0 : i32
    %193 = arith.cmpi ne, %192, %c0_i32_107 : i32
    scf.if %193 {
      %c0_166 = arith.constant 0 : index
      %c0_167 = arith.constant 0 : index
      %302 = vector.load %arg6[%c0_166, %c0_167] : memref<8x128xf32, #tpu.memory_space<vmem>>, vector<8x128xf32>
      tpu.vector_store %arg6[%c0_166, %c0_167], %187 {strides = array<i32>} : memref<8x128xf32, #tpu.memory_space<vmem>>, vector<8x128xf32>,
    } else {
    }
    %c5_i32 = arith.constant 5 : i32
    %c0_108 = arith.constant 0 : index
    %c0_109 = arith.constant 0 : index
    %194 = vector.load %arg8[%c0_108, %c0_109] : memref<8x128xf32, #tpu.memory_space<vmem>>, vector<8x128xf32>
    %c0_110 = arith.constant 0 : index
    %c0_111 = arith.constant 0 : index
    %195 = vector.load %arg9[%c0_110, %c0_111] : memref<8x128xf32, #tpu.memory_space<vmem>>, vector<8x128xf32>
    %196 = arith.index_cast %c5_i32 : i32 to index
    %c0_112 = arith.constant 0 : index
    %c0_113 = arith.constant 0 : index
    %197 = vector.load %arg7[%196, %c0_112, %c0_113] : memref<8x8x512xf32, #tpu.memory_space<vmem>>, vector<1x8x512xf32>
    %198 = vector.shape_cast %197 : vector<1x8x512xf32> to vector<8x512xf32>
    %199 = arith.truncf %194 : vector<8x128xf32> to vector<8x128xbf16>
    %cst_114 = arith.constant dense<0.000000e+00> : vector<8x512xf32>
    %200 = tpu.matmul %199, %12, %cst_114 {dimension_numbers = #tpu.dot_dimension_numbers<[1], [0], [0], [1], [0, 0, 1, 1], [], []>} : vector<8x128xbf16>, vector<128x512xbf16>, vector<8x512xf32> -> vector<8x512xf32>
    %201 = arith.addf %198, %200 : vector<8x512xf32>
    %202 = math.tanh %201 : vector<8x512xf32>
    %203 = vector.extract_strided_slice %202 {offsets = [0, 0], sizes = [8, 128], strides = [1, 1]} : vector<8x512xf32> to vector<8x128xf32>
    %cst_115 = arith.constant 5.000000e-01 : f32
    %204 = vector.broadcast %cst_115 : f32 to vector<8x128xf32>
    %205 = arith.mulf %203, %204 : vector<8x128xf32>
    %cst_116 = arith.constant 5.000000e-01 : f32
    %206 = vector.broadcast %cst_116 : f32 to vector<8x128xf32>
    %207 = arith.addf %205, %206 : vector<8x128xf32>
    %208 = vector.extract_strided_slice %202 {offsets = [0, 128], sizes = [8, 128], strides = [1, 1]} : vector<8x512xf32> to vector<8x128xf32>
    %cst_117 = arith.constant 5.000000e-01 : f32
    %209 = vector.broadcast %cst_117 : f32 to vector<8x128xf32>
    %210 = arith.mulf %208, %209 : vector<8x128xf32>
    %cst_118 = arith.constant 5.000000e-01 : f32
    %211 = vector.broadcast %cst_118 : f32 to vector<8x128xf32>
    %212 = arith.addf %210, %211 : vector<8x128xf32>
    %213 = vector.extract_strided_slice %202 {offsets = [0, 256], sizes = [8, 128], strides = [1, 1]} : vector<8x512xf32> to vector<8x128xf32>
    %214 = vector.extract_strided_slice %202 {offsets = [0, 384], sizes = [8, 128], strides = [1, 1]} : vector<8x512xf32> to vector<8x128xf32>
    %cst_119 = arith.constant 5.000000e-01 : f32
    %215 = vector.broadcast %cst_119 : f32 to vector<8x128xf32>
    %216 = arith.mulf %214, %215 : vector<8x128xf32>
    %cst_120 = arith.constant 5.000000e-01 : f32
    %217 = vector.broadcast %cst_120 : f32 to vector<8x128xf32>
    %218 = arith.addf %216, %217 : vector<8x128xf32>
    %219 = arith.mulf %212, %195 : vector<8x128xf32>
    %220 = arith.mulf %207, %213 : vector<8x128xf32>
    %221 = arith.addf %219, %220 : vector<8x128xf32>
    %222 = math.tanh %221 : vector<8x128xf32>
    %223 = arith.mulf %218, %222 : vector<8x128xf32>
    %c0_121 = arith.constant 0 : index
    %c0_122 = arith.constant 0 : index
    %224 = vector.load %arg8[%c0_121, %c0_122] : memref<8x128xf32, #tpu.memory_space<vmem>>, vector<8x128xf32>
    tpu.vector_store %arg8[%c0_121, %c0_122], %223 {strides = array<i32>} : memref<8x128xf32, #tpu.memory_space<vmem>>, vector<8x128xf32>,
    %c0_123 = arith.constant 0 : index
    %c0_124 = arith.constant 0 : index
    %225 = vector.load %arg9[%c0_123, %c0_124] : memref<8x128xf32, #tpu.memory_space<vmem>>, vector<8x128xf32>
    tpu.vector_store %arg9[%c0_123, %c0_124], %221 {strides = array<i32>} : memref<8x128xf32, #tpu.memory_space<vmem>>, vector<8x128xf32>,
    %c7_i32_125 = arith.constant 7 : i32
    %226 = arith.cmpi eq, %c5_i32, %c7_i32_125 : i32
    %227 = arith.andi %13, %226 : i1
    %228 = arith.extui %227 : i1 to i32
    %c0_i32_126 = arith.constant 0 : i32
    %229 = arith.cmpi ne, %228, %c0_i32_126 : i32
    scf.if %229 {
      %c0_166 = arith.constant 0 : index
      %c0_167 = arith.constant 0 : index
      %302 = vector.load %arg6[%c0_166, %c0_167] : memref<8x128xf32, #tpu.memory_space<vmem>>, vector<8x128xf32>
      tpu.vector_store %arg6[%c0_166, %c0_167], %223 {strides = array<i32>} : memref<8x128xf32, #tpu.memory_space<vmem>>, vector<8x128xf32>,
    } else {
    }
    %c6_i32 = arith.constant 6 : i32
    %c0_127 = arith.constant 0 : index
    %c0_128 = arith.constant 0 : index
    %230 = vector.load %arg8[%c0_127, %c0_128] : memref<8x128xf32, #tpu.memory_space<vmem>>, vector<8x128xf32>
    %c0_129 = arith.constant 0 : index
    %c0_130 = arith.constant 0 : index
    %231 = vector.load %arg9[%c0_129, %c0_130] : memref<8x128xf32, #tpu.memory_space<vmem>>, vector<8x128xf32>
    %232 = arith.index_cast %c6_i32 : i32 to index
    %c0_131 = arith.constant 0 : index
    %c0_132 = arith.constant 0 : index
    %233 = vector.load %arg7[%232, %c0_131, %c0_132] : memref<8x8x512xf32, #tpu.memory_space<vmem>>, vector<1x8x512xf32>
    %234 = vector.shape_cast %233 : vector<1x8x512xf32> to vector<8x512xf32>
    %235 = arith.truncf %230 : vector<8x128xf32> to vector<8x128xbf16>
    %cst_133 = arith.constant dense<0.000000e+00> : vector<8x512xf32>
    %236 = tpu.matmul %235, %12, %cst_133 {dimension_numbers = #tpu.dot_dimension_numbers<[1], [0], [0], [1], [0, 0, 1, 1], [], []>} : vector<8x128xbf16>, vector<128x512xbf16>, vector<8x512xf32> -> vector<8x512xf32>
    %237 = arith.addf %234, %236 : vector<8x512xf32>
    %238 = math.tanh %237 : vector<8x512xf32>
    %239 = vector.extract_strided_slice %238 {offsets = [0, 0], sizes = [8, 128], strides = [1, 1]} : vector<8x512xf32> to vector<8x128xf32>
    %cst_134 = arith.constant 5.000000e-01 : f32
    %240 = vector.broadcast %cst_134 : f32 to vector<8x128xf32>
    %241 = arith.mulf %239, %240 : vector<8x128xf32>
    %cst_135 = arith.constant 5.000000e-01 : f32
    %242 = vector.broadcast %cst_135 : f32 to vector<8x128xf32>
    %243 = arith.addf %241, %242 : vector<8x128xf32>
    %244 = vector.extract_strided_slice %238 {offsets = [0, 128], sizes = [8, 128], strides = [1, 1]} : vector<8x512xf32> to vector<8x128xf32>
    %cst_136 = arith.constant 5.000000e-01 : f32
    %245 = vector.broadcast %cst_136 : f32 to vector<8x128xf32>
    %246 = arith.mulf %244, %245 : vector<8x128xf32>
    %cst_137 = arith.constant 5.000000e-01 : f32
    %247 = vector.broadcast %cst_137 : f32 to vector<8x128xf32>
    %248 = arith.addf %246, %247 : vector<8x128xf32>
    %249 = vector.extract_strided_slice %238 {offsets = [0, 256], sizes = [8, 128], strides = [1, 1]} : vector<8x512xf32> to vector<8x128xf32>
    %250 = vector.extract_strided_slice %238 {offsets = [0, 384], sizes = [8, 128], strides = [1, 1]} : vector<8x512xf32> to vector<8x128xf32>
    %cst_138 = arith.constant 5.000000e-01 : f32
    %251 = vector.broadcast %cst_138 : f32 to vector<8x128xf32>
    %252 = arith.mulf %250, %251 : vector<8x128xf32>
    %cst_139 = arith.constant 5.000000e-01 : f32
    %253 = vector.broadcast %cst_139 : f32 to vector<8x128xf32>
    %254 = arith.addf %252, %253 : vector<8x128xf32>
    %255 = arith.mulf %248, %231 : vector<8x128xf32>
    %256 = arith.mulf %243, %249 : vector<8x128xf32>
    %257 = arith.addf %255, %256 : vector<8x128xf32>
    %258 = math.tanh %257 : vector<8x128xf32>
    %259 = arith.mulf %254, %258 : vector<8x128xf32>
    %c0_140 = arith.constant 0 : index
    %c0_141 = arith.constant 0 : index
    %260 = vector.load %arg8[%c0_140, %c0_141] : memref<8x128xf32, #tpu.memory_space<vmem>>, vector<8x128xf32>
    tpu.vector_store %arg8[%c0_140, %c0_141], %259 {strides = array<i32>} : memref<8x128xf32, #tpu.memory_space<vmem>>, vector<8x128xf32>,
    %c0_142 = arith.constant 0 : index
    %c0_143 = arith.constant 0 : index
    %261 = vector.load %arg9[%c0_142, %c0_143] : memref<8x128xf32, #tpu.memory_space<vmem>>, vector<8x128xf32>
    tpu.vector_store %arg9[%c0_142, %c0_143], %257 {strides = array<i32>} : memref<8x128xf32, #tpu.memory_space<vmem>>, vector<8x128xf32>,
    %c7_i32_144 = arith.constant 7 : i32
    %262 = arith.cmpi eq, %c6_i32, %c7_i32_144 : i32
    %263 = arith.andi %13, %262 : i1
    %264 = arith.extui %263 : i1 to i32
    %c0_i32_145 = arith.constant 0 : i32
    %265 = arith.cmpi ne, %264, %c0_i32_145 : i32
    scf.if %265 {
      %c0_166 = arith.constant 0 : index
      %c0_167 = arith.constant 0 : index
      %302 = vector.load %arg6[%c0_166, %c0_167] : memref<8x128xf32, #tpu.memory_space<vmem>>, vector<8x128xf32>
      tpu.vector_store %arg6[%c0_166, %c0_167], %259 {strides = array<i32>} : memref<8x128xf32, #tpu.memory_space<vmem>>, vector<8x128xf32>,
    } else {
    }
    %c7_i32_146 = arith.constant 7 : i32
    %c0_147 = arith.constant 0 : index
    %c0_148 = arith.constant 0 : index
    %266 = vector.load %arg8[%c0_147, %c0_148] : memref<8x128xf32, #tpu.memory_space<vmem>>, vector<8x128xf32>
    %c0_149 = arith.constant 0 : index
    %c0_150 = arith.constant 0 : index
    %267 = vector.load %arg9[%c0_149, %c0_150] : memref<8x128xf32, #tpu.memory_space<vmem>>, vector<8x128xf32>
    %268 = arith.index_cast %c7_i32_146 : i32 to index
    %c0_151 = arith.constant 0 : index
    %c0_152 = arith.constant 0 : index
    %269 = vector.load %arg7[%268, %c0_151, %c0_152] : memref<8x8x512xf32, #tpu.memory_space<vmem>>, vector<1x8x512xf32>
    %270 = vector.shape_cast %269 : vector<1x8x512xf32> to vector<8x512xf32>
    %271 = arith.truncf %266 : vector<8x128xf32> to vector<8x128xbf16>
    %cst_153 = arith.constant dense<0.000000e+00> : vector<8x512xf32>
    %272 = tpu.matmul %271, %12, %cst_153 {dimension_numbers = #tpu.dot_dimension_numbers<[1], [0], [0], [1], [0, 0, 1, 1], [], []>} : vector<8x128xbf16>, vector<128x512xbf16>, vector<8x512xf32> -> vector<8x512xf32>
    %273 = arith.addf %270, %272 : vector<8x512xf32>
    %274 = math.tanh %273 : vector<8x512xf32>
    %275 = vector.extract_strided_slice %274 {offsets = [0, 0], sizes = [8, 128], strides = [1, 1]} : vector<8x512xf32> to vector<8x128xf32>
    %cst_154 = arith.constant 5.000000e-01 : f32
    %276 = vector.broadcast %cst_154 : f32 to vector<8x128xf32>
    %277 = arith.mulf %275, %276 : vector<8x128xf32>
    %cst_155 = arith.constant 5.000000e-01 : f32
    %278 = vector.broadcast %cst_155 : f32 to vector<8x128xf32>
    %279 = arith.addf %277, %278 : vector<8x128xf32>
    %280 = vector.extract_strided_slice %274 {offsets = [0, 128], sizes = [8, 128], strides = [1, 1]} : vector<8x512xf32> to vector<8x128xf32>
    %cst_156 = arith.constant 5.000000e-01 : f32
    %281 = vector.broadcast %cst_156 : f32 to vector<8x128xf32>
    %282 = arith.mulf %280, %281 : vector<8x128xf32>
    %cst_157 = arith.constant 5.000000e-01 : f32
    %283 = vector.broadcast %cst_157 : f32 to vector<8x128xf32>
    %284 = arith.addf %282, %283 : vector<8x128xf32>
    %285 = vector.extract_strided_slice %274 {offsets = [0, 256], sizes = [8, 128], strides = [1, 1]} : vector<8x512xf32> to vector<8x128xf32>
    %286 = vector.extract_strided_slice %274 {offsets = [0, 384], sizes = [8, 128], strides = [1, 1]} : vector<8x512xf32> to vector<8x128xf32>
    %cst_158 = arith.constant 5.000000e-01 : f32
    %287 = vector.broadcast %cst_158 : f32 to vector<8x128xf32>
    %288 = arith.mulf %286, %287 : vector<8x128xf32>
    %cst_159 = arith.constant 5.000000e-01 : f32
    %289 = vector.broadcast %cst_159 : f32 to vector<8x128xf32>
    %290 = arith.addf %288, %289 : vector<8x128xf32>
    %291 = arith.mulf %284, %267 : vector<8x128xf32>
    %292 = arith.mulf %279, %285 : vector<8x128xf32>
    %293 = arith.addf %291, %292 : vector<8x128xf32>
    %294 = math.tanh %293 : vector<8x128xf32>
    %295 = arith.mulf %290, %294 : vector<8x128xf32>
    %c0_160 = arith.constant 0 : index
    %c0_161 = arith.constant 0 : index
    %296 = vector.load %arg8[%c0_160, %c0_161] : memref<8x128xf32, #tpu.memory_space<vmem>>, vector<8x128xf32>
    tpu.vector_store %arg8[%c0_160, %c0_161], %295 {strides = array<i32>} : memref<8x128xf32, #tpu.memory_space<vmem>>, vector<8x128xf32>,
    %c0_162 = arith.constant 0 : index
    %c0_163 = arith.constant 0 : index
    %297 = vector.load %arg9[%c0_162, %c0_163] : memref<8x128xf32, #tpu.memory_space<vmem>>, vector<8x128xf32>
    tpu.vector_store %arg9[%c0_162, %c0_163], %293 {strides = array<i32>} : memref<8x128xf32, #tpu.memory_space<vmem>>, vector<8x128xf32>,
    %c7_i32_164 = arith.constant 7 : i32
    %298 = arith.cmpi eq, %c7_i32_146, %c7_i32_164 : i32
    %299 = arith.andi %13, %298 : i1
    %300 = arith.extui %299 : i1 to i32
    %c0_i32_165 = arith.constant 0 : i32
    %301 = arith.cmpi ne, %300, %c0_i32_165 : i32
    scf.if %301 {
      %c0_166 = arith.constant 0 : index
      %c0_167 = arith.constant 0 : index
      %302 = vector.load %arg6[%c0_166, %c0_167] : memref<8x128xf32, #tpu.memory_space<vmem>>, vector<8x128xf32>
      tpu.vector_store %arg6[%c0_166, %c0_167], %295 {strides = array<i32>} : memref<8x128xf32, #tpu.memory_space<vmem>>, vector<8x128xf32>,
    } else {
    }
    %c8_i32 = arith.constant 8 : i32
    return
  }
  func.func @transform_0(%arg0: i32, %arg1: i32) -> (i32, i32, i32) {
    %c0_i32 = arith.constant 0 : i32
    %c0_i32_0 = arith.constant 0 : i32
    return %arg1, %arg0, %c0_i32 : i32, i32, i32
  }
  func.func @transform_1(%arg0: i32, %arg1: i32) -> (i32, i32) {
    %c0_i32 = arith.constant 0 : i32
    %c0_i32_0 = arith.constant 0 : i32
    %c0_i32_1 = arith.constant 0 : i32
    return %c0_i32, %c0_i32_0 : i32, i32
  }
  func.func @transform_2(%arg0: i32, %arg1: i32) -> (i32, i32) {
    %c0_i32 = arith.constant 0 : i32
    %c0_i32_0 = arith.constant 0 : i32
    %c0_i32_1 = arith.constant 0 : i32
    return %c0_i32, %c0_i32_0 : i32, i32
  }
  func.func @transform_3(%arg0: i32, %arg1: i32) -> (i32, i32) {
    %c0_i32 = arith.constant 0 : i32
    %c0_i32_0 = arith.constant 0 : i32
    %c0_i32_1 = arith.constant 0 : i32
    return %c0_i32, %c0_i32_0 : i32, i32
  }
  func.func @transform_4(%arg0: i32, %arg1: i32) -> (i32, i32) {
    %c0_i32 = arith.constant 0 : i32
    %c0_i32_0 = arith.constant 0 : i32
    return %arg0, %c0_i32 : i32, i32
  }
}

module attributes {stable_mosaic.version = 11 : i64} {
  func.func @kernel(%arg0: i32, %arg1: i32, %arg2: memref<8x8x128xbf16, #tpu.memory_space<vmem>>, %arg3: memref<128x512xbf16, #tpu.memory_space<vmem>>, %arg4: memref<128x512xbf16, #tpu.memory_space<vmem>>, %arg5: memref<1x512xf32, #tpu.memory_space<vmem>>, %arg6: memref<8x8x128xbf16, #tpu.memory_space<vmem>>, %arg7: memref<8x8x512xf32, #tpu.memory_space<vmem>>, %arg8: memref<8x128xf32, #tpu.memory_space<vmem>>, %arg9: memref<8x128xf32, #tpu.memory_space<vmem>>) attributes {dimension_semantics = [#tpu.dimension_semantics<parallel>, #tpu.dimension_semantics<arbitrary>], iteration_bounds = array<i64: 1, 1>, scalar_prefetch = 0 : i64, scratch_operands = 3 : i64, tpu.core_type = #tpu.core_type<tc>, window_params = [{transform_indices = @transform_0, window_bounds = array<i64: 8, 8, 128>}, {pipeline_mode = #tpu.pipeline_mode<synchronous>, transform_indices = @transform_1, window_bounds = array<i64: 128, 512>}, {pipeline_mode = #tpu.pipeline_mode<synchronous>, transform_indices = @transform_2, window_bounds = array<i64: 128, 512>}, {pipeline_mode = #tpu.pipeline_mode<synchronous>, transform_indices = @transform_3, window_bounds = array<i64: 1, 512>}, {transform_indices = @transform_4, window_bounds = array<i64: 8, 8, 128>}]} {
    %c0_i32 = arith.constant 0 : i32
    %0 = arith.cmpi eq, %arg1, %c0_i32 : i32
    %1 = arith.extui %0 : i1 to i32
    %c0_i32_0 = arith.constant 0 : i32
    %2 = arith.cmpi ne, %1, %c0_i32_0 : i32
    scf.if %2 {
      %cst_165 = arith.constant 0.000000e+00 : f32
      %309 = vector.broadcast %cst_165 : f32 to vector<8x128xf32>
      %c0_166 = arith.constant 0 : index
      %c0_167 = arith.constant 0 : index
      %310 = vector.load %arg8[%c0_166, %c0_167] : memref<8x128xf32, #tpu.memory_space<vmem>>, vector<8x128xf32>
      tpu.vector_store %arg8[%c0_166, %c0_167], %309 {strides = array<i32>} : memref<8x128xf32, #tpu.memory_space<vmem>>, vector<8x128xf32>,
      %cst_168 = arith.constant 0.000000e+00 : f32
      %311 = vector.broadcast %cst_168 : f32 to vector<8x128xf32>
      %c0_169 = arith.constant 0 : index
      %c0_170 = arith.constant 0 : index
      %312 = vector.load %arg9[%c0_169, %c0_170] : memref<8x128xf32, #tpu.memory_space<vmem>>, vector<8x128xf32>
      tpu.vector_store %arg9[%c0_169, %c0_170], %311 {strides = array<i32>} : memref<8x128xf32, #tpu.memory_space<vmem>>, vector<8x128xf32>,
    } else {
    }
    %c0 = arith.constant 0 : index
    %c0_1 = arith.constant 0 : index
    %c0_2 = arith.constant 0 : index
    %3 = vector.load %arg2[%c0, %c0_1, %c0_2] : memref<8x8x128xbf16, #tpu.memory_space<vmem>>, vector<8x8x128xbf16>
    %4 = vector.shape_cast %3 : vector<8x8x128xbf16> to vector<64x128xbf16>
    %c0_3 = arith.constant 0 : index
    %c0_4 = arith.constant 0 : index
    %5 = vector.load %arg3[%c0_3, %c0_4] : memref<128x512xbf16, #tpu.memory_space<vmem>>, vector<128x512xbf16>
    %cst = arith.constant dense<0.000000e+00> : vector<64x512xf32>
    %6 = tpu.matmul %4, %5, %cst {dimension_numbers = #tpu.dot_dimension_numbers<[1], [0], [0], [1], [0, 0, 1, 1], [], []>} : vector<64x128xbf16>, vector<128x512xbf16>, vector<64x512xf32> -> vector<64x512xf32>
    %c0_5 = arith.constant 0 : index
    %c0_6 = arith.constant 0 : index
    %7 = vector.load %arg5[%c0_5, %c0_6] : memref<1x512xf32, #tpu.memory_space<vmem>>, vector<1x512xf32>
    %8 = vector.broadcast %7 : vector<1x512xf32> to vector<64x512xf32>
    %9 = arith.addf %6, %8 : vector<64x512xf32>
    %10 = vector.shape_cast %9 : vector<64x512xf32> to vector<8x8x512xf32>
    %c0_7 = arith.constant 0 : index
    %c0_8 = arith.constant 0 : index
    %c0_9 = arith.constant 0 : index
    %11 = vector.load %arg7[%c0_7, %c0_8, %c0_9] : memref<8x8x512xf32, #tpu.memory_space<vmem>>, vector<8x8x512xf32>
    tpu.vector_store %arg7[%c0_7, %c0_8, %c0_9], %10 {strides = array<i32>} : memref<8x8x512xf32, #tpu.memory_space<vmem>>, vector<8x8x512xf32>,
    %c0_10 = arith.constant 0 : index
    %c0_11 = arith.constant 0 : index
    %12 = vector.load %arg4[%c0_10, %c0_11] : memref<128x512xbf16, #tpu.memory_space<vmem>>, vector<128x512xbf16>
    %c0_i32_12 = arith.constant 0 : i32
    %c0_13 = arith.constant 0 : index
    %c0_14 = arith.constant 0 : index
    %13 = vector.load %arg8[%c0_13, %c0_14] : memref<8x128xf32, #tpu.memory_space<vmem>>, vector<8x128xf32>
    %c0_15 = arith.constant 0 : index
    %c0_16 = arith.constant 0 : index
    %14 = vector.load %arg9[%c0_15, %c0_16] : memref<8x128xf32, #tpu.memory_space<vmem>>, vector<8x128xf32>
    %15 = arith.index_cast %c0_i32_12 : i32 to index
    %c0_17 = arith.constant 0 : index
    %c0_18 = arith.constant 0 : index
    %16 = vector.load %arg7[%15, %c0_17, %c0_18] : memref<8x8x512xf32, #tpu.memory_space<vmem>>, vector<1x8x512xf32>
    %17 = vector.shape_cast %16 : vector<1x8x512xf32> to vector<8x512xf32>
    %18 = arith.truncf %13 : vector<8x128xf32> to vector<8x128xbf16>
    %cst_19 = arith.constant dense<0.000000e+00> : vector<8x512xf32>
    %19 = tpu.matmul %18, %12, %cst_19 {dimension_numbers = #tpu.dot_dimension_numbers<[1], [0], [0], [1], [0, 0, 1, 1], [], []>} : vector<8x128xbf16>, vector<128x512xbf16>, vector<8x512xf32> -> vector<8x512xf32>
    %20 = arith.addf %17, %19 : vector<8x512xf32>
    %21 = math.tanh %20 : vector<8x512xf32>
    %22 = vector.extract_strided_slice %21 {offsets = [0, 0], sizes = [8, 128], strides = [1, 1]} : vector<8x512xf32> to vector<8x128xf32>
    %cst_20 = arith.constant 5.000000e-01 : f32
    %23 = vector.broadcast %cst_20 : f32 to vector<8x128xf32>
    %24 = arith.mulf %22, %23 : vector<8x128xf32>
    %cst_21 = arith.constant 5.000000e-01 : f32
    %25 = vector.broadcast %cst_21 : f32 to vector<8x128xf32>
    %26 = arith.addf %24, %25 : vector<8x128xf32>
    %27 = vector.extract_strided_slice %21 {offsets = [0, 128], sizes = [8, 128], strides = [1, 1]} : vector<8x512xf32> to vector<8x128xf32>
    %cst_22 = arith.constant 5.000000e-01 : f32
    %28 = vector.broadcast %cst_22 : f32 to vector<8x128xf32>
    %29 = arith.mulf %27, %28 : vector<8x128xf32>
    %cst_23 = arith.constant 5.000000e-01 : f32
    %30 = vector.broadcast %cst_23 : f32 to vector<8x128xf32>
    %31 = arith.addf %29, %30 : vector<8x128xf32>
    %32 = vector.extract_strided_slice %21 {offsets = [0, 256], sizes = [8, 128], strides = [1, 1]} : vector<8x512xf32> to vector<8x128xf32>
    %33 = vector.extract_strided_slice %21 {offsets = [0, 384], sizes = [8, 128], strides = [1, 1]} : vector<8x512xf32> to vector<8x128xf32>
    %cst_24 = arith.constant 5.000000e-01 : f32
    %34 = vector.broadcast %cst_24 : f32 to vector<8x128xf32>
    %35 = arith.mulf %33, %34 : vector<8x128xf32>
    %cst_25 = arith.constant 5.000000e-01 : f32
    %36 = vector.broadcast %cst_25 : f32 to vector<8x128xf32>
    %37 = arith.addf %35, %36 : vector<8x128xf32>
    %38 = arith.mulf %31, %14 : vector<8x128xf32>
    %39 = arith.mulf %26, %32 : vector<8x128xf32>
    %40 = arith.addf %38, %39 : vector<8x128xf32>
    %41 = math.tanh %40 : vector<8x128xf32>
    %42 = arith.mulf %37, %41 : vector<8x128xf32>
    %c0_26 = arith.constant 0 : index
    %c0_27 = arith.constant 0 : index
    %43 = vector.load %arg8[%c0_26, %c0_27] : memref<8x128xf32, #tpu.memory_space<vmem>>, vector<8x128xf32>
    tpu.vector_store %arg8[%c0_26, %c0_27], %42 {strides = array<i32>} : memref<8x128xf32, #tpu.memory_space<vmem>>, vector<8x128xf32>,
    %c0_28 = arith.constant 0 : index
    %c0_29 = arith.constant 0 : index
    %44 = vector.load %arg9[%c0_28, %c0_29] : memref<8x128xf32, #tpu.memory_space<vmem>>, vector<8x128xf32>
    tpu.vector_store %arg9[%c0_28, %c0_29], %40 {strides = array<i32>} : memref<8x128xf32, #tpu.memory_space<vmem>>, vector<8x128xf32>,
    %45 = arith.truncf %42 : vector<8x128xf32> to vector<8x128xbf16>
    %46 = arith.index_cast %c0_i32_12 : i32 to index
    %c0_30 = arith.constant 0 : index
    %c0_31 = arith.constant 0 : index
    %47 = vector.load %arg6[%46, %c0_30, %c0_31] : memref<8x8x128xbf16, #tpu.memory_space<vmem>>, vector<1x8x128xbf16>
    %48 = vector.shape_cast %47 : vector<1x8x128xbf16> to vector<8x128xbf16>
    %49 = vector.shape_cast %45 : vector<8x128xbf16> to vector<1x8x128xbf16>
    tpu.vector_store %arg6[%46, %c0_30, %c0_31], %49 {strides = array<i32>} : memref<8x8x128xbf16, #tpu.memory_space<vmem>>, vector<1x8x128xbf16>,
    %c1_i32 = arith.constant 1 : i32
    %c0_32 = arith.constant 0 : index
    %c0_33 = arith.constant 0 : index
    %50 = vector.load %arg8[%c0_32, %c0_33] : memref<8x128xf32, #tpu.memory_space<vmem>>, vector<8x128xf32>
    %c0_34 = arith.constant 0 : index
    %c0_35 = arith.constant 0 : index
    %51 = vector.load %arg9[%c0_34, %c0_35] : memref<8x128xf32, #tpu.memory_space<vmem>>, vector<8x128xf32>
    %52 = arith.index_cast %c1_i32 : i32 to index
    %c0_36 = arith.constant 0 : index
    %c0_37 = arith.constant 0 : index
    %53 = vector.load %arg7[%52, %c0_36, %c0_37] : memref<8x8x512xf32, #tpu.memory_space<vmem>>, vector<1x8x512xf32>
    %54 = vector.shape_cast %53 : vector<1x8x512xf32> to vector<8x512xf32>
    %55 = arith.truncf %50 : vector<8x128xf32> to vector<8x128xbf16>
    %cst_38 = arith.constant dense<0.000000e+00> : vector<8x512xf32>
    %56 = tpu.matmul %55, %12, %cst_38 {dimension_numbers = #tpu.dot_dimension_numbers<[1], [0], [0], [1], [0, 0, 1, 1], [], []>} : vector<8x128xbf16>, vector<128x512xbf16>, vector<8x512xf32> -> vector<8x512xf32>
    %57 = arith.addf %54, %56 : vector<8x512xf32>
    %58 = math.tanh %57 : vector<8x512xf32>
    %59 = vector.extract_strided_slice %58 {offsets = [0, 0], sizes = [8, 128], strides = [1, 1]} : vector<8x512xf32> to vector<8x128xf32>
    %cst_39 = arith.constant 5.000000e-01 : f32
    %60 = vector.broadcast %cst_39 : f32 to vector<8x128xf32>
    %61 = arith.mulf %59, %60 : vector<8x128xf32>
    %cst_40 = arith.constant 5.000000e-01 : f32
    %62 = vector.broadcast %cst_40 : f32 to vector<8x128xf32>
    %63 = arith.addf %61, %62 : vector<8x128xf32>
    %64 = vector.extract_strided_slice %58 {offsets = [0, 128], sizes = [8, 128], strides = [1, 1]} : vector<8x512xf32> to vector<8x128xf32>
    %cst_41 = arith.constant 5.000000e-01 : f32
    %65 = vector.broadcast %cst_41 : f32 to vector<8x128xf32>
    %66 = arith.mulf %64, %65 : vector<8x128xf32>
    %cst_42 = arith.constant 5.000000e-01 : f32
    %67 = vector.broadcast %cst_42 : f32 to vector<8x128xf32>
    %68 = arith.addf %66, %67 : vector<8x128xf32>
    %69 = vector.extract_strided_slice %58 {offsets = [0, 256], sizes = [8, 128], strides = [1, 1]} : vector<8x512xf32> to vector<8x128xf32>
    %70 = vector.extract_strided_slice %58 {offsets = [0, 384], sizes = [8, 128], strides = [1, 1]} : vector<8x512xf32> to vector<8x128xf32>
    %cst_43 = arith.constant 5.000000e-01 : f32
    %71 = vector.broadcast %cst_43 : f32 to vector<8x128xf32>
    %72 = arith.mulf %70, %71 : vector<8x128xf32>
    %cst_44 = arith.constant 5.000000e-01 : f32
    %73 = vector.broadcast %cst_44 : f32 to vector<8x128xf32>
    %74 = arith.addf %72, %73 : vector<8x128xf32>
    %75 = arith.mulf %68, %51 : vector<8x128xf32>
    %76 = arith.mulf %63, %69 : vector<8x128xf32>
    %77 = arith.addf %75, %76 : vector<8x128xf32>
    %78 = math.tanh %77 : vector<8x128xf32>
    %79 = arith.mulf %74, %78 : vector<8x128xf32>
    %c0_45 = arith.constant 0 : index
    %c0_46 = arith.constant 0 : index
    %80 = vector.load %arg8[%c0_45, %c0_46] : memref<8x128xf32, #tpu.memory_space<vmem>>, vector<8x128xf32>
    tpu.vector_store %arg8[%c0_45, %c0_46], %79 {strides = array<i32>} : memref<8x128xf32, #tpu.memory_space<vmem>>, vector<8x128xf32>,
    %c0_47 = arith.constant 0 : index
    %c0_48 = arith.constant 0 : index
    %81 = vector.load %arg9[%c0_47, %c0_48] : memref<8x128xf32, #tpu.memory_space<vmem>>, vector<8x128xf32>
    tpu.vector_store %arg9[%c0_47, %c0_48], %77 {strides = array<i32>} : memref<8x128xf32, #tpu.memory_space<vmem>>, vector<8x128xf32>,
    %82 = arith.truncf %79 : vector<8x128xf32> to vector<8x128xbf16>
    %83 = arith.index_cast %c1_i32 : i32 to index
    %c0_49 = arith.constant 0 : index
    %c0_50 = arith.constant 0 : index
    %84 = vector.load %arg6[%83, %c0_49, %c0_50] : memref<8x8x128xbf16, #tpu.memory_space<vmem>>, vector<1x8x128xbf16>
    %85 = vector.shape_cast %84 : vector<1x8x128xbf16> to vector<8x128xbf16>
    %86 = vector.shape_cast %82 : vector<8x128xbf16> to vector<1x8x128xbf16>
    tpu.vector_store %arg6[%83, %c0_49, %c0_50], %86 {strides = array<i32>} : memref<8x8x128xbf16, #tpu.memory_space<vmem>>, vector<1x8x128xbf16>,
    %c2_i32 = arith.constant 2 : i32
    %c0_51 = arith.constant 0 : index
    %c0_52 = arith.constant 0 : index
    %87 = vector.load %arg8[%c0_51, %c0_52] : memref<8x128xf32, #tpu.memory_space<vmem>>, vector<8x128xf32>
    %c0_53 = arith.constant 0 : index
    %c0_54 = arith.constant 0 : index
    %88 = vector.load %arg9[%c0_53, %c0_54] : memref<8x128xf32, #tpu.memory_space<vmem>>, vector<8x128xf32>
    %89 = arith.index_cast %c2_i32 : i32 to index
    %c0_55 = arith.constant 0 : index
    %c0_56 = arith.constant 0 : index
    %90 = vector.load %arg7[%89, %c0_55, %c0_56] : memref<8x8x512xf32, #tpu.memory_space<vmem>>, vector<1x8x512xf32>
    %91 = vector.shape_cast %90 : vector<1x8x512xf32> to vector<8x512xf32>
    %92 = arith.truncf %87 : vector<8x128xf32> to vector<8x128xbf16>
    %cst_57 = arith.constant dense<0.000000e+00> : vector<8x512xf32>
    %93 = tpu.matmul %92, %12, %cst_57 {dimension_numbers = #tpu.dot_dimension_numbers<[1], [0], [0], [1], [0, 0, 1, 1], [], []>} : vector<8x128xbf16>, vector<128x512xbf16>, vector<8x512xf32> -> vector<8x512xf32>
    %94 = arith.addf %91, %93 : vector<8x512xf32>
    %95 = math.tanh %94 : vector<8x512xf32>
    %96 = vector.extract_strided_slice %95 {offsets = [0, 0], sizes = [8, 128], strides = [1, 1]} : vector<8x512xf32> to vector<8x128xf32>
    %cst_58 = arith.constant 5.000000e-01 : f32
    %97 = vector.broadcast %cst_58 : f32 to vector<8x128xf32>
    %98 = arith.mulf %96, %97 : vector<8x128xf32>
    %cst_59 = arith.constant 5.000000e-01 : f32
    %99 = vector.broadcast %cst_59 : f32 to vector<8x128xf32>
    %100 = arith.addf %98, %99 : vector<8x128xf32>
    %101 = vector.extract_strided_slice %95 {offsets = [0, 128], sizes = [8, 128], strides = [1, 1]} : vector<8x512xf32> to vector<8x128xf32>
    %cst_60 = arith.constant 5.000000e-01 : f32
    %102 = vector.broadcast %cst_60 : f32 to vector<8x128xf32>
    %103 = arith.mulf %101, %102 : vector<8x128xf32>
    %cst_61 = arith.constant 5.000000e-01 : f32
    %104 = vector.broadcast %cst_61 : f32 to vector<8x128xf32>
    %105 = arith.addf %103, %104 : vector<8x128xf32>
    %106 = vector.extract_strided_slice %95 {offsets = [0, 256], sizes = [8, 128], strides = [1, 1]} : vector<8x512xf32> to vector<8x128xf32>
    %107 = vector.extract_strided_slice %95 {offsets = [0, 384], sizes = [8, 128], strides = [1, 1]} : vector<8x512xf32> to vector<8x128xf32>
    %cst_62 = arith.constant 5.000000e-01 : f32
    %108 = vector.broadcast %cst_62 : f32 to vector<8x128xf32>
    %109 = arith.mulf %107, %108 : vector<8x128xf32>
    %cst_63 = arith.constant 5.000000e-01 : f32
    %110 = vector.broadcast %cst_63 : f32 to vector<8x128xf32>
    %111 = arith.addf %109, %110 : vector<8x128xf32>
    %112 = arith.mulf %105, %88 : vector<8x128xf32>
    %113 = arith.mulf %100, %106 : vector<8x128xf32>
    %114 = arith.addf %112, %113 : vector<8x128xf32>
    %115 = math.tanh %114 : vector<8x128xf32>
    %116 = arith.mulf %111, %115 : vector<8x128xf32>
    %c0_64 = arith.constant 0 : index
    %c0_65 = arith.constant 0 : index
    %117 = vector.load %arg8[%c0_64, %c0_65] : memref<8x128xf32, #tpu.memory_space<vmem>>, vector<8x128xf32>
    tpu.vector_store %arg8[%c0_64, %c0_65], %116 {strides = array<i32>} : memref<8x128xf32, #tpu.memory_space<vmem>>, vector<8x128xf32>,
    %c0_66 = arith.constant 0 : index
    %c0_67 = arith.constant 0 : index
    %118 = vector.load %arg9[%c0_66, %c0_67] : memref<8x128xf32, #tpu.memory_space<vmem>>, vector<8x128xf32>
    tpu.vector_store %arg9[%c0_66, %c0_67], %114 {strides = array<i32>} : memref<8x128xf32, #tpu.memory_space<vmem>>, vector<8x128xf32>,
    %119 = arith.truncf %116 : vector<8x128xf32> to vector<8x128xbf16>
    %120 = arith.index_cast %c2_i32 : i32 to index
    %c0_68 = arith.constant 0 : index
    %c0_69 = arith.constant 0 : index
    %121 = vector.load %arg6[%120, %c0_68, %c0_69] : memref<8x8x128xbf16, #tpu.memory_space<vmem>>, vector<1x8x128xbf16>
    %122 = vector.shape_cast %121 : vector<1x8x128xbf16> to vector<8x128xbf16>
    %123 = vector.shape_cast %119 : vector<8x128xbf16> to vector<1x8x128xbf16>
    tpu.vector_store %arg6[%120, %c0_68, %c0_69], %123 {strides = array<i32>} : memref<8x8x128xbf16, #tpu.memory_space<vmem>>, vector<1x8x128xbf16>,
    %c3_i32 = arith.constant 3 : i32
    %c0_70 = arith.constant 0 : index
    %c0_71 = arith.constant 0 : index
    %124 = vector.load %arg8[%c0_70, %c0_71] : memref<8x128xf32, #tpu.memory_space<vmem>>, vector<8x128xf32>
    %c0_72 = arith.constant 0 : index
    %c0_73 = arith.constant 0 : index
    %125 = vector.load %arg9[%c0_72, %c0_73] : memref<8x128xf32, #tpu.memory_space<vmem>>, vector<8x128xf32>
    %126 = arith.index_cast %c3_i32 : i32 to index
    %c0_74 = arith.constant 0 : index
    %c0_75 = arith.constant 0 : index
    %127 = vector.load %arg7[%126, %c0_74, %c0_75] : memref<8x8x512xf32, #tpu.memory_space<vmem>>, vector<1x8x512xf32>
    %128 = vector.shape_cast %127 : vector<1x8x512xf32> to vector<8x512xf32>
    %129 = arith.truncf %124 : vector<8x128xf32> to vector<8x128xbf16>
    %cst_76 = arith.constant dense<0.000000e+00> : vector<8x512xf32>
    %130 = tpu.matmul %129, %12, %cst_76 {dimension_numbers = #tpu.dot_dimension_numbers<[1], [0], [0], [1], [0, 0, 1, 1], [], []>} : vector<8x128xbf16>, vector<128x512xbf16>, vector<8x512xf32> -> vector<8x512xf32>
    %131 = arith.addf %128, %130 : vector<8x512xf32>
    %132 = math.tanh %131 : vector<8x512xf32>
    %133 = vector.extract_strided_slice %132 {offsets = [0, 0], sizes = [8, 128], strides = [1, 1]} : vector<8x512xf32> to vector<8x128xf32>
    %cst_77 = arith.constant 5.000000e-01 : f32
    %134 = vector.broadcast %cst_77 : f32 to vector<8x128xf32>
    %135 = arith.mulf %133, %134 : vector<8x128xf32>
    %cst_78 = arith.constant 5.000000e-01 : f32
    %136 = vector.broadcast %cst_78 : f32 to vector<8x128xf32>
    %137 = arith.addf %135, %136 : vector<8x128xf32>
    %138 = vector.extract_strided_slice %132 {offsets = [0, 128], sizes = [8, 128], strides = [1, 1]} : vector<8x512xf32> to vector<8x128xf32>
    %cst_79 = arith.constant 5.000000e-01 : f32
    %139 = vector.broadcast %cst_79 : f32 to vector<8x128xf32>
    %140 = arith.mulf %138, %139 : vector<8x128xf32>
    %cst_80 = arith.constant 5.000000e-01 : f32
    %141 = vector.broadcast %cst_80 : f32 to vector<8x128xf32>
    %142 = arith.addf %140, %141 : vector<8x128xf32>
    %143 = vector.extract_strided_slice %132 {offsets = [0, 256], sizes = [8, 128], strides = [1, 1]} : vector<8x512xf32> to vector<8x128xf32>
    %144 = vector.extract_strided_slice %132 {offsets = [0, 384], sizes = [8, 128], strides = [1, 1]} : vector<8x512xf32> to vector<8x128xf32>
    %cst_81 = arith.constant 5.000000e-01 : f32
    %145 = vector.broadcast %cst_81 : f32 to vector<8x128xf32>
    %146 = arith.mulf %144, %145 : vector<8x128xf32>
    %cst_82 = arith.constant 5.000000e-01 : f32
    %147 = vector.broadcast %cst_82 : f32 to vector<8x128xf32>
    %148 = arith.addf %146, %147 : vector<8x128xf32>
    %149 = arith.mulf %142, %125 : vector<8x128xf32>
    %150 = arith.mulf %137, %143 : vector<8x128xf32>
    %151 = arith.addf %149, %150 : vector<8x128xf32>
    %152 = math.tanh %151 : vector<8x128xf32>
    %153 = arith.mulf %148, %152 : vector<8x128xf32>
    %c0_83 = arith.constant 0 : index
    %c0_84 = arith.constant 0 : index
    %154 = vector.load %arg8[%c0_83, %c0_84] : memref<8x128xf32, #tpu.memory_space<vmem>>, vector<8x128xf32>
    tpu.vector_store %arg8[%c0_83, %c0_84], %153 {strides = array<i32>} : memref<8x128xf32, #tpu.memory_space<vmem>>, vector<8x128xf32>,
    %c0_85 = arith.constant 0 : index
    %c0_86 = arith.constant 0 : index
    %155 = vector.load %arg9[%c0_85, %c0_86] : memref<8x128xf32, #tpu.memory_space<vmem>>, vector<8x128xf32>
    tpu.vector_store %arg9[%c0_85, %c0_86], %151 {strides = array<i32>} : memref<8x128xf32, #tpu.memory_space<vmem>>, vector<8x128xf32>,
    %156 = arith.truncf %153 : vector<8x128xf32> to vector<8x128xbf16>
    %157 = arith.index_cast %c3_i32 : i32 to index
    %c0_87 = arith.constant 0 : index
    %c0_88 = arith.constant 0 : index
    %158 = vector.load %arg6[%157, %c0_87, %c0_88] : memref<8x8x128xbf16, #tpu.memory_space<vmem>>, vector<1x8x128xbf16>
    %159 = vector.shape_cast %158 : vector<1x8x128xbf16> to vector<8x128xbf16>
    %160 = vector.shape_cast %156 : vector<8x128xbf16> to vector<1x8x128xbf16>
    tpu.vector_store %arg6[%157, %c0_87, %c0_88], %160 {strides = array<i32>} : memref<8x8x128xbf16, #tpu.memory_space<vmem>>, vector<1x8x128xbf16>,
    %c4_i32 = arith.constant 4 : i32
    %c0_89 = arith.constant 0 : index
    %c0_90 = arith.constant 0 : index
    %161 = vector.load %arg8[%c0_89, %c0_90] : memref<8x128xf32, #tpu.memory_space<vmem>>, vector<8x128xf32>
    %c0_91 = arith.constant 0 : index
    %c0_92 = arith.constant 0 : index
    %162 = vector.load %arg9[%c0_91, %c0_92] : memref<8x128xf32, #tpu.memory_space<vmem>>, vector<8x128xf32>
    %163 = arith.index_cast %c4_i32 : i32 to index
    %c0_93 = arith.constant 0 : index
    %c0_94 = arith.constant 0 : index
    %164 = vector.load %arg7[%163, %c0_93, %c0_94] : memref<8x8x512xf32, #tpu.memory_space<vmem>>, vector<1x8x512xf32>
    %165 = vector.shape_cast %164 : vector<1x8x512xf32> to vector<8x512xf32>
    %166 = arith.truncf %161 : vector<8x128xf32> to vector<8x128xbf16>
    %cst_95 = arith.constant dense<0.000000e+00> : vector<8x512xf32>
    %167 = tpu.matmul %166, %12, %cst_95 {dimension_numbers = #tpu.dot_dimension_numbers<[1], [0], [0], [1], [0, 0, 1, 1], [], []>} : vector<8x128xbf16>, vector<128x512xbf16>, vector<8x512xf32> -> vector<8x512xf32>
    %168 = arith.addf %165, %167 : vector<8x512xf32>
    %169 = math.tanh %168 : vector<8x512xf32>
    %170 = vector.extract_strided_slice %169 {offsets = [0, 0], sizes = [8, 128], strides = [1, 1]} : vector<8x512xf32> to vector<8x128xf32>
    %cst_96 = arith.constant 5.000000e-01 : f32
    %171 = vector.broadcast %cst_96 : f32 to vector<8x128xf32>
    %172 = arith.mulf %170, %171 : vector<8x128xf32>
    %cst_97 = arith.constant 5.000000e-01 : f32
    %173 = vector.broadcast %cst_97 : f32 to vector<8x128xf32>
    %174 = arith.addf %172, %173 : vector<8x128xf32>
    %175 = vector.extract_strided_slice %169 {offsets = [0, 128], sizes = [8, 128], strides = [1, 1]} : vector<8x512xf32> to vector<8x128xf32>
    %cst_98 = arith.constant 5.000000e-01 : f32
    %176 = vector.broadcast %cst_98 : f32 to vector<8x128xf32>
    %177 = arith.mulf %175, %176 : vector<8x128xf32>
    %cst_99 = arith.constant 5.000000e-01 : f32
    %178 = vector.broadcast %cst_99 : f32 to vector<8x128xf32>
    %179 = arith.addf %177, %178 : vector<8x128xf32>
    %180 = vector.extract_strided_slice %169 {offsets = [0, 256], sizes = [8, 128], strides = [1, 1]} : vector<8x512xf32> to vector<8x128xf32>
    %181 = vector.extract_strided_slice %169 {offsets = [0, 384], sizes = [8, 128], strides = [1, 1]} : vector<8x512xf32> to vector<8x128xf32>
    %cst_100 = arith.constant 5.000000e-01 : f32
    %182 = vector.broadcast %cst_100 : f32 to vector<8x128xf32>
    %183 = arith.mulf %181, %182 : vector<8x128xf32>
    %cst_101 = arith.constant 5.000000e-01 : f32
    %184 = vector.broadcast %cst_101 : f32 to vector<8x128xf32>
    %185 = arith.addf %183, %184 : vector<8x128xf32>
    %186 = arith.mulf %179, %162 : vector<8x128xf32>
    %187 = arith.mulf %174, %180 : vector<8x128xf32>
    %188 = arith.addf %186, %187 : vector<8x128xf32>
    %189 = math.tanh %188 : vector<8x128xf32>
    %190 = arith.mulf %185, %189 : vector<8x128xf32>
    %c0_102 = arith.constant 0 : index
    %c0_103 = arith.constant 0 : index
    %191 = vector.load %arg8[%c0_102, %c0_103] : memref<8x128xf32, #tpu.memory_space<vmem>>, vector<8x128xf32>
    tpu.vector_store %arg8[%c0_102, %c0_103], %190 {strides = array<i32>} : memref<8x128xf32, #tpu.memory_space<vmem>>, vector<8x128xf32>,
    %c0_104 = arith.constant 0 : index
    %c0_105 = arith.constant 0 : index
    %192 = vector.load %arg9[%c0_104, %c0_105] : memref<8x128xf32, #tpu.memory_space<vmem>>, vector<8x128xf32>
    tpu.vector_store %arg9[%c0_104, %c0_105], %188 {strides = array<i32>} : memref<8x128xf32, #tpu.memory_space<vmem>>, vector<8x128xf32>,
    %193 = arith.truncf %190 : vector<8x128xf32> to vector<8x128xbf16>
    %194 = arith.index_cast %c4_i32 : i32 to index
    %c0_106 = arith.constant 0 : index
    %c0_107 = arith.constant 0 : index
    %195 = vector.load %arg6[%194, %c0_106, %c0_107] : memref<8x8x128xbf16, #tpu.memory_space<vmem>>, vector<1x8x128xbf16>
    %196 = vector.shape_cast %195 : vector<1x8x128xbf16> to vector<8x128xbf16>
    %197 = vector.shape_cast %193 : vector<8x128xbf16> to vector<1x8x128xbf16>
    tpu.vector_store %arg6[%194, %c0_106, %c0_107], %197 {strides = array<i32>} : memref<8x8x128xbf16, #tpu.memory_space<vmem>>, vector<1x8x128xbf16>,
    %c5_i32 = arith.constant 5 : i32
    %c0_108 = arith.constant 0 : index
    %c0_109 = arith.constant 0 : index
    %198 = vector.load %arg8[%c0_108, %c0_109] : memref<8x128xf32, #tpu.memory_space<vmem>>, vector<8x128xf32>
    %c0_110 = arith.constant 0 : index
    %c0_111 = arith.constant 0 : index
    %199 = vector.load %arg9[%c0_110, %c0_111] : memref<8x128xf32, #tpu.memory_space<vmem>>, vector<8x128xf32>
    %200 = arith.index_cast %c5_i32 : i32 to index
    %c0_112 = arith.constant 0 : index
    %c0_113 = arith.constant 0 : index
    %201 = vector.load %arg7[%200, %c0_112, %c0_113] : memref<8x8x512xf32, #tpu.memory_space<vmem>>, vector<1x8x512xf32>
    %202 = vector.shape_cast %201 : vector<1x8x512xf32> to vector<8x512xf32>
    %203 = arith.truncf %198 : vector<8x128xf32> to vector<8x128xbf16>
    %cst_114 = arith.constant dense<0.000000e+00> : vector<8x512xf32>
    %204 = tpu.matmul %203, %12, %cst_114 {dimension_numbers = #tpu.dot_dimension_numbers<[1], [0], [0], [1], [0, 0, 1, 1], [], []>} : vector<8x128xbf16>, vector<128x512xbf16>, vector<8x512xf32> -> vector<8x512xf32>
    %205 = arith.addf %202, %204 : vector<8x512xf32>
    %206 = math.tanh %205 : vector<8x512xf32>
    %207 = vector.extract_strided_slice %206 {offsets = [0, 0], sizes = [8, 128], strides = [1, 1]} : vector<8x512xf32> to vector<8x128xf32>
    %cst_115 = arith.constant 5.000000e-01 : f32
    %208 = vector.broadcast %cst_115 : f32 to vector<8x128xf32>
    %209 = arith.mulf %207, %208 : vector<8x128xf32>
    %cst_116 = arith.constant 5.000000e-01 : f32
    %210 = vector.broadcast %cst_116 : f32 to vector<8x128xf32>
    %211 = arith.addf %209, %210 : vector<8x128xf32>
    %212 = vector.extract_strided_slice %206 {offsets = [0, 128], sizes = [8, 128], strides = [1, 1]} : vector<8x512xf32> to vector<8x128xf32>
    %cst_117 = arith.constant 5.000000e-01 : f32
    %213 = vector.broadcast %cst_117 : f32 to vector<8x128xf32>
    %214 = arith.mulf %212, %213 : vector<8x128xf32>
    %cst_118 = arith.constant 5.000000e-01 : f32
    %215 = vector.broadcast %cst_118 : f32 to vector<8x128xf32>
    %216 = arith.addf %214, %215 : vector<8x128xf32>
    %217 = vector.extract_strided_slice %206 {offsets = [0, 256], sizes = [8, 128], strides = [1, 1]} : vector<8x512xf32> to vector<8x128xf32>
    %218 = vector.extract_strided_slice %206 {offsets = [0, 384], sizes = [8, 128], strides = [1, 1]} : vector<8x512xf32> to vector<8x128xf32>
    %cst_119 = arith.constant 5.000000e-01 : f32
    %219 = vector.broadcast %cst_119 : f32 to vector<8x128xf32>
    %220 = arith.mulf %218, %219 : vector<8x128xf32>
    %cst_120 = arith.constant 5.000000e-01 : f32
    %221 = vector.broadcast %cst_120 : f32 to vector<8x128xf32>
    %222 = arith.addf %220, %221 : vector<8x128xf32>
    %223 = arith.mulf %216, %199 : vector<8x128xf32>
    %224 = arith.mulf %211, %217 : vector<8x128xf32>
    %225 = arith.addf %223, %224 : vector<8x128xf32>
    %226 = math.tanh %225 : vector<8x128xf32>
    %227 = arith.mulf %222, %226 : vector<8x128xf32>
    %c0_121 = arith.constant 0 : index
    %c0_122 = arith.constant 0 : index
    %228 = vector.load %arg8[%c0_121, %c0_122] : memref<8x128xf32, #tpu.memory_space<vmem>>, vector<8x128xf32>
    tpu.vector_store %arg8[%c0_121, %c0_122], %227 {strides = array<i32>} : memref<8x128xf32, #tpu.memory_space<vmem>>, vector<8x128xf32>,
    %c0_123 = arith.constant 0 : index
    %c0_124 = arith.constant 0 : index
    %229 = vector.load %arg9[%c0_123, %c0_124] : memref<8x128xf32, #tpu.memory_space<vmem>>, vector<8x128xf32>
    tpu.vector_store %arg9[%c0_123, %c0_124], %225 {strides = array<i32>} : memref<8x128xf32, #tpu.memory_space<vmem>>, vector<8x128xf32>,
    %230 = arith.truncf %227 : vector<8x128xf32> to vector<8x128xbf16>
    %231 = arith.index_cast %c5_i32 : i32 to index
    %c0_125 = arith.constant 0 : index
    %c0_126 = arith.constant 0 : index
    %232 = vector.load %arg6[%231, %c0_125, %c0_126] : memref<8x8x128xbf16, #tpu.memory_space<vmem>>, vector<1x8x128xbf16>
    %233 = vector.shape_cast %232 : vector<1x8x128xbf16> to vector<8x128xbf16>
    %234 = vector.shape_cast %230 : vector<8x128xbf16> to vector<1x8x128xbf16>
    tpu.vector_store %arg6[%231, %c0_125, %c0_126], %234 {strides = array<i32>} : memref<8x8x128xbf16, #tpu.memory_space<vmem>>, vector<1x8x128xbf16>,
    %c6_i32 = arith.constant 6 : i32
    %c0_127 = arith.constant 0 : index
    %c0_128 = arith.constant 0 : index
    %235 = vector.load %arg8[%c0_127, %c0_128] : memref<8x128xf32, #tpu.memory_space<vmem>>, vector<8x128xf32>
    %c0_129 = arith.constant 0 : index
    %c0_130 = arith.constant 0 : index
    %236 = vector.load %arg9[%c0_129, %c0_130] : memref<8x128xf32, #tpu.memory_space<vmem>>, vector<8x128xf32>
    %237 = arith.index_cast %c6_i32 : i32 to index
    %c0_131 = arith.constant 0 : index
    %c0_132 = arith.constant 0 : index
    %238 = vector.load %arg7[%237, %c0_131, %c0_132] : memref<8x8x512xf32, #tpu.memory_space<vmem>>, vector<1x8x512xf32>
    %239 = vector.shape_cast %238 : vector<1x8x512xf32> to vector<8x512xf32>
    %240 = arith.truncf %235 : vector<8x128xf32> to vector<8x128xbf16>
    %cst_133 = arith.constant dense<0.000000e+00> : vector<8x512xf32>
    %241 = tpu.matmul %240, %12, %cst_133 {dimension_numbers = #tpu.dot_dimension_numbers<[1], [0], [0], [1], [0, 0, 1, 1], [], []>} : vector<8x128xbf16>, vector<128x512xbf16>, vector<8x512xf32> -> vector<8x512xf32>
    %242 = arith.addf %239, %241 : vector<8x512xf32>
    %243 = math.tanh %242 : vector<8x512xf32>
    %244 = vector.extract_strided_slice %243 {offsets = [0, 0], sizes = [8, 128], strides = [1, 1]} : vector<8x512xf32> to vector<8x128xf32>
    %cst_134 = arith.constant 5.000000e-01 : f32
    %245 = vector.broadcast %cst_134 : f32 to vector<8x128xf32>
    %246 = arith.mulf %244, %245 : vector<8x128xf32>
    %cst_135 = arith.constant 5.000000e-01 : f32
    %247 = vector.broadcast %cst_135 : f32 to vector<8x128xf32>
    %248 = arith.addf %246, %247 : vector<8x128xf32>
    %249 = vector.extract_strided_slice %243 {offsets = [0, 128], sizes = [8, 128], strides = [1, 1]} : vector<8x512xf32> to vector<8x128xf32>
    %cst_136 = arith.constant 5.000000e-01 : f32
    %250 = vector.broadcast %cst_136 : f32 to vector<8x128xf32>
    %251 = arith.mulf %249, %250 : vector<8x128xf32>
    %cst_137 = arith.constant 5.000000e-01 : f32
    %252 = vector.broadcast %cst_137 : f32 to vector<8x128xf32>
    %253 = arith.addf %251, %252 : vector<8x128xf32>
    %254 = vector.extract_strided_slice %243 {offsets = [0, 256], sizes = [8, 128], strides = [1, 1]} : vector<8x512xf32> to vector<8x128xf32>
    %255 = vector.extract_strided_slice %243 {offsets = [0, 384], sizes = [8, 128], strides = [1, 1]} : vector<8x512xf32> to vector<8x128xf32>
    %cst_138 = arith.constant 5.000000e-01 : f32
    %256 = vector.broadcast %cst_138 : f32 to vector<8x128xf32>
    %257 = arith.mulf %255, %256 : vector<8x128xf32>
    %cst_139 = arith.constant 5.000000e-01 : f32
    %258 = vector.broadcast %cst_139 : f32 to vector<8x128xf32>
    %259 = arith.addf %257, %258 : vector<8x128xf32>
    %260 = arith.mulf %253, %236 : vector<8x128xf32>
    %261 = arith.mulf %248, %254 : vector<8x128xf32>
    %262 = arith.addf %260, %261 : vector<8x128xf32>
    %263 = math.tanh %262 : vector<8x128xf32>
    %264 = arith.mulf %259, %263 : vector<8x128xf32>
    %c0_140 = arith.constant 0 : index
    %c0_141 = arith.constant 0 : index
    %265 = vector.load %arg8[%c0_140, %c0_141] : memref<8x128xf32, #tpu.memory_space<vmem>>, vector<8x128xf32>
    tpu.vector_store %arg8[%c0_140, %c0_141], %264 {strides = array<i32>} : memref<8x128xf32, #tpu.memory_space<vmem>>, vector<8x128xf32>,
    %c0_142 = arith.constant 0 : index
    %c0_143 = arith.constant 0 : index
    %266 = vector.load %arg9[%c0_142, %c0_143] : memref<8x128xf32, #tpu.memory_space<vmem>>, vector<8x128xf32>
    tpu.vector_store %arg9[%c0_142, %c0_143], %262 {strides = array<i32>} : memref<8x128xf32, #tpu.memory_space<vmem>>, vector<8x128xf32>,
    %267 = arith.truncf %264 : vector<8x128xf32> to vector<8x128xbf16>
    %268 = arith.index_cast %c6_i32 : i32 to index
    %c0_144 = arith.constant 0 : index
    %c0_145 = arith.constant 0 : index
    %269 = vector.load %arg6[%268, %c0_144, %c0_145] : memref<8x8x128xbf16, #tpu.memory_space<vmem>>, vector<1x8x128xbf16>
    %270 = vector.shape_cast %269 : vector<1x8x128xbf16> to vector<8x128xbf16>
    %271 = vector.shape_cast %267 : vector<8x128xbf16> to vector<1x8x128xbf16>
    tpu.vector_store %arg6[%268, %c0_144, %c0_145], %271 {strides = array<i32>} : memref<8x8x128xbf16, #tpu.memory_space<vmem>>, vector<1x8x128xbf16>,
    %c7_i32 = arith.constant 7 : i32
    %c0_146 = arith.constant 0 : index
    %c0_147 = arith.constant 0 : index
    %272 = vector.load %arg8[%c0_146, %c0_147] : memref<8x128xf32, #tpu.memory_space<vmem>>, vector<8x128xf32>
    %c0_148 = arith.constant 0 : index
    %c0_149 = arith.constant 0 : index
    %273 = vector.load %arg9[%c0_148, %c0_149] : memref<8x128xf32, #tpu.memory_space<vmem>>, vector<8x128xf32>
    %274 = arith.index_cast %c7_i32 : i32 to index
    %c0_150 = arith.constant 0 : index
    %c0_151 = arith.constant 0 : index
    %275 = vector.load %arg7[%274, %c0_150, %c0_151] : memref<8x8x512xf32, #tpu.memory_space<vmem>>, vector<1x8x512xf32>
    %276 = vector.shape_cast %275 : vector<1x8x512xf32> to vector<8x512xf32>
    %277 = arith.truncf %272 : vector<8x128xf32> to vector<8x128xbf16>
    %cst_152 = arith.constant dense<0.000000e+00> : vector<8x512xf32>
    %278 = tpu.matmul %277, %12, %cst_152 {dimension_numbers = #tpu.dot_dimension_numbers<[1], [0], [0], [1], [0, 0, 1, 1], [], []>} : vector<8x128xbf16>, vector<128x512xbf16>, vector<8x512xf32> -> vector<8x512xf32>
    %279 = arith.addf %276, %278 : vector<8x512xf32>
    %280 = math.tanh %279 : vector<8x512xf32>
    %281 = vector.extract_strided_slice %280 {offsets = [0, 0], sizes = [8, 128], strides = [1, 1]} : vector<8x512xf32> to vector<8x128xf32>
    %cst_153 = arith.constant 5.000000e-01 : f32
    %282 = vector.broadcast %cst_153 : f32 to vector<8x128xf32>
    %283 = arith.mulf %281, %282 : vector<8x128xf32>
    %cst_154 = arith.constant 5.000000e-01 : f32
    %284 = vector.broadcast %cst_154 : f32 to vector<8x128xf32>
    %285 = arith.addf %283, %284 : vector<8x128xf32>
    %286 = vector.extract_strided_slice %280 {offsets = [0, 128], sizes = [8, 128], strides = [1, 1]} : vector<8x512xf32> to vector<8x128xf32>
    %cst_155 = arith.constant 5.000000e-01 : f32
    %287 = vector.broadcast %cst_155 : f32 to vector<8x128xf32>
    %288 = arith.mulf %286, %287 : vector<8x128xf32>
    %cst_156 = arith.constant 5.000000e-01 : f32
    %289 = vector.broadcast %cst_156 : f32 to vector<8x128xf32>
    %290 = arith.addf %288, %289 : vector<8x128xf32>
    %291 = vector.extract_strided_slice %280 {offsets = [0, 256], sizes = [8, 128], strides = [1, 1]} : vector<8x512xf32> to vector<8x128xf32>
    %292 = vector.extract_strided_slice %280 {offsets = [0, 384], sizes = [8, 128], strides = [1, 1]} : vector<8x512xf32> to vector<8x128xf32>
    %cst_157 = arith.constant 5.000000e-01 : f32
    %293 = vector.broadcast %cst_157 : f32 to vector<8x128xf32>
    %294 = arith.mulf %292, %293 : vector<8x128xf32>
    %cst_158 = arith.constant 5.000000e-01 : f32
    %295 = vector.broadcast %cst_158 : f32 to vector<8x128xf32>
    %296 = arith.addf %294, %295 : vector<8x128xf32>
    %297 = arith.mulf %290, %273 : vector<8x128xf32>
    %298 = arith.mulf %285, %291 : vector<8x128xf32>
    %299 = arith.addf %297, %298 : vector<8x128xf32>
    %300 = math.tanh %299 : vector<8x128xf32>
    %301 = arith.mulf %296, %300 : vector<8x128xf32>
    %c0_159 = arith.constant 0 : index
    %c0_160 = arith.constant 0 : index
    %302 = vector.load %arg8[%c0_159, %c0_160] : memref<8x128xf32, #tpu.memory_space<vmem>>, vector<8x128xf32>
    tpu.vector_store %arg8[%c0_159, %c0_160], %301 {strides = array<i32>} : memref<8x128xf32, #tpu.memory_space<vmem>>, vector<8x128xf32>,
    %c0_161 = arith.constant 0 : index
    %c0_162 = arith.constant 0 : index
    %303 = vector.load %arg9[%c0_161, %c0_162] : memref<8x128xf32, #tpu.memory_space<vmem>>, vector<8x128xf32>
    tpu.vector_store %arg9[%c0_161, %c0_162], %299 {strides = array<i32>} : memref<8x128xf32, #tpu.memory_space<vmem>>, vector<8x128xf32>,
    %304 = arith.truncf %301 : vector<8x128xf32> to vector<8x128xbf16>
    %305 = arith.index_cast %c7_i32 : i32 to index
    %c0_163 = arith.constant 0 : index
    %c0_164 = arith.constant 0 : index
    %306 = vector.load %arg6[%305, %c0_163, %c0_164] : memref<8x8x128xbf16, #tpu.memory_space<vmem>>, vector<1x8x128xbf16>
    %307 = vector.shape_cast %306 : vector<1x8x128xbf16> to vector<8x128xbf16>
    %308 = vector.shape_cast %304 : vector<8x128xbf16> to vector<1x8x128xbf16>
    tpu.vector_store %arg6[%305, %c0_163, %c0_164], %308 {strides = array<i32>} : memref<8x8x128xbf16, #tpu.memory_space<vmem>>, vector<1x8x128xbf16>,
    %c8_i32 = arith.constant 8 : i32
    return
  }
  func.func @transform_0(%arg0: i32, %arg1: i32) -> (i32, i32, i32) {
    %c0_i32 = arith.constant 0 : i32
    %c0_i32_0 = arith.constant 0 : i32
    return %arg1, %arg0, %c0_i32 : i32, i32, i32
  }
  func.func @transform_1(%arg0: i32, %arg1: i32) -> (i32, i32) {
    %c0_i32 = arith.constant 0 : i32
    %c0_i32_0 = arith.constant 0 : i32
    %c0_i32_1 = arith.constant 0 : i32
    return %c0_i32, %c0_i32_0 : i32, i32
  }
  func.func @transform_2(%arg0: i32, %arg1: i32) -> (i32, i32) {
    %c0_i32 = arith.constant 0 : i32
    %c0_i32_0 = arith.constant 0 : i32
    %c0_i32_1 = arith.constant 0 : i32
    return %c0_i32, %c0_i32_0 : i32, i32
  }
  func.func @transform_3(%arg0: i32, %arg1: i32) -> (i32, i32) {
    %c0_i32 = arith.constant 0 : i32
    %c0_i32_0 = arith.constant 0 : i32
    %c0_i32_1 = arith.constant 0 : i32
    return %c0_i32, %c0_i32_0 : i32, i32
  }
  func.func @transform_4(%arg0: i32, %arg1: i32) -> (i32, i32, i32) {
    %c0_i32 = arith.constant 0 : i32
    %c0_i32_0 = arith.constant 0 : i32
    return %arg1, %arg0, %c0_i32 : i32, i32, i32
  }
}

</mosaic_0001>

<llo_original>
// kernel: lstm_model_forward.2
$region0: #{lstm_model_forward.2}
  #allocation0 [shape = 'u32[]', space=smem, size = 0x4, offset = 0x4, fixed_abs, tag = 'smem constant byte address 0x4 - core index']
  #allocation1 [shape = 'u32[72,128]{1,0:T(1,128)}', space=vmem, size = 0x9000, scoped, tag = 'internal scratch']
  #allocation2 [shape = 'f32[8,8,512]{2,1,0:T(8,128)}', space=vmem, size = 0x20000, scoped, tag = 'scratch operand']
  #allocation3 [shape = 'f32[8,128]{1,0:T(8,128)}', space=vmem, size = 0x1000, scoped, tag = 'scratch operand']
  #allocation4 [shape = 'f32[8,128]{1,0:T(8,128)}', space=vmem, size = 0x1000, scoped, tag = 'scratch operand']
  %s0 = inlined_call_operand.vmem [shape: bf16[8,8,128], index: 0, kind: input, shape index: {}]
  %s1 = inlined_call_operand.vmem [shape: bf16[128,512], index: 1, kind: input, shape index: {}]
  %s2 = inlined_call_operand.vmem [shape: bf16[128,512], index: 2, kind: input, shape index: {}]
  %s3 = inlined_call_operand.vmem [shape: f32[1,512], index: 3, kind: input, shape index: {}]
  %s4 = inlined_call_operand.vmem [shape: bf16[8,8,128], index: 4, kind: output, shape index: {}]
  %s5 = sld [smem:[#allocation0]]
  $region30: #{lstm_model_forward.2} parent=0
    _
  %s7 = ssub.s32 1, %s5
  %s8 = scalar_select 0, %s7, %s5
  // Predicated region
  $region2: #{lstm_model_forward.2} parent=0 // pred_check
    _
  $region3: #{lstm_model_forward.2} parent=0 // pred_check_branch
    %10 = sbr.rel (0) target = $region5
  $region4: #{lstm_model_forward.2} parent=0 // pred_region
    _
  $region5: #{lstm_model_forward.2} parent=0 // pred_fallthru
    _
  // Predicated region
  $region6: #{lstm_model_forward.2} parent=0 // pred_check
    _
  $region7: #{lstm_model_forward.2} parent=0 // pred_check_branch
    %12 = sbr.rel (0) target = $region9
  $region8: #{lstm_model_forward.2} parent=0 // pred_region
    _
  $region9: #{lstm_model_forward.2} parent=0 // pred_fallthru
    _
  // Predicated region
  $region10: #{lstm_model_forward.2} parent=0 // pred_check
    _
  $region11: #{lstm_model_forward.2} parent=0 // pred_check_branch
    %14 = sbr.rel (0) target = $region13
  $region12: #{lstm_model_forward.2} parent=0 // pred_region
    _
  $region13: #{lstm_model_forward.2} parent=0 // pred_fallthru
    _
  // Predicated region
  $region14: #{lstm_model_forward.2} parent=0 // pred_check
    _
  $region15: #{lstm_model_forward.2} parent=0 // pred_check_branch
    %16 = sbr.rel (0) target = $region17
  $region16: #{lstm_model_forward.2} parent=0 // pred_region
    _
  $region17: #{lstm_model_forward.2} parent=0 // pred_fallthru
    _
  %p17 = scmp.eq.s32.totalorder 0, 0
  // Predicated region
  $region18: #{lstm_model_forward.2} parent=0 // pred_check
    %p18 = pneg %p17
  $region19: #{lstm_model_forward.2} parent=0 // pred_check_branch
    %20 = sbr.rel (%p18) target = $region21
  $region20: #{lstm_model_forward.2} parent=0 // pred_region
    %21 = vst [vmem:[#allocation3] sm:$0xff] 0.0
    %22 = vst [vmem:[#allocation4] sm:$0xff] 0.0
  $region21: #{lstm_model_forward.2} parent=0 // pred_fallthru
    _
  %v23 = vld [vmem:[%s0] sm:$0xf]
  %v24 = vld [vmem:[%s0 + $0x4] sm:$0xf]
  %v25 = vld [vmem:[%s0 + $0x8] sm:$0xf]
  %v26 = vld [vmem:[%s0 + $0xc] sm:$0xf]
  %v27 = vld [vmem:[%s0 + $0x10] sm:$0xf]
  %v28 = vld [vmem:[%s0 + $0x14] sm:$0xf]
  %v29 = vld [vmem:[%s0 + $0x18] sm:$0xf]
  %v30 = vld [vmem:[%s0 + $0x1c] sm:$0xf]
  %v31 = vld [vmem:[%s1] sm:$0xff]
  %v32 = vld [vmem:[%s1 + $0x8] sm:$0xff]
  %v33 = vld [vmem:[%s1 + $0x10] sm:$0xff]
  %v34 = vld [vmem:[%s1 + $0x18] sm:$0xff]
  %v35 = vld [vmem:[%s1 + $0x20] sm:$0xff]
  %v36 = vld [vmem:[%s1 + $0x28] sm:$0xff]
  %v37 = vld [vmem:[%s1 + $0x30] sm:$0xff]
  %v38 = vld [vmem:[%s1 + $0x38] sm:$0xff]
  %v39 = vld [vmem:[%s1 + $0x40] sm:$0xff]
  %v40 = vld [vmem:[%s1 + $0x48] sm:$0xff]
  %v41 = vld [vmem:[%s1 + $0x50] sm:$0xff]
  %v42 = vld [vmem:[%s1 + $0x58] sm:$0xff]
  %v43 = vld [vmem:[%s1 + $0x60] sm:$0xff]
  %v44 = vld [vmem:[%s1 + $0x68] sm:$0xff]
  %v45 = vld [vmem:[%s1 + $0x70] sm:$0xff]
  %v46 = vld [vmem:[%s1 + $0x78] sm:$0xff]
  %v47 = vld [vmem:[%s1 + $0x80] sm:$0xff]
  %v48 = vld [vmem:[%s1 + $0x88] sm:$0xff]
  %v49 = vld [vmem:[%s1 + $0x90] sm:$0xff]
  %v50 = vld [vmem:[%s1 + $0x98] sm:$0xff]
  %v51 = vld [vmem:[%s1 + $0xa0] sm:$0xff]
  %v52 = vld [vmem:[%s1 + $0xa8] sm:$0xff]
  %v53 = vld [vmem:[%s1 + $0xb0] sm:$0xff]
  %v54 = vld [vmem:[%s1 + $0xb8] sm:$0xff]
  %v55 = vld [vmem:[%s1 + $0xc0] sm:$0xff]
  %v56 = vld [vmem:[%s1 + $0xc8] sm:$0xff]
  %v57 = vld [vmem:[%s1 + $0xd0] sm:$0xff]
  %v58 = vld [vmem:[%s1 + $0xd8] sm:$0xff]
  %v59 = vld [vmem:[%s1 + $0xe0] sm:$0xff]
  %v60 = vld [vmem:[%s1 + $0xe8] sm:$0xff]
  %v61 = vld [vmem:[%s1 + $0xf0] sm:$0xff]
  %v62 = vld [vmem:[%s1 + $0xf8] sm:$0xff]
  %v63 = vld [vmem:[%s3] sm:$0xf]
  %v65 = vperm.slane %v63, 0
  %v66 = vperm.slane %v63, 1
  %v67 = vperm.slane %v63, 2
  %v68 = vperm.slane %v63, 3
  %v81 = vunpack.c.l.b16 %v23
  %v82 = vunpack.c.l.b16 %v24
  %v83 = vunpack.c.l.b16 %v25
  %v84 = vunpack.c.l.b16 %v26
  %v85 = vunpack.c.l.b16 %v27
  %v86 = vunpack.c.l.b16 %v28
  %v87 = vunpack.c.l.b16 %v29
  %v88 = vunpack.c.l.b16 %v30
  %v89 = vpack.c.b16 %v82, %v81
  %v90 = vpack.c.b16 %v84, %v83
  %v91 = vpack.c.b16 %v86, %v85
  %v92 = vpack.c.b16 %v88, %v87
  %v129 = vunpack.c.l.b16 %v31
  %v130 = vunpack.c.h.b16 %v31
  %v131 = vunpack.c.l.b16 %v32
  %v132 = vunpack.c.h.b16 %v32
  %v133 = vunpack.c.l.b16 %v33
  %v134 = vunpack.c.h.b16 %v33
  %v135 = vunpack.c.l.b16 %v34
  %v136 = vunpack.c.h.b16 %v34
  %v137 = vunpack.c.l.b16 %v35
  %v138 = vunpack.c.h.b16 %v35
  %v139 = vunpack.c.l.b16 %v36
  %v140 = vunpack.c.h.b16 %v36
  %v141 = vunpack.c.l.b16 %v37
  %v142 = vunpack.c.h.b16 %v37
  %v143 = vunpack.c.l.b16 %v38
  %v144 = vunpack.c.h.b16 %v38
  %v145 = vunpack.c.l.b16 %v39
  %v146 = vunpack.c.h.b16 %v39
  %v147 = vunpack.c.l.b16 %v40
  %v148 = vunpack.c.h.b16 %v40
  %v149 = vunpack.c.l.b16 %v41
  %v150 = vunpack.c.h.b16 %v41
  %v151 = vunpack.c.l.b16 %v42
  %v152 = vunpack.c.h.b16 %v42
  %v153 = vunpack.c.l.b16 %v43
  %v154 = vunpack.c.h.b16 %v43
  %v155 = vunpack.c.l.b16 %v44
  %v156 = vunpack.c.h.b16 %v44
  %v157 = vunpack.c.l.b16 %v45
  %v158 = vunpack.c.h.b16 %v45
  %v159 = vunpack.c.l.b16 %v46
  %v160 = vunpack.c.h.b16 %v46
  %v161 = vunpack.c.l.b16 %v47
  %v162 = vunpack.c.h.b16 %v47
  %v163 = vunpack.c.l.b16 %v48
  %v164 = vunpack.c.h.b16 %v48
  %v165 = vunpack.c.l.b16 %v49
  %v166 = vunpack.c.h.b16 %v49
  %v167 = vunpack.c.l.b16 %v50
  %v168 = vunpack.c.h.b16 %v50
  %v169 = vunpack.c.l.b16 %v51
  %v170 = vunpack.c.h.b16 %v51
  %v171 = vunpack.c.l.b16 %v52
  %v172 = vunpack.c.h.b16 %v52
  %v173 = vunpack.c.l.b16 %v53
  %v174 = vunpack.c.h.b16 %v53
  %v175 = vunpack.c.l.b16 %v54
  %v176 = vunpack.c.h.b16 %v54
  %v177 = vunpack.c.l.b16 %v55
  %v178 = vunpack.c.h.b16 %v55
  %v179 = vunpack.c.l.b16 %v56
  %v180 = vunpack.c.h.b16 %v56
  %v181 = vunpack.c.l.b16 %v57
  %v182 = vunpack.c.h.b16 %v57
  %v183 = vunpack.c.l.b16 %v58
  %v184 = vunpack.c.h.b16 %v58
  %v185 = vunpack.c.l.b16 %v59
  %v186 = vunpack.c.h.b16 %v59
  %v187 = vunpack.c.l.b16 %v60
  %v188 = vunpack.c.h.b16 %v60
  %v189 = vunpack.c.l.b16 %v61
  %v190 = vunpack.c.h.b16 %v61
  %v191 = vunpack.c.l.b16 %v62
  %v192 = vunpack.c.h.b16 %v62
  %v193 = vpack.c.b16 %v133, %v129
  %v194 = vpack.c.b16 %v134, %v130
  %v195 = vpack.c.b16 %v135, %v131
  %v196 = vpack.c.b16 %v136, %v132
  %v197 = vpack.c.b16 %v141, %v137
  %v198 = vpack.c.b16 %v142, %v138
  %v199 = vpack.c.b16 %v143, %v139
  %v200 = vpack.c.b16 %v144, %v140
  %v201 = vpack.c.b16 %v149, %v145
  %v202 = vpack.c.b16 %v150, %v146
  %v203 = vpack.c.b16 %v151, %v147
  %v204 = vpack.c.b16 %v152, %v148
  %v205 = vpack.c.b16 %v157, %v153
  %v206 = vpack.c.b16 %v158, %v154
  %v207 = vpack.c.b16 %v159, %v155
  %v208 = vpack.c.b16 %v160, %v156
  %v209 = vpack.c.b16 %v165, %v161
  %v210 = vpack.c.b16 %v166, %v162
  %v211 = vpack.c.b16 %v167, %v163
  %v212 = vpack.c.b16 %v168, %v164
  %v213 = vpack.c.b16 %v173, %v169
  %v214 = vpack.c.b16 %v174, %v170
  %v215 = vpack.c.b16 %v175, %v171
  %v216 = vpack.c.b16 %v176, %v172
  %v217 = vpack.c.b16 %v181, %v177
  %v218 = vpack.c.b16 %v182, %v178
  %v219 = vpack.c.b16 %v183, %v179
  %v220 = vpack.c.b16 %v184, %v180
  %v221 = vpack.c.b16 %v189, %v185
  %v222 = vpack.c.b16 %v190, %v186
  %v223 = vpack.c.b16 %v191, %v187
  %v224 = vpack.c.b16 %v192, %v188
  %257 = vmatpush.bf16.msra.mxu0 %v221
  %258 = vmatpush.bf16.msra.mxu0 %v217
  %259 = vmatpush.bf16.msra.mxu0 %v213
  %260 = vmatpush.bf16.msra.mxu0 %v209
  %261 = vmatpush.bf16.msra.mxu0 %v205
  %262 = vmatpush.bf16.msra.mxu0 %v201
  %263 = vmatpush.bf16.msra.mxu0 %v197
  %264 = vmatpush.bf16.msra.mxu0 %v193
  %265 = vmatmul.bf16.gmra.mxu0 %v89
  %v266 = vpop.f32.mrf.mxu0
  %v267 = vadd.f32 %v65, %v266
  %v268 = vpop.f32.mrf.mxu0
  %v269 = vadd.f32 %v65, %v268
  %270 = vmatmul.bf16.gmra.mxu0 %v90
  %v271 = vpop.f32.mrf.mxu0
  %v272 = vadd.f32 %v65, %v271
  %v273 = vpop.f32.mrf.mxu0
  %v274 = vadd.f32 %v65, %v273
  %275 = vmatmul.bf16.gmra.mxu0 %v91
  %v276 = vpop.f32.mrf.mxu0
  %v277 = vadd.f32 %v65, %v276
  %v278 = vpop.f32.mrf.mxu0
  %v279 = vadd.f32 %v65, %v278
  %280 = vmatmul.bf16.gmra.mxu0 %v92
  %v281 = vpop.f32.mrf.mxu0
  %v282 = vadd.f32 %v65, %v281
  %v283 = vpop.f32.mrf.mxu0
  %v284 = vadd.f32 %v65, %v283
  %285 = vdwg.mxu0
  %286 = vmatpush.bf16.msra.mxu0 %v222
  %287 = vmatpush.bf16.msra.mxu0 %v218
  %288 = vmatpush.bf16.msra.mxu0 %v214
  %289 = vmatpush.bf16.msra.mxu0 %v210
  %290 = vmatpush.bf16.msra.mxu0 %v206
  %291 = vmatpush.bf16.msra.mxu0 %v202
  %292 = vmatpush.bf16.msra.mxu0 %v198
  %293 = vmatpush.bf16.msra.mxu0 %v194
  %294 = vmatmul.bf16.gmra.mxu0 %v89
  %v295 = vpop.f32.mrf.mxu0
  %v296 = vadd.f32 %v66, %v295
  %v297 = vpop.f32.mrf.mxu0
  %v298 = vadd.f32 %v66, %v297
  %299 = vmatmul.bf16.gmra.mxu0 %v90
  %v300 = vpop.f32.mrf.mxu0
  %v301 = vadd.f32 %v66, %v300
  %v302 = vpop.f32.mrf.mxu0
  %v303 = vadd.f32 %v66, %v302
  %304 = vmatmul.bf16.gmra.mxu0 %v91
  %v305 = vpop.f32.mrf.mxu0
  %v306 = vadd.f32 %v66, %v305
  %v307 = vpop.f32.mrf.mxu0
  %v308 = vadd.f32 %v66, %v307
  %309 = vmatmul.bf16.gmra.mxu0 %v92
  %v310 = vpop.f32.mrf.mxu0
  %v311 = vadd.f32 %v66, %v310
  %v312 = vpop.f32.mrf.mxu0
  %v313 = vadd.f32 %v66, %v312
  %314 = vdwg.mxu0
  %315 = vmatpush.bf16.msra.mxu0 %v223
  %316 = vmatpush.bf16.msra.mxu0 %v219
  %317 = vmatpush.bf16.msra.mxu0 %v215
  %318 = vmatpush.bf16.msra.mxu0 %v211
  %319 = vmatpush.bf16.msra.mxu0 %v207
  %320 = vmatpush.bf16.msra.mxu0 %v203
  %321 = vmatpush.bf16.msra.mxu0 %v199
  %322 = vmatpush.bf16.msra.mxu0 %v195
  %323 = vmatmul.bf16.gmra.mxu0 %v89
  %v324 = vpop.f32.mrf.mxu0
  %v325 = vadd.f32 %v67, %v324
  %v326 = vpop.f32.mrf.mxu0
  %v327 = vadd.f32 %v67, %v326
  %328 = vmatmul.bf16.gmra.mxu0 %v90
  %v329 = vpop.f32.mrf.mxu0
  %v330 = vadd.f32 %v67, %v329
  %v331 = vpop.f32.mrf.mxu0
  %v332 = vadd.f32 %v67, %v331
  %333 = vmatmul.bf16.gmra.mxu0 %v91
  %v334 = vpop.f32.mrf.mxu0
  %v335 = vadd.f32 %v67, %v334
  %v336 = vpop.f32.mrf.mxu0
  %v337 = vadd.f32 %v67, %v336
  %338 = vmatmul.bf16.gmra.mxu0 %v92
  %v339 = vpop.f32.mrf.mxu0
  %v340 = vadd.f32 %v67, %v339
  %v341 = vpop.f32.mrf.mxu0
  %v342 = vadd.f32 %v67, %v341
  %343 = vdwg.mxu0
  %344 = vmatpush.bf16.msra.mxu0 %v224
  %345 = vmatpush.bf16.msra.mxu0 %v220
  %346 = vmatpush.bf16.msra.mxu0 %v216
  %347 = vmatpush.bf16.msra.mxu0 %v212
  %348 = vmatpush.bf16.msra.mxu0 %v208
  %349 = vmatpush.bf16.msra.mxu0 %v204
  %350 = vmatpush.bf16.msra.mxu0 %v200
  %351 = vmatpush.bf16.msra.mxu0 %v196
  %352 = vmatmul.bf16.gmra.mxu0 %v89
  %v353 = vpop.f32.mrf.mxu0
  %v354 = vadd.f32 %v68, %v353
  %v355 = vpop.f32.mrf.mxu0
  %v356 = vadd.f32 %v68, %v355
  %357 = vmatmul.bf16.gmra.mxu0 %v90
  %v358 = vpop.f32.mrf.mxu0
  %v359 = vadd.f32 %v68, %v358
  %v360 = vpop.f32.mrf.mxu0
  %v361 = vadd.f32 %v68, %v360
  %362 = vmatmul.bf16.gmra.mxu0 %v91
  %v363 = vpop.f32.mrf.mxu0
  %v364 = vadd.f32 %v68, %v363
  %v365 = vpop.f32.mrf.mxu0
  %v366 = vadd.f32 %v68, %v365
  %367 = vmatmul.bf16.gmra.mxu0 %v92
  %v368 = vpop.f32.mrf.mxu0
  %v369 = vadd.f32 %v68, %v368
  %v370 = vpop.f32.mrf.mxu0
  %v371 = vadd.f32 %v68, %v370
  %372 = vdwg.mxu0
  %373 = vst [vmem:[#allocation2] sm:$0xff] %v267
  %374 = vst [vmem:[#allocation2 + $0x8] sm:$0xff] %v296
  %375 = vst [vmem:[#allocation2 + $0x10] sm:$0xff] %v325
  %376 = vst [vmem:[#allocation2 + $0x18] sm:$0xff] %v354
  %377 = vst [vmem:[#allocation2 + $0x20] sm:$0xff] %v269
  %378 = vst [vmem:[#allocation2 + $0x28] sm:$0xff] %v298
  %379 = vst [vmem:[#allocation2 + $0x30] sm:$0xff] %v327
  %380 = vst [vmem:[#allocation2 + $0x38] sm:$0xff] %v356
  %381 = vst [vmem:[#allocation2 + $0x40] sm:$0xff] %v272
  %382 = vst [vmem:[#allocation2 + $0x48] sm:$0xff] %v301
  %383 = vst [vmem:[#allocation2 + $0x50] sm:$0xff] %v330
  %384 = vst [vmem:[#allocation2 + $0x58] sm:$0xff] %v359
  %385 = vst [vmem:[#allocation2 + $0x60] sm:$0xff] %v274
  %386 = vst [vmem:[#allocation2 + $0x68] sm:$0xff] %v303
  %387 = vst [vmem:[#allocation2 + $0x70] sm:$0xff] %v332
  %388 = vst [vmem:[#allocation2 + $0x78] sm:$0xff] %v361
  %389 = vst [vmem:[#allocation2 + $0x80] sm:$0xff] %v277
  %390 = vst [vmem:[#allocation2 + $0x88] sm:$0xff] %v306
  %391 = vst [vmem:[#allocation2 + $0x90] sm:$0xff] %v335
  %392 = vst [vmem:[#allocation2 + $0x98] sm:$0xff] %v364
  %393 = vst [vmem:[#allocation2 + $0xa0] sm:$0xff] %v279
  %394 = vst [vmem:[#allocation2 + $0xa8] sm:$0xff] %v308
  %395 = vst [vmem:[#allocation2 + $0xb0] sm:$0xff] %v337
  %396 = vst [vmem:[#allocation2 + $0xb8] sm:$0xff] %v366
  %397 = vst [vmem:[#allocation2 + $0xc0] sm:$0xff] %v282
  %398 = vst [vmem:[#allocation2 + $0xc8] sm:$0xff] %v311
  %399 = vst [vmem:[#allocation2 + $0xd0] sm:$0xff] %v340
  %400 = vst [vmem:[#allocation2 + $0xd8] sm:$0xff] %v369
  %401 = vst [vmem:[#allocation2 + $0xe0] sm:$0xff] %v284
  %402 = vst [vmem:[#allocation2 + $0xe8] sm:$0xff] %v313
  %403 = vst [vmem:[#allocation2 + $0xf0] sm:$0xff] %v342
  %404 = vst [vmem:[#allocation2 + $0xf8] sm:$0xff] %v371
  %v405 = vld [vmem:[%s2] sm:$0xff]
  %v406 = vld [vmem:[%s2 + $0x8] sm:$0xff]
  %v407 = vld [vmem:[%s2 + $0x10] sm:$0xff]
  %v408 = vld [vmem:[%s2 + $0x18] sm:$0xff]
  %v409 = vld [vmem:[%s2 + $0x20] sm:$0xff]
  %v410 = vld [vmem:[%s2 + $0x28] sm:$0xff]
  %v411 = vld [vmem:[%s2 + $0x30] sm:$0xff]
  %v412 = vld [vmem:[%s2 + $0x38] sm:$0xff]
  %v413 = vld [vmem:[%s2 + $0x40] sm:$0xff]
  %v414 = vld [vmem:[%s2 + $0x48] sm:$0xff]
  %v415 = vld [vmem:[%s2 + $0x50] sm:$0xff]
  %v416 = vld [vmem:[%s2 + $0x58] sm:$0xff]
  %v417 = vld [vmem:[%s2 + $0x60] sm:$0xff]
  %v418 = vld [vmem:[%s2 + $0x68] sm:$0xff]
  %v419 = vld [vmem:[%s2 + $0x70] sm:$0xff]
  %v420 = vld [vmem:[%s2 + $0x78] sm:$0xff]
  %v421 = vld [vmem:[%s2 + $0x80] sm:$0xff]
  %v422 = vld [vmem:[%s2 + $0x88] sm:$0xff]
  %v423 = vld [vmem:[%s2 + $0x90] sm:$0xff]
  %v424 = vld [vmem:[%s2 + $0x98] sm:$0xff]
  %v425 = vld [vmem:[%s2 + $0xa0] sm:$0xff]
  %v426 = vld [vmem:[%s2 + $0xa8] sm:$0xff]
  %v427 = vld [vmem:[%s2 + $0xb0] sm:$0xff]
  %v428 = vld [vmem:[%s2 + $0xb8] sm:$0xff]
  %v429 = vld [vmem:[%s2 + $0xc0] sm:$0xff]
  %v430 = vld [vmem:[%s2 + $0xc8] sm:$0xff]
  %v431 = vld [vmem:[%s2 + $0xd0] sm:$0xff]
  %v432 = vld [vmem:[%s2 + $0xd8] sm:$0xff]
  %v433 = vld [vmem:[%s2 + $0xe0] sm:$0xff]
  %v434 = vld [vmem:[%s2 + $0xe8] sm:$0xff]
  %v435 = vld [vmem:[%s2 + $0xf0] sm:$0xff]
  %v436 = vld [vmem:[%s2 + $0xf8] sm:$0xff]
  %v437 = vld [vmem:[#allocation3] sm:$0xff]
  %v438 = vld [vmem:[#allocation4] sm:$0xff]
  %v439 = vld [vmem:[#allocation2] sm:$0xff]
  %v440 = vld [vmem:[#allocation2 + $0x8] sm:$0xff]
  %v441 = vld [vmem:[#allocation2 + $0x10] sm:$0xff]
  %v442 = vld [vmem:[#allocation2 + $0x18] sm:$0xff]
  %v443 = vpack.c.bf16 %v437, %v437
  %v476 = vunpack.c.l.b16 %v405
  %v477 = vunpack.c.h.b16 %v405
  %v478 = vunpack.c.l.b16 %v406
  %v479 = vunpack.c.h.b16 %v406
  %v480 = vunpack.c.l.b16 %v407
  %v481 = vunpack.c.h.b16 %v407
  %v482 = vunpack.c.l.b16 %v408
  %v483 = vunpack.c.h.b16 %v408
  %v484 = vunpack.c.l.b16 %v409
  %v485 = vunpack.c.h.b16 %v409
  %v486 = vunpack.c.l.b16 %v410
  %v487 = vunpack.c.h.b16 %v410
  %v488 = vunpack.c.l.b16 %v411
  %v489 = vunpack.c.h.b16 %v411
  %v490 = vunpack.c.l.b16 %v412
  %v491 = vunpack.c.h.b16 %v412
  %v492 = vunpack.c.l.b16 %v413
  %v493 = vunpack.c.h.b16 %v413
  %v494 = vunpack.c.l.b16 %v414
  %v495 = vunpack.c.h.b16 %v414
  %v496 = vunpack.c.l.b16 %v415
  %v497 = vunpack.c.h.b16 %v415
  %v498 = vunpack.c.l.b16 %v416
  %v499 = vunpack.c.h.b16 %v416
  %v500 = vunpack.c.l.b16 %v417
  %v501 = vunpack.c.h.b16 %v417
  %v502 = vunpack.c.l.b16 %v418
  %v503 = vunpack.c.h.b16 %v418
  %v504 = vunpack.c.l.b16 %v419
  %v505 = vunpack.c.h.b16 %v419
  %v506 = vunpack.c.l.b16 %v420
  %v507 = vunpack.c.h.b16 %v420
  %v508 = vunpack.c.l.b16 %v421
  %v509 = vunpack.c.h.b16 %v421
  %v510 = vunpack.c.l.b16 %v422
  %v511 = vunpack.c.h.b16 %v422
  %v512 = vunpack.c.l.b16 %v423
  %v513 = vunpack.c.h.b16 %v423
  %v514 = vunpack.c.l.b16 %v424
  %v515 = vunpack.c.h.b16 %v424
  %v516 = vunpack.c.l.b16 %v425
  %v517 = vunpack.c.h.b16 %v425
  %v518 = vunpack.c.l.b16 %v426
  %v519 = vunpack.c.h.b16 %v426
  %v520 = vunpack.c.l.b16 %v427
  %v521 = vunpack.c.h.b16 %v427
  %v522 = vunpack.c.l.b16 %v428
  %v523 = vunpack.c.h.b16 %v428
  %v524 = vunpack.c.l.b16 %v429
  %v525 = vunpack.c.h.b16 %v429
  %v526 = vunpack.c.l.b16 %v430
  %v527 = vunpack.c.h.b16 %v430
  %v528 = vunpack.c.l.b16 %v431
  %v529 = vunpack.c.h.b16 %v431
  %v530 = vunpack.c.l.b16 %v432
  %v531 = vunpack.c.h.b16 %v432
  %v532 = vunpack.c.l.b16 %v433
  %v533 = vunpack.c.h.b16 %v433
  %v534 = vunpack.c.l.b16 %v434
  %v535 = vunpack.c.h.b16 %v434
  %v536 = vunpack.c.l.b16 %v435
  %v537 = vunpack.c.h.b16 %v435
  %v538 = vunpack.c.l.b16 %v436
  %v539 = vunpack.c.h.b16 %v436
  %v540 = vpack.c.b16 %v480, %v476
  %v541 = vpack.c.b16 %v481, %v477
  %v542 = vpack.c.b16 %v482, %v478
  %v543 = vpack.c.b16 %v483, %v479
  %v544 = vpack.c.b16 %v488, %v484
  %v545 = vpack.c.b16 %v489, %v485
  %v546 = vpack.c.b16 %v490, %v486
  %v547 = vpack.c.b16 %v491, %v487
  %v548 = vpack.c.b16 %v496, %v492
  %v549 = vpack.c.b16 %v497, %v493
  %v550 = vpack.c.b16 %v498, %v494
  %v551 = vpack.c.b16 %v499, %v495
  %v552 = vpack.c.b16 %v504, %v500
  %v553 = vpack.c.b16 %v505, %v501
  %v554 = vpack.c.b16 %v506, %v502
  %v555 = vpack.c.b16 %v507, %v503
  %v556 = vpack.c.b16 %v512, %v508
  %v557 = vpack.c.b16 %v513, %v509
  %v558 = vpack.c.b16 %v514, %v510
  %v559 = vpack.c.b16 %v515, %v511
  %v560 = vpack.c.b16 %v520, %v516
  %v561 = vpack.c.b16 %v521, %v517
  %v562 = vpack.c.b16 %v522, %v518
  %v563 = vpack.c.b16 %v523, %v519
  %v564 = vpack.c.b16 %v528, %v524
  %v565 = vpack.c.b16 %v529, %v525
  %v566 = vpack.c.b16 %v530, %v526
  %v567 = vpack.c.b16 %v531, %v527
  %v568 = vpack.c.b16 %v536, %v532
  %v569 = vpack.c.b16 %v537, %v533
  %v570 = vpack.c.b16 %v538, %v534
  %v571 = vpack.c.b16 %v539, %v535
  %604 = vmatpush.bf16.msra.mxu0 %v568
  %605 = vmatpush.bf16.msra.mxu0 %v564
  %606 = vmatpush.bf16.msra.mxu0 %v560
  %607 = vmatpush.bf16.msra.mxu0 %v556
  %608 = vmatpush.bf16.msra.mxu0 %v552
  %609 = vmatpush.bf16.msra.mxu0 %v548
  %610 = vmatpush.bf16.msra.mxu0 %v544
  %611 = vmatpush.bf16.msra.mxu0 %v540
  %612 = vmatmul.bf16.gmra.mxu0 %v443
  %v613 = vpop.f32.mrf.mxu0
  %v614 = vadd.f32 0.0, %v613
  %v615 = vpop.f32.mrf.mxu0
  %616 = vdwg.mxu0
  %617 = vmatpush.bf16.msra.mxu0 %v569
  %618 = vmatpush.bf16.msra.mxu0 %v565
  %619 = vmatpush.bf16.msra.mxu0 %v561
  %620 = vmatpush.bf16.msra.mxu0 %v557
  %621 = vmatpush.bf16.msra.mxu0 %v553
  %622 = vmatpush.bf16.msra.mxu0 %v549
  %623 = vmatpush.bf16.msra.mxu0 %v545
  %624 = vmatpush.bf16.msra.mxu0 %v541
  %625 = vmatmul.bf16.gmra.mxu0 %v443
  %v626 = vpop.f32.mrf.mxu0
  %v627 = vadd.f32 0.0, %v626
  %v628 = vpop.f32.mrf.mxu0
  %629 = vdwg.mxu0
  %630 = vmatpush.bf16.msra.mxu0 %v570
  %631 = vmatpush.bf16.msra.mxu0 %v566
  %632 = vmatpush.bf16.msra.mxu0 %v562
  %633 = vmatpush.bf16.msra.mxu0 %v558
  %634 = vmatpush.bf16.msra.mxu0 %v554
  %635 = vmatpush.bf16.msra.mxu0 %v550
  %636 = vmatpush.bf16.msra.mxu0 %v546
  %637 = vmatpush.bf16.msra.mxu0 %v542
  %638 = vmatmul.bf16.gmra.mxu0 %v443
  %v639 = vpop.f32.mrf.mxu0
  %v640 = vadd.f32 0.0, %v639
  %v641 = vpop.f32.mrf.mxu0
  %642 = vdwg.mxu0
  %643 = vmatpush.bf16.msra.mxu0 %v571
  %644 = vmatpush.bf16.msra.mxu0 %v567
  %645 = vmatpush.bf16.msra.mxu0 %v563
  %646 = vmatpush.bf16.msra.mxu0 %v559
  %647 = vmatpush.bf16.msra.mxu0 %v555
  %648 = vmatpush.bf16.msra.mxu0 %v551
  %649 = vmatpush.bf16.msra.mxu0 %v547
  %650 = vmatpush.bf16.msra.mxu0 %v543
  %651 = vmatmul.bf16.gmra.mxu0 %v443
  %v652 = vpop.f32.mrf.mxu0
  %v653 = vadd.f32 0.0, %v652
  %v654 = vpop.f32.mrf.mxu0
  %655 = vdwg.mxu0
  %v656 = vadd.f32 %v439, %v614
  %v657 = vadd.f32 %v440, %v627
  %v658 = vadd.f32 %v441, %v640
  %v659 = vadd.f32 %v442, %v653
  %v660 = vtanh.pop %v656
  %v661 = vtanh.pop %v657
  %v662 = vtanh.pop %v658
  %v663 = vtanh.pop %v659
  %v664 = vmul.f32 %v660, 0.5
  %v665 = vadd.f32 %v664, 0.5
  %v666 = vmul.f32 %v661, 0.5
  %v667 = vadd.f32 %v666, 0.5
  %v668 = vmul.f32 %v663, 0.5
  %v669 = vadd.f32 %v668, 0.5
  %v670 = vmul.f32 %v667, %v438
  %v671 = vmul.f32 %v665, %v662
  %v672 = vadd.f32 %v670, %v671
  %v673 = vtanh.pop %v672
  %v674 = vmul.f32 %v669, %v673
  %675 = vst [vmem:[#allocation3] sm:$0xff] %v674
  %676 = vst [vmem:[#allocation4] sm:$0xff] %v672
  %v677 = vpack.c.bf16 %v674, %v674
  %678 = vst [vmem:[%s4] sm:$0xf] %v677
  %v679 = vld [vmem:[#allocation3] sm:$0xff]
  %v680 = vld [vmem:[#allocation4] sm:$0xff]
  %s681 = scalar_lea.vmem [#allocation2], 32
  %v682 = vld [vmem:[%s681] sm:$0xff]
  %v683 = vld [vmem:[%s681 + $0x8] sm:$0xff]
  %v684 = vld [vmem:[%s681 + $0x10] sm:$0xff]
  %v685 = vld [vmem:[%s681 + $0x18] sm:$0xff]
  %v686 = vpack.c.bf16 %v679, %v679
  %687 = vmatpush.bf16.msra.mxu0 %v568
  %688 = vmatpush.bf16.msra.mxu0 %v564
  %689 = vmatpush.bf16.msra.mxu0 %v560
  %690 = vmatpush.bf16.msra.mxu0 %v556
  %691 = vmatpush.bf16.msra.mxu0 %v552
  %692 = vmatpush.bf16.msra.mxu0 %v548
  %693 = vmatpush.bf16.msra.mxu0 %v544
  %694 = vmatpush.bf16.msra.mxu0 %v540
  %695 = vmatmul.bf16.gmra.mxu0 %v686
  %v696 = vpop.f32.mrf.mxu0
  %v697 = vadd.f32 0.0, %v696
  %v698 = vpop.f32.mrf.mxu0
  %699 = vdwg.mxu0
  %700 = vmatpush.bf16.msra.mxu0 %v569
  %701 = vmatpush.bf16.msra.mxu0 %v565
  %702 = vmatpush.bf16.msra.mxu0 %v561
  %703 = vmatpush.bf16.msra.mxu0 %v557
  %704 = vmatpush.bf16.msra.mxu0 %v553
  %705 = vmatpush.bf16.msra.mxu0 %v549
  %706 = vmatpush.bf16.msra.mxu0 %v545
  %707 = vmatpush.bf16.msra.mxu0 %v541
  %708 = vmatmul.bf16.gmra.mxu0 %v686
  %v709 = vpop.f32.mrf.mxu0
  %v710 = vadd.f32 0.0, %v709
  %v711 = vpop.f32.mrf.mxu0
  %712 = vdwg.mxu0
  %713 = vmatpush.bf16.msra.mxu0 %v570
  %714 = vmatpush.bf16.msra.mxu0 %v566
  %715 = vmatpush.bf16.msra.mxu0 %v562
  %716 = vmatpush.bf16.msra.mxu0 %v558
  %717 = vmatpush.bf16.msra.mxu0 %v554
  %718 = vmatpush.bf16.msra.mxu0 %v550
  %719 = vmatpush.bf16.msra.mxu0 %v546
  %720 = vmatpush.bf16.msra.mxu0 %v542
  %721 = vmatmul.bf16.gmra.mxu0 %v686
  %v722 = vpop.f32.mrf.mxu0
  %v723 = vadd.f32 0.0, %v722
  %v724 = vpop.f32.mrf.mxu0
  %725 = vdwg.mxu0
  %726 = vmatpush.bf16.msra.mxu0 %v571
  %727 = vmatpush.bf16.msra.mxu0 %v567
  %728 = vmatpush.bf16.msra.mxu0 %v563
  %729 = vmatpush.bf16.msra.mxu0 %v559
  %730 = vmatpush.bf16.msra.mxu0 %v555
  %731 = vmatpush.bf16.msra.mxu0 %v551
  %732 = vmatpush.bf16.msra.mxu0 %v547
  %733 = vmatpush.bf16.msra.mxu0 %v543
  %734 = vmatmul.bf16.gmra.mxu0 %v686
  %v735 = vpop.f32.mrf.mxu0
  %v736 = vadd.f32 0.0, %v735
  %v737 = vpop.f32.mrf.mxu0
  %738 = vdwg.mxu0
  %v739 = vadd.f32 %v682, %v697
  %v740 = vadd.f32 %v683, %v710
  %v741 = vadd.f32 %v684, %v723
  %v742 = vadd.f32 %v685, %v736
  %v743 = vtanh.pop %v739
  %v744 = vtanh.pop %v740
  %v745 = vtanh.pop %v741
  %v746 = vtanh.pop %v742
  %v747 = vmul.f32 %v743, 0.5
  %v748 = vadd.f32 %v747, 0.5
  %v749 = vmul.f32 %v744, 0.5
  %v750 = vadd.f32 %v749, 0.5
  %v751 = vmul.f32 %v746, 0.5
  %v752 = vadd.f32 %v751, 0.5
  %v753 = vmul.f32 %v750, %v680
  %v754 = vmul.f32 %v748, %v745
  %v755 = vadd.f32 %v753, %v754
  %v756 = vtanh.pop %v755
  %v757 = vmul.f32 %v752, %v756
  %758 = vst [vmem:[#allocation3] sm:$0xff] %v757
  %759 = vst [vmem:[#allocation4] sm:$0xff] %v755
  %v760 = vpack.c.bf16 %v757, %v757
  %s761 = scalar_lea.vmem %s4, 4
  %762 = vst [vmem:[%s761] sm:$0xf] %v760
  %v763 = vld [vmem:[#allocation3] sm:$0xff]
  %v764 = vld [vmem:[#allocation4] sm:$0xff]
  %s765 = scalar_lea.vmem [#allocation2], 64
  %v766 = vld [vmem:[%s765] sm:$0xff]
  %v767 = vld [vmem:[%s765 + $0x8] sm:$0xff]
  %v768 = vld [vmem:[%s765 + $0x10] sm:$0xff]
  %v769 = vld [vmem:[%s765 + $0x18] sm:$0xff]
  %v770 = vpack.c.bf16 %v763, %v763
  %771 = vmatpush.bf16.msra.mxu0 %v568
  %772 = vmatpush.bf16.msra.mxu0 %v564
  %773 = vmatpush.bf16.msra.mxu0 %v560
  %774 = vmatpush.bf16.msra.mxu0 %v556
  %775 = vmatpush.bf16.msra.mxu0 %v552
  %776 = vmatpush.bf16.msra.mxu0 %v548
  %777 = vmatpush.bf16.msra.mxu0 %v544
  %778 = vmatpush.bf16.msra.mxu0 %v540
  %779 = vmatmul.bf16.gmra.mxu0 %v770
  %v780 = vpop.f32.mrf.mxu0
  %v781 = vadd.f32 0.0, %v780
  %v782 = vpop.f32.mrf.mxu0
  %783 = vdwg.mxu0
  %784 = vmatpush.bf16.msra.mxu0 %v569
  %785 = vmatpush.bf16.msra.mxu0 %v565
  %786 = vmatpush.bf16.msra.mxu0 %v561
  %787 = vmatpush.bf16.msra.mxu0 %v557
  %788 = vmatpush.bf16.msra.mxu0 %v553
  %789 = vmatpush.bf16.msra.mxu0 %v549
  %790 = vmatpush.bf16.msra.mxu0 %v545
  %791 = vmatpush.bf16.msra.mxu0 %v541
  %792 = vmatmul.bf16.gmra.mxu0 %v770
  %v793 = vpop.f32.mrf.mxu0
  %v794 = vadd.f32 0.0, %v793
  %v795 = vpop.f32.mrf.mxu0
  %796 = vdwg.mxu0
  %797 = vmatpush.bf16.msra.mxu0 %v570
  %798 = vmatpush.bf16.msra.mxu0 %v566
  %799 = vmatpush.bf16.msra.mxu0 %v562
  %800 = vmatpush.bf16.msra.mxu0 %v558
  %801 = vmatpush.bf16.msra.mxu0 %v554
  %802 = vmatpush.bf16.msra.mxu0 %v550
  %803 = vmatpush.bf16.msra.mxu0 %v546
  %804 = vmatpush.bf16.msra.mxu0 %v542
  %805 = vmatmul.bf16.gmra.mxu0 %v770
  %v806 = vpop.f32.mrf.mxu0
  %v807 = vadd.f32 0.0, %v806
  %v808 = vpop.f32.mrf.mxu0
  %809 = vdwg.mxu0
  %810 = vmatpush.bf16.msra.mxu0 %v571
  %811 = vmatpush.bf16.msra.mxu0 %v567
  %812 = vmatpush.bf16.msra.mxu0 %v563
  %813 = vmatpush.bf16.msra.mxu0 %v559
  %814 = vmatpush.bf16.msra.mxu0 %v555
  %815 = vmatpush.bf16.msra.mxu0 %v551
  %816 = vmatpush.bf16.msra.mxu0 %v547
  %817 = vmatpush.bf16.msra.mxu0 %v543
  %818 = vmatmul.bf16.gmra.mxu0 %v770
  %v819 = vpop.f32.mrf.mxu0
  %v820 = vadd.f32 0.0, %v819
  %v821 = vpop.f32.mrf.mxu0
  %822 = vdwg.mxu0
  %v823 = vadd.f32 %v766, %v781
  %v824 = vadd.f32 %v767, %v794
  %v825 = vadd.f32 %v768, %v807
  %v826 = vadd.f32 %v769, %v820
  %v827 = vtanh.pop %v823
  %v828 = vtanh.pop %v824
  %v829 = vtanh.pop %v825
  %v830 = vtanh.pop %v826
  %v831 = vmul.f32 %v827, 0.5
  %v832 = vadd.f32 %v831, 0.5
  %v833 = vmul.f32 %v828, 0.5
  %v834 = vadd.f32 %v833, 0.5
  %v835 = vmul.f32 %v830, 0.5
  %v836 = vadd.f32 %v835, 0.5
  %v837 = vmul.f32 %v834, %v764
  %v838 = vmul.f32 %v832, %v829
  %v839 = vadd.f32 %v837, %v838
  %v840 = vtanh.pop %v839
  %v841 = vmul.f32 %v836, %v840
  %842 = vst [vmem:[#allocation3] sm:$0xff] %v841
  %843 = vst [vmem:[#allocation4] sm:$0xff] %v839
  %v844 = vpack.c.bf16 %v841, %v841
  %s845 = scalar_lea.vmem %s4, 8
  %846 = vst [vmem:[%s845] sm:$0xf] %v844
  %v847 = vld [vmem:[#allocation3] sm:$0xff]
  %v848 = vld [vmem:[#allocation4] sm:$0xff]
  %s849 = scalar_lea.vmem [#allocation2], 96
  %v850 = vld [vmem:[%s849] sm:$0xff]
  %v851 = vld [vmem:[%s849 + $0x8] sm:$0xff]
  %v852 = vld [vmem:[%s849 + $0x10] sm:$0xff]
  %v853 = vld [vmem:[%s849 + $0x18] sm:$0xff]
  %v854 = vpack.c.bf16 %v847, %v847
  %855 = vmatpush.bf16.msra.mxu0 %v568
  %856 = vmatpush.bf16.msra.mxu0 %v564
  %857 = vmatpush.bf16.msra.mxu0 %v560
  %858 = vmatpush.bf16.msra.mxu0 %v556
  %859 = vmatpush.bf16.msra.mxu0 %v552
  %860 = vmatpush.bf16.msra.mxu0 %v548
  %861 = vmatpush.bf16.msra.mxu0 %v544
  %862 = vmatpush.bf16.msra.mxu0 %v540
  %863 = vmatmul.bf16.gmra.mxu0 %v854
  %v864 = vpop.f32.mrf.mxu0
  %v865 = vadd.f32 0.0, %v864
  %v866 = vpop.f32.mrf.mxu0
  %867 = vdwg.mxu0
  %868 = vmatpush.bf16.msra.mxu0 %v569
  %869 = vmatpush.bf16.msra.mxu0 %v565
  %870 = vmatpush.bf16.msra.mxu0 %v561
  %871 = vmatpush.bf16.msra.mxu0 %v557
  %872 = vmatpush.bf16.msra.mxu0 %v553
  %873 = vmatpush.bf16.msra.mxu0 %v549
  %874 = vmatpush.bf16.msra.mxu0 %v545
  %875 = vmatpush.bf16.msra.mxu0 %v541
  %876 = vmatmul.bf16.gmra.mxu0 %v854
  %v877 = vpop.f32.mrf.mxu0
  %v878 = vadd.f32 0.0, %v877
  %v879 = vpop.f32.mrf.mxu0
  %880 = vdwg.mxu0
  %881 = vmatpush.bf16.msra.mxu0 %v570
  %882 = vmatpush.bf16.msra.mxu0 %v566
  %883 = vmatpush.bf16.msra.mxu0 %v562
  %884 = vmatpush.bf16.msra.mxu0 %v558
  %885 = vmatpush.bf16.msra.mxu0 %v554
  %886 = vmatpush.bf16.msra.mxu0 %v550
  %887 = vmatpush.bf16.msra.mxu0 %v546
  %888 = vmatpush.bf16.msra.mxu0 %v542
  %889 = vmatmul.bf16.gmra.mxu0 %v854
  %v890 = vpop.f32.mrf.mxu0
  %v891 = vadd.f32 0.0, %v890
  %v892 = vpop.f32.mrf.mxu0
  %893 = vdwg.mxu0
  %894 = vmatpush.bf16.msra.mxu0 %v571
  %895 = vmatpush.bf16.msra.mxu0 %v567
  %896 = vmatpush.bf16.msra.mxu0 %v563
  %897 = vmatpush.bf16.msra.mxu0 %v559
  %898 = vmatpush.bf16.msra.mxu0 %v555
  %899 = vmatpush.bf16.msra.mxu0 %v551
  %900 = vmatpush.bf16.msra.mxu0 %v547
  %901 = vmatpush.bf16.msra.mxu0 %v543
  %902 = vmatmul.bf16.gmra.mxu0 %v854
  %v903 = vpop.f32.mrf.mxu0
  %v904 = vadd.f32 0.0, %v903
  %v905 = vpop.f32.mrf.mxu0
  %906 = vdwg.mxu0
  %v907 = vadd.f32 %v850, %v865
  %v908 = vadd.f32 %v851, %v878
  %v909 = vadd.f32 %v852, %v891
  %v910 = vadd.f32 %v853, %v904
  %v911 = vtanh.pop %v907
  %v912 = vtanh.pop %v908
  %v913 = vtanh.pop %v909
  %v914 = vtanh.pop %v910
  %v915 = vmul.f32 %v911, 0.5
  %v916 = vadd.f32 %v915, 0.5
  %v917 = vmul.f32 %v912, 0.5
  %v918 = vadd.f32 %v917, 0.5
  %v919 = vmul.f32 %v914, 0.5
  %v920 = vadd.f32 %v919, 0.5
  %v921 = vmul.f32 %v918, %v848
  %v922 = vmul.f32 %v916, %v913
  %v923 = vadd.f32 %v921, %v922
  %v924 = vtanh.pop %v923
  %v925 = vmul.f32 %v920, %v924
  %926 = vst [vmem:[#allocation3] sm:$0xff] %v925
  %927 = vst [vmem:[#allocation4] sm:$0xff] %v923
  %v928 = vpack.c.bf16 %v925, %v925
  %s929 = scalar_lea.vmem %s4, 12
  %930 = vst [vmem:[%s929] sm:$0xf] %v928
  %v931 = vld [vmem:[#allocation3] sm:$0xff]
  %v932 = vld [vmem:[#allocation4] sm:$0xff]
  %s933 = scalar_lea.vmem [#allocation2], 128
  %v934 = vld [vmem:[%s933] sm:$0xff]
  %v935 = vld [vmem:[%s933 + $0x8] sm:$0xff]
  %v936 = vld [vmem:[%s933 + $0x10] sm:$0xff]
  %v937 = vld [vmem:[%s933 + $0x18] sm:$0xff]
  %v938 = vpack.c.bf16 %v931, %v931
  %939 = vmatpush.bf16.msra.mxu0 %v568
  %940 = vmatpush.bf16.msra.mxu0 %v564
  %941 = vmatpush.bf16.msra.mxu0 %v560
  %942 = vmatpush.bf16.msra.mxu0 %v556
  %943 = vmatpush.bf16.msra.mxu0 %v552
  %944 = vmatpush.bf16.msra.mxu0 %v548
  %945 = vmatpush.bf16.msra.mxu0 %v544
  %946 = vmatpush.bf16.msra.mxu0 %v540
  %947 = vmatmul.bf16.gmra.mxu0 %v938
  %v948 = vpop.f32.mrf.mxu0
  %v949 = vadd.f32 0.0, %v948
  %v950 = vpop.f32.mrf.mxu0
  %951 = vdwg.mxu0
  %952 = vmatpush.bf16.msra.mxu0 %v569
  %953 = vmatpush.bf16.msra.mxu0 %v565
  %954 = vmatpush.bf16.msra.mxu0 %v561
  %955 = vmatpush.bf16.msra.mxu0 %v557
  %956 = vmatpush.bf16.msra.mxu0 %v553
  %957 = vmatpush.bf16.msra.mxu0 %v549
  %958 = vmatpush.bf16.msra.mxu0 %v545
  %959 = vmatpush.bf16.msra.mxu0 %v541
  %960 = vmatmul.bf16.gmra.mxu0 %v938
  %v961 = vpop.f32.mrf.mxu0
  %v962 = vadd.f32 0.0, %v961
  %v963 = vpop.f32.mrf.mxu0
  %964 = vdwg.mxu0
  %965 = vmatpush.bf16.msra.mxu0 %v570
  %966 = vmatpush.bf16.msra.mxu0 %v566
  %967 = vmatpush.bf16.msra.mxu0 %v562
  %968 = vmatpush.bf16.msra.mxu0 %v558
  %969 = vmatpush.bf16.msra.mxu0 %v554
  %970 = vmatpush.bf16.msra.mxu0 %v550
  %971 = vmatpush.bf16.msra.mxu0 %v546
  %972 = vmatpush.bf16.msra.mxu0 %v542
  %973 = vmatmul.bf16.gmra.mxu0 %v938
  %v974 = vpop.f32.mrf.mxu0
  %v975 = vadd.f32 0.0, %v974
  %v976 = vpop.f32.mrf.mxu0
  %977 = vdwg.mxu0
  %978 = vmatpush.bf16.msra.mxu0 %v571
  %979 = vmatpush.bf16.msra.mxu0 %v567
  %980 = vmatpush.bf16.msra.mxu0 %v563
  %981 = vmatpush.bf16.msra.mxu0 %v559
  %982 = vmatpush.bf16.msra.mxu0 %v555
  %983 = vmatpush.bf16.msra.mxu0 %v551
  %984 = vmatpush.bf16.msra.mxu0 %v547
  %985 = vmatpush.bf16.msra.mxu0 %v543
  %986 = vmatmul.bf16.gmra.mxu0 %v938
  %v987 = vpop.f32.mrf.mxu0
  %v988 = vadd.f32 0.0, %v987
  %v989 = vpop.f32.mrf.mxu0
  %990 = vdwg.mxu0
  %v991 = vadd.f32 %v934, %v949
  %v992 = vadd.f32 %v935, %v962
  %v993 = vadd.f32 %v936, %v975
  %v994 = vadd.f32 %v937, %v988
  %v995 = vtanh.pop %v991
  %v996 = vtanh.pop %v992
  %v997 = vtanh.pop %v993
  %v998 = vtanh.pop %v994
  %v999 = vmul.f32 %v995, 0.5
  %v1000 = vadd.f32 %v999, 0.5
  %v1001 = vmul.f32 %v996, 0.5
  %v1002 = vadd.f32 %v1001, 0.5
  %v1003 = vmul.f32 %v998, 0.5
  %v1004 = vadd.f32 %v1003, 0.5
  %v1005 = vmul.f32 %v1002, %v932
  %v1006 = vmul.f32 %v1000, %v997
  %v1007 = vadd.f32 %v1005, %v1006
  %v1008 = vtanh.pop %v1007
  %v1009 = vmul.f32 %v1004, %v1008
  %1010 = vst [vmem:[#allocation3] sm:$0xff] %v1009
  %1011 = vst [vmem:[#allocation4] sm:$0xff] %v1007
  %v1012 = vpack.c.bf16 %v1009, %v1009
  %s1013 = scalar_lea.vmem %s4, 16
  %1014 = vst [vmem:[%s1013] sm:$0xf] %v1012
  %v1015 = vld [vmem:[#allocation3] sm:$0xff]
  %v1016 = vld [vmem:[#allocation4] sm:$0xff]
  %s1017 = scalar_lea.vmem [#allocation2], 160
  %v1018 = vld [vmem:[%s1017] sm:$0xff]
  %v1019 = vld [vmem:[%s1017 + $0x8] sm:$0xff]
  %v1020 = vld [vmem:[%s1017 + $0x10] sm:$0xff]
  %v1021 = vld [vmem:[%s1017 + $0x18] sm:$0xff]
  %v1022 = vpack.c.bf16 %v1015, %v1015
  %1023 = vmatpush.bf16.msra.mxu0 %v568
  %1024 = vmatpush.bf16.msra.mxu0 %v564
  %1025 = vmatpush.bf16.msra.mxu0 %v560
  %1026 = vmatpush.bf16.msra.mxu0 %v556
  %1027 = vmatpush.bf16.msra.mxu0 %v552
  %1028 = vmatpush.bf16.msra.mxu0 %v548
  %1029 = vmatpush.bf16.msra.mxu0 %v544
  %1030 = vmatpush.bf16.msra.mxu0 %v540
  %1031 = vmatmul.bf16.gmra.mxu0 %v1022
  %v1032 = vpop.f32.mrf.mxu0
  %v1033 = vadd.f32 0.0, %v1032
  %v1034 = vpop.f32.mrf.mxu0
  %1035 = vdwg.mxu0
  %1036 = vmatpush.bf16.msra.mxu0 %v569
  %1037 = vmatpush.bf16.msra.mxu0 %v565
  %1038 = vmatpush.bf16.msra.mxu0 %v561
  %1039 = vmatpush.bf16.msra.mxu0 %v557
  %1040 = vmatpush.bf16.msra.mxu0 %v553
  %1041 = vmatpush.bf16.msra.mxu0 %v549
  %1042 = vmatpush.bf16.msra.mxu0 %v545
  %1043 = vmatpush.bf16.msra.mxu0 %v541
  %1044 = vmatmul.bf16.gmra.mxu0 %v1022
  %v1045 = vpop.f32.mrf.mxu0
  %v1046 = vadd.f32 0.0, %v1045
  %v1047 = vpop.f32.mrf.mxu0
  %1048 = vdwg.mxu0
  %1049 = vmatpush.bf16.msra.mxu0 %v570
  %1050 = vmatpush.bf16.msra.mxu0 %v566
  %1051 = vmatpush.bf16.msra.mxu0 %v562
  %1052 = vmatpush.bf16.msra.mxu0 %v558
  %1053 = vmatpush.bf16.msra.mxu0 %v554
  %1054 = vmatpush.bf16.msra.mxu0 %v550
  %1055 = vmatpush.bf16.msra.mxu0 %v546
  %1056 = vmatpush.bf16.msra.mxu0 %v542
  %1057 = vmatmul.bf16.gmra.mxu0 %v1022
  %v1058 = vpop.f32.mrf.mxu0
  %v1059 = vadd.f32 0.0, %v1058
  %v1060 = vpop.f32.mrf.mxu0
  %1061 = vdwg.mxu0
  %1062 = vmatpush.bf16.msra.mxu0 %v571
  %1063 = vmatpush.bf16.msra.mxu0 %v567
  %1064 = vmatpush.bf16.msra.mxu0 %v563
  %1065 = vmatpush.bf16.msra.mxu0 %v559
  %1066 = vmatpush.bf16.msra.mxu0 %v555
  %1067 = vmatpush.bf16.msra.mxu0 %v551
  %1068 = vmatpush.bf16.msra.mxu0 %v547
  %1069 = vmatpush.bf16.msra.mxu0 %v543
  %1070 = vmatmul.bf16.gmra.mxu0 %v1022
  %v1071 = vpop.f32.mrf.mxu0
  %v1072 = vadd.f32 0.0, %v1071
  %v1073 = vpop.f32.mrf.mxu0
  %1074 = vdwg.mxu0
  %v1075 = vadd.f32 %v1018, %v1033
  %v1076 = vadd.f32 %v1019, %v1046
  %v1077 = vadd.f32 %v1020, %v1059
  %v1078 = vadd.f32 %v1021, %v1072
  %v1079 = vtanh.pop %v1075
  %v1080 = vtanh.pop %v1076
  %v1081 = vtanh.pop %v1077
  %v1082 = vtanh.pop %v1078
  %v1083 = vmul.f32 %v1079, 0.5
  %v1084 = vadd.f32 %v1083, 0.5
  %v1085 = vmul.f32 %v1080, 0.5
  %v1086 = vadd.f32 %v1085, 0.5
  %v1087 = vmul.f32 %v1082, 0.5
  %v1088 = vadd.f32 %v1087, 0.5
  %v1089 = vmul.f32 %v1086, %v1016
  %v1090 = vmul.f32 %v1084, %v1081
  %v1091 = vadd.f32 %v1089, %v1090
  %v1092 = vtanh.pop %v1091
  %v1093 = vmul.f32 %v1088, %v1092
  %1094 = vst [vmem:[#allocation3] sm:$0xff] %v1093
  %1095 = vst [vmem:[#allocation4] sm:$0xff] %v1091
  %v1096 = vpack.c.bf16 %v1093, %v1093
  %s1097 = scalar_lea.vmem %s4, 20
  %1098 = vst [vmem:[%s1097] sm:$0xf] %v1096
  %v1099 = vld [vmem:[#allocation3] sm:$0xff]
  %v1100 = vld [vmem:[#allocation4] sm:$0xff]
  %s1101 = scalar_lea.vmem [#allocation2], 192
  %v1102 = vld [vmem:[%s1101] sm:$0xff]
  %v1103 = vld [vmem:[%s1101 + $0x8] sm:$0xff]
  %v1104 = vld [vmem:[%s1101 + $0x10] sm:$0xff]
  %v1105 = vld [vmem:[%s1101 + $0x18] sm:$0xff]
  %v1106 = vpack.c.bf16 %v1099, %v1099
  %1107 = vmatpush.bf16.msra.mxu0 %v568
  %1108 = vmatpush.bf16.msra.mxu0 %v564
  %1109 = vmatpush.bf16.msra.mxu0 %v560
  %1110 = vmatpush.bf16.msra.mxu0 %v556
  %1111 = vmatpush.bf16.msra.mxu0 %v552
  %1112 = vmatpush.bf16.msra.mxu0 %v548
  %1113 = vmatpush.bf16.msra.mxu0 %v544
  %1114 = vmatpush.bf16.msra.mxu0 %v540
  %1115 = vmatmul.bf16.gmra.mxu0 %v1106
  %v1116 = vpop.f32.mrf.mxu0
  %v1117 = vadd.f32 0.0, %v1116
  %v1118 = vpop.f32.mrf.mxu0
  %1119 = vdwg.mxu0
  %1120 = vmatpush.bf16.msra.mxu0 %v569
  %1121 = vmatpush.bf16.msra.mxu0 %v565
  %1122 = vmatpush.bf16.msra.mxu0 %v561
  %1123 = vmatpush.bf16.msra.mxu0 %v557
  %1124 = vmatpush.bf16.msra.mxu0 %v553
  %1125 = vmatpush.bf16.msra.mxu0 %v549
  %1126 = vmatpush.bf16.msra.mxu0 %v545
  %1127 = vmatpush.bf16.msra.mxu0 %v541
  %1128 = vmatmul.bf16.gmra.mxu0 %v1106
  %v1129 = vpop.f32.mrf.mxu0
  %v1130 = vadd.f32 0.0, %v1129
  %v1131 = vpop.f32.mrf.mxu0
  %1132 = vdwg.mxu0
  %1133 = vmatpush.bf16.msra.mxu0 %v570
  %1134 = vmatpush.bf16.msra.mxu0 %v566
  %1135 = vmatpush.bf16.msra.mxu0 %v562
  %1136 = vmatpush.bf16.msra.mxu0 %v558
  %1137 = vmatpush.bf16.msra.mxu0 %v554
  %1138 = vmatpush.bf16.msra.mxu0 %v550
  %1139 = vmatpush.bf16.msra.mxu0 %v546
  %1140 = vmatpush.bf16.msra.mxu0 %v542
  %1141 = vmatmul.bf16.gmra.mxu0 %v1106
  %v1142 = vpop.f32.mrf.mxu0
  %v1143 = vadd.f32 0.0, %v1142
  %v1144 = vpop.f32.mrf.mxu0
  %1145 = vdwg.mxu0
  %1146 = vmatpush.bf16.msra.mxu0 %v571
  %1147 = vmatpush.bf16.msra.mxu0 %v567
  %1148 = vmatpush.bf16.msra.mxu0 %v563
  %1149 = vmatpush.bf16.msra.mxu0 %v559
  %1150 = vmatpush.bf16.msra.mxu0 %v555
  %1151 = vmatpush.bf16.msra.mxu0 %v551
  %1152 = vmatpush.bf16.msra.mxu0 %v547
  %1153 = vmatpush.bf16.msra.mxu0 %v543
  %1154 = vmatmul.bf16.gmra.mxu0 %v1106
  %v1155 = vpop.f32.mrf.mxu0
  %v1156 = vadd.f32 0.0, %v1155
  %v1157 = vpop.f32.mrf.mxu0
  %1158 = vdwg.mxu0
  %v1159 = vadd.f32 %v1102, %v1117
  %v1160 = vadd.f32 %v1103, %v1130
  %v1161 = vadd.f32 %v1104, %v1143
  %v1162 = vadd.f32 %v1105, %v1156
  %v1163 = vtanh.pop %v1159
  %v1164 = vtanh.pop %v1160
  %v1165 = vtanh.pop %v1161
  %v1166 = vtanh.pop %v1162
  %v1167 = vmul.f32 %v1163, 0.5
  %v1168 = vadd.f32 %v1167, 0.5
  %v1169 = vmul.f32 %v1164, 0.5
  %v1170 = vadd.f32 %v1169, 0.5
  %v1171 = vmul.f32 %v1166, 0.5
  %v1172 = vadd.f32 %v1171, 0.5
  %v1173 = vmul.f32 %v1170, %v1100
  %v1174 = vmul.f32 %v1168, %v1165
  %v1175 = vadd.f32 %v1173, %v1174
  %v1176 = vtanh.pop %v1175
  %v1177 = vmul.f32 %v1172, %v1176
  %1178 = vst [vmem:[#allocation3] sm:$0xff] %v1177
  %1179 = vst [vmem:[#allocation4] sm:$0xff] %v1175
  %v1180 = vpack.c.bf16 %v1177, %v1177
  %s1181 = scalar_lea.vmem %s4, 24
  %1182 = vst [vmem:[%s1181] sm:$0xf] %v1180
  %v1183 = vld [vmem:[#allocation3] sm:$0xff]
  %v1184 = vld [vmem:[#allocation4] sm:$0xff]
  %s1185 = scalar_lea.vmem [#allocation2], 224
  %v1186 = vld [vmem:[%s1185] sm:$0xff]
  %v1187 = vld [vmem:[%s1185 + $0x8] sm:$0xff]
  %v1188 = vld [vmem:[%s1185 + $0x10] sm:$0xff]
  %v1189 = vld [vmem:[%s1185 + $0x18] sm:$0xff]
  %v1190 = vpack.c.bf16 %v1183, %v1183
  %1191 = vmatpush.bf16.msra.mxu0 %v568
  %1192 = vmatpush.bf16.msra.mxu0 %v564
  %1193 = vmatpush.bf16.msra.mxu0 %v560
  %1194 = vmatpush.bf16.msra.mxu0 %v556
  %1195 = vmatpush.bf16.msra.mxu0 %v552
  %1196 = vmatpush.bf16.msra.mxu0 %v548
  %1197 = vmatpush.bf16.msra.mxu0 %v544
  %1198 = vmatpush.bf16.msra.mxu0 %v540
  %1199 = vmatmul.bf16.gmra.mxu0 %v1190
  %v1200 = vpop.f32.mrf.mxu0
  %v1201 = vadd.f32 0.0, %v1200
  %v1202 = vpop.f32.mrf.mxu0
  %1203 = vdwg.mxu0
  %1204 = vmatpush.bf16.msra.mxu0 %v569
  %1205 = vmatpush.bf16.msra.mxu0 %v565
  %1206 = vmatpush.bf16.msra.mxu0 %v561
  %1207 = vmatpush.bf16.msra.mxu0 %v557
  %1208 = vmatpush.bf16.msra.mxu0 %v553
  %1209 = vmatpush.bf16.msra.mxu0 %v549
  %1210 = vmatpush.bf16.msra.mxu0 %v545
  %1211 = vmatpush.bf16.msra.mxu0 %v541
  %1212 = vmatmul.bf16.gmra.mxu0 %v1190
  %v1213 = vpop.f32.mrf.mxu0
  %v1214 = vadd.f32 0.0, %v1213
  %v1215 = vpop.f32.mrf.mxu0
  %1216 = vdwg.mxu0
  %1217 = vmatpush.bf16.msra.mxu0 %v570
  %1218 = vmatpush.bf16.msra.mxu0 %v566
  %1219 = vmatpush.bf16.msra.mxu0 %v562
  %1220 = vmatpush.bf16.msra.mxu0 %v558
  %1221 = vmatpush.bf16.msra.mxu0 %v554
  %1222 = vmatpush.bf16.msra.mxu0 %v550
  %1223 = vmatpush.bf16.msra.mxu0 %v546
  %1224 = vmatpush.bf16.msra.mxu0 %v542
  %1225 = vmatmul.bf16.gmra.mxu0 %v1190
  %v1226 = vpop.f32.mrf.mxu0
  %v1227 = vadd.f32 0.0, %v1226
  %v1228 = vpop.f32.mrf.mxu0
  %1229 = vdwg.mxu0
  %1230 = vmatpush.bf16.msra.mxu0 %v571
  %1231 = vmatpush.bf16.msra.mxu0 %v567
  %1232 = vmatpush.bf16.msra.mxu0 %v563
  %1233 = vmatpush.bf16.msra.mxu0 %v559
  %1234 = vmatpush.bf16.msra.mxu0 %v555
  %1235 = vmatpush.bf16.msra.mxu0 %v551
  %1236 = vmatpush.bf16.msra.mxu0 %v547
  %1237 = vmatpush.bf16.msra.mxu0 %v543
  %1238 = vmatmul.bf16.gmra.mxu0 %v1190
  %v1239 = vpop.f32.mrf.mxu0
  %v1240 = vadd.f32 0.0, %v1239
  %v1241 = vpop.f32.mrf.mxu0
  %1242 = vdwg.mxu0
  %v1243 = vadd.f32 %v1186, %v1201
  %v1244 = vadd.f32 %v1187, %v1214
  %v1245 = vadd.f32 %v1188, %v1227
  %v1246 = vadd.f32 %v1189, %v1240
  %v1247 = vtanh.pop %v1243
  %v1248 = vtanh.pop %v1244
  %v1249 = vtanh.pop %v1245
  %v1250 = vtanh.pop %v1246
  %v1251 = vmul.f32 %v1247, 0.5
  %v1252 = vadd.f32 %v1251, 0.5
  %v1253 = vmul.f32 %v1248, 0.5
  %v1254 = vadd.f32 %v1253, 0.5
  %v1255 = vmul.f32 %v1250, 0.5
  %v1256 = vadd.f32 %v1255, 0.5
  %v1257 = vmul.f32 %v1254, %v1184
  %v1258 = vmul.f32 %v1252, %v1249
  %v1259 = vadd.f32 %v1257, %v1258
  %v1260 = vtanh.pop %v1259
  %v1261 = vmul.f32 %v1256, %v1260
  %1262 = vst [vmem:[#allocation3] sm:$0xff] %v1261
  %1263 = vst [vmem:[#allocation4] sm:$0xff] %v1259
  %v1264 = vpack.c.bf16 %v1261, %v1261
  %s1265 = scalar_lea.vmem %s4, 28
  %1266 = vst [vmem:[%s1265] sm:$0xf] %v1264
  // Predicated region
  $region22: #{lstm_model_forward.2} parent=0 // pred_check
    _
  $region23: #{lstm_model_forward.2} parent=0 // pred_check_branch
    %1268 = sbr.rel (0) target = $region25
  $region24: #{lstm_model_forward.2} parent=0 // pred_region
    _
  $region25: #{lstm_model_forward.2} parent=0 // pred_fallthru
    _
  // Predicated region
  $region26: #{lstm_model_forward.2} parent=0 // pred_check
    _
  $region27: #{lstm_model_forward.2} parent=0 // pred_check_branch
    %1270 = sbr.rel (0) target = $region29
  $region28: #{lstm_model_forward.2} parent=0 // pred_region
    _
  $region29: #{lstm_model_forward.2} parent=0 // pred_fallthru
    _

// kernel: lstm_model_forward.3
$region0: #{lstm_model_forward.3}
  #allocation0 [shape = 'u32[]', space=smem, size = 0x4, offset = 0x4, fixed_abs, tag = 'smem constant byte address 0x4 - core index']
  #allocation1 [shape = 'u32[72,128]{1,0:T(1,128)}', space=vmem, size = 0x9000, scoped, tag = 'internal scratch']
  #allocation2 [shape = 'f32[8,8,512]{2,1,0:T(8,128)}', space=vmem, size = 0x20000, scoped, tag = 'scratch operand']
  #allocation3 [shape = 'f32[8,128]{1,0:T(8,128)}', space=vmem, size = 0x1000, scoped, tag = 'scratch operand']
  #allocation4 [shape = 'f32[8,128]{1,0:T(8,128)}', space=vmem, size = 0x1000, scoped, tag = 'scratch operand']
  %s0 = inlined_call_operand.vmem [shape: bf16[8,8,128], index: 0, kind: input, shape index: {}]
  %s1 = inlined_call_operand.vmem [shape: bf16[128,512], index: 1, kind: input, shape index: {}]
  %s2 = inlined_call_operand.vmem [shape: bf16[128,512], index: 2, kind: input, shape index: {}]
  %s3 = inlined_call_operand.vmem [shape: f32[1,512], index: 3, kind: input, shape index: {}]
  %s4 = inlined_call_operand.vmem [shape: f32[8,128], index: 4, kind: output, shape index: {}]
  %s5 = sld [smem:[#allocation0]]
  $region34: #{lstm_model_forward.3} parent=0
    _
  %s7 = ssub.s32 1, %s5
  %s8 = scalar_select 0, %s7, %s5
  // Predicated region
  $region2: #{lstm_model_forward.3} parent=0 // pred_check
    _
  $region3: #{lstm_model_forward.3} parent=0 // pred_check_branch
    %10 = sbr.rel (0) target = $region5
  $region4: #{lstm_model_forward.3} parent=0 // pred_region
    _
  $region5: #{lstm_model_forward.3} parent=0 // pred_fallthru
    _
  // Predicated region
  $region6: #{lstm_model_forward.3} parent=0 // pred_check
    _
  $region7: #{lstm_model_forward.3} parent=0 // pred_check_branch
    %12 = sbr.rel (0) target = $region9
  $region8: #{lstm_model_forward.3} parent=0 // pred_region
    _
  $region9: #{lstm_model_forward.3} parent=0 // pred_fallthru
    _
  // Predicated region
  $region10: #{lstm_model_forward.3} parent=0 // pred_check
    _
  $region11: #{lstm_model_forward.3} parent=0 // pred_check_branch
    %14 = sbr.rel (0) target = $region13
  $region12: #{lstm_model_forward.3} parent=0 // pred_region
    _
  $region13: #{lstm_model_forward.3} parent=0 // pred_fallthru
    _
  // Predicated region
  $region14: #{lstm_model_forward.3} parent=0 // pred_check
    _
  $region15: #{lstm_model_forward.3} parent=0 // pred_check_branch
    %16 = sbr.rel (0) target = $region17
  $region16: #{lstm_model_forward.3} parent=0 // pred_region
    _
  $region17: #{lstm_model_forward.3} parent=0 // pred_fallthru
    _
  %p17 = scmp.eq.s32.totalorder 0, 0
  // Predicated region
  $region18: #{lstm_model_forward.3} parent=0 // pred_check
    %p18 = pneg %p17
  $region19: #{lstm_model_forward.3} parent=0 // pred_check_branch
    %20 = sbr.rel (%p18) target = $region21
  $region20: #{lstm_model_forward.3} parent=0 // pred_region
    %21 = vst [vmem:[#allocation3] sm:$0xff] 0.0
    %22 = vst [vmem:[#allocation4] sm:$0xff] 0.0
  $region21: #{lstm_model_forward.3} parent=0 // pred_fallthru
    _
  %v23 = vld [vmem:[%s0] sm:$0xf]
  %v24 = vld [vmem:[%s0 + $0x4] sm:$0xf]
  %v25 = vld [vmem:[%s0 + $0x8] sm:$0xf]
  %v26 = vld [vmem:[%s0 + $0xc] sm:$0xf]
  %v27 = vld [vmem:[%s0 + $0x10] sm:$0xf]
  %v28 = vld [vmem:[%s0 + $0x14] sm:$0xf]
  %v29 = vld [vmem:[%s0 + $0x18] sm:$0xf]
  %v30 = vld [vmem:[%s0 + $0x1c] sm:$0xf]
  %v31 = vld [vmem:[%s1] sm:$0xff]
  %v32 = vld [vmem:[%s1 + $0x8] sm:$0xff]
  %v33 = vld [vmem:[%s1 + $0x10] sm:$0xff]
  %v34 = vld [vmem:[%s1 + $0x18] sm:$0xff]
  %v35 = vld [vmem:[%s1 + $0x20] sm:$0xff]
  %v36 = vld [vmem:[%s1 + $0x28] sm:$0xff]
  %v37 = vld [vmem:[%s1 + $0x30] sm:$0xff]
  %v38 = vld [vmem:[%s1 + $0x38] sm:$0xff]
  %v39 = vld [vmem:[%s1 + $0x40] sm:$0xff]
  %v40 = vld [vmem:[%s1 + $0x48] sm:$0xff]
  %v41 = vld [vmem:[%s1 + $0x50] sm:$0xff]
  %v42 = vld [vmem:[%s1 + $0x58] sm:$0xff]
  %v43 = vld [vmem:[%s1 + $0x60] sm:$0xff]
  %v44 = vld [vmem:[%s1 + $0x68] sm:$0xff]
  %v45 = vld [vmem:[%s1 + $0x70] sm:$0xff]
  %v46 = vld [vmem:[%s1 + $0x78] sm:$0xff]
  %v47 = vld [vmem:[%s1 + $0x80] sm:$0xff]
  %v48 = vld [vmem:[%s1 + $0x88] sm:$0xff]
  %v49 = vld [vmem:[%s1 + $0x90] sm:$0xff]
  %v50 = vld [vmem:[%s1 + $0x98] sm:$0xff]
  %v51 = vld [vmem:[%s1 + $0xa0] sm:$0xff]
  %v52 = vld [vmem:[%s1 + $0xa8] sm:$0xff]
  %v53 = vld [vmem:[%s1 + $0xb0] sm:$0xff]
  %v54 = vld [vmem:[%s1 + $0xb8] sm:$0xff]
  %v55 = vld [vmem:[%s1 + $0xc0] sm:$0xff]
  %v56 = vld [vmem:[%s1 + $0xc8] sm:$0xff]
  %v57 = vld [vmem:[%s1 + $0xd0] sm:$0xff]
  %v58 = vld [vmem:[%s1 + $0xd8] sm:$0xff]
  %v59 = vld [vmem:[%s1 + $0xe0] sm:$0xff]
  %v60 = vld [vmem:[%s1 + $0xe8] sm:$0xff]
  %v61 = vld [vmem:[%s1 + $0xf0] sm:$0xff]
  %v62 = vld [vmem:[%s1 + $0xf8] sm:$0xff]
  %v63 = vld [vmem:[%s3] sm:$0xf]
  %v65 = vperm.slane %v63, 0
  %v66 = vperm.slane %v63, 1
  %v67 = vperm.slane %v63, 2
  %v68 = vperm.slane %v63, 3
  %v81 = vunpack.c.l.b16 %v23
  %v82 = vunpack.c.l.b16 %v24
  %v83 = vunpack.c.l.b16 %v25
  %v84 = vunpack.c.l.b16 %v26
  %v85 = vunpack.c.l.b16 %v27
  %v86 = vunpack.c.l.b16 %v28
  %v87 = vunpack.c.l.b16 %v29
  %v88 = vunpack.c.l.b16 %v30
  %v89 = vpack.c.b16 %v82, %v81
  %v90 = vpack.c.b16 %v84, %v83
  %v91 = vpack.c.b16 %v86, %v85
  %v92 = vpack.c.b16 %v88, %v87
  %v129 = vunpack.c.l.b16 %v31
  %v130 = vunpack.c.h.b16 %v31
  %v131 = vunpack.c.l.b16 %v32
  %v132 = vunpack.c.h.b16 %v32
  %v133 = vunpack.c.l.b16 %v33
  %v134 = vunpack.c.h.b16 %v33
  %v135 = vunpack.c.l.b16 %v34
  %v136 = vunpack.c.h.b16 %v34
  %v137 = vunpack.c.l.b16 %v35
  %v138 = vunpack.c.h.b16 %v35
  %v139 = vunpack.c.l.b16 %v36
  %v140 = vunpack.c.h.b16 %v36
  %v141 = vunpack.c.l.b16 %v37
  %v142 = vunpack.c.h.b16 %v37
  %v143 = vunpack.c.l.b16 %v38
  %v144 = vunpack.c.h.b16 %v38
  %v145 = vunpack.c.l.b16 %v39
  %v146 = vunpack.c.h.b16 %v39
  %v147 = vunpack.c.l.b16 %v40
  %v148 = vunpack.c.h.b16 %v40
  %v149 = vunpack.c.l.b16 %v41
  %v150 = vunpack.c.h.b16 %v41
  %v151 = vunpack.c.l.b16 %v42
  %v152 = vunpack.c.h.b16 %v42
  %v153 = vunpack.c.l.b16 %v43
  %v154 = vunpack.c.h.b16 %v43
  %v155 = vunpack.c.l.b16 %v44
  %v156 = vunpack.c.h.b16 %v44
  %v157 = vunpack.c.l.b16 %v45
  %v158 = vunpack.c.h.b16 %v45
  %v159 = vunpack.c.l.b16 %v46
  %v160 = vunpack.c.h.b16 %v46
  %v161 = vunpack.c.l.b16 %v47
  %v162 = vunpack.c.h.b16 %v47
  %v163 = vunpack.c.l.b16 %v48
  %v164 = vunpack.c.h.b16 %v48
  %v165 = vunpack.c.l.b16 %v49
  %v166 = vunpack.c.h.b16 %v49
  %v167 = vunpack.c.l.b16 %v50
  %v168 = vunpack.c.h.b16 %v50
  %v169 = vunpack.c.l.b16 %v51
  %v170 = vunpack.c.h.b16 %v51
  %v171 = vunpack.c.l.b16 %v52
  %v172 = vunpack.c.h.b16 %v52
  %v173 = vunpack.c.l.b16 %v53
  %v174 = vunpack.c.h.b16 %v53
  %v175 = vunpack.c.l.b16 %v54
  %v176 = vunpack.c.h.b16 %v54
  %v177 = vunpack.c.l.b16 %v55
  %v178 = vunpack.c.h.b16 %v55
  %v179 = vunpack.c.l.b16 %v56
  %v180 = vunpack.c.h.b16 %v56
  %v181 = vunpack.c.l.b16 %v57
  %v182 = vunpack.c.h.b16 %v57
  %v183 = vunpack.c.l.b16 %v58
  %v184 = vunpack.c.h.b16 %v58
  %v185 = vunpack.c.l.b16 %v59
  %v186 = vunpack.c.h.b16 %v59
  %v187 = vunpack.c.l.b16 %v60
  %v188 = vunpack.c.h.b16 %v60
  %v189 = vunpack.c.l.b16 %v61
  %v190 = vunpack.c.h.b16 %v61
  %v191 = vunpack.c.l.b16 %v62
  %v192 = vunpack.c.h.b16 %v62
  %v193 = vpack.c.b16 %v133, %v129
  %v194 = vpack.c.b16 %v134, %v130
  %v195 = vpack.c.b16 %v135, %v131
  %v196 = vpack.c.b16 %v136, %v132
  %v197 = vpack.c.b16 %v141, %v137
  %v198 = vpack.c.b16 %v142, %v138
  %v199 = vpack.c.b16 %v143, %v139
  %v200 = vpack.c.b16 %v144, %v140
  %v201 = vpack.c.b16 %v149, %v145
  %v202 = vpack.c.b16 %v150, %v146
  %v203 = vpack.c.b16 %v151, %v147
  %v204 = vpack.c.b16 %v152, %v148
  %v205 = vpack.c.b16 %v157, %v153
  %v206 = vpack.c.b16 %v158, %v154
  %v207 = vpack.c.b16 %v159, %v155
  %v208 = vpack.c.b16 %v160, %v156
  %v209 = vpack.c.b16 %v165, %v161
  %v210 = vpack.c.b16 %v166, %v162
  %v211 = vpack.c.b16 %v167, %v163
  %v212 = vpack.c.b16 %v168, %v164
  %v213 = vpack.c.b16 %v173, %v169
  %v214 = vpack.c.b16 %v174, %v170
  %v215 = vpack.c.b16 %v175, %v171
  %v216 = vpack.c.b16 %v176, %v172
  %v217 = vpack.c.b16 %v181, %v177
  %v218 = vpack.c.b16 %v182, %v178
  %v219 = vpack.c.b16 %v183, %v179
  %v220 = vpack.c.b16 %v184, %v180
  %v221 = vpack.c.b16 %v189, %v185
  %v222 = vpack.c.b16 %v190, %v186
  %v223 = vpack.c.b16 %v191, %v187
  %v224 = vpack.c.b16 %v192, %v188
  %257 = vmatpush.bf16.msra.mxu0 %v221
  %258 = vmatpush.bf16.msra.mxu0 %v217
  %259 = vmatpush.bf16.msra.mxu0 %v213
  %260 = vmatpush.bf16.msra.mxu0 %v209
  %261 = vmatpush.bf16.msra.mxu0 %v205
  %262 = vmatpush.bf16.msra.mxu0 %v201
  %263 = vmatpush.bf16.msra.mxu0 %v197
  %264 = vmatpush.bf16.msra.mxu0 %v193
  %265 = vmatmul.bf16.gmra.mxu0 %v89
  %v266 = vpop.f32.mrf.mxu0
  %v267 = vadd.f32 %v65, %v266
  %v268 = vpop.f32.mrf.mxu0
  %v269 = vadd.f32 %v65, %v268
  %270 = vmatmul.bf16.gmra.mxu0 %v90
  %v271 = vpop.f32.mrf.mxu0
  %v272 = vadd.f32 %v65, %v271
  %v273 = vpop.f32.mrf.mxu0
  %v274 = vadd.f32 %v65, %v273
  %275 = vmatmul.bf16.gmra.mxu0 %v91
  %v276 = vpop.f32.mrf.mxu0
  %v277 = vadd.f32 %v65, %v276
  %v278 = vpop.f32.mrf.mxu0
  %v279 = vadd.f32 %v65, %v278
  %280 = vmatmul.bf16.gmra.mxu0 %v92
  %v281 = vpop.f32.mrf.mxu0
  %v282 = vadd.f32 %v65, %v281
  %v283 = vpop.f32.mrf.mxu0
  %v284 = vadd.f32 %v65, %v283
  %285 = vdwg.mxu0
  %286 = vmatpush.bf16.msra.mxu0 %v222
  %287 = vmatpush.bf16.msra.mxu0 %v218
  %288 = vmatpush.bf16.msra.mxu0 %v214
  %289 = vmatpush.bf16.msra.mxu0 %v210
  %290 = vmatpush.bf16.msra.mxu0 %v206
  %291 = vmatpush.bf16.msra.mxu0 %v202
  %292 = vmatpush.bf16.msra.mxu0 %v198
  %293 = vmatpush.bf16.msra.mxu0 %v194
  %294 = vmatmul.bf16.gmra.mxu0 %v89
  %v295 = vpop.f32.mrf.mxu0
  %v296 = vadd.f32 %v66, %v295
  %v297 = vpop.f32.mrf.mxu0
  %v298 = vadd.f32 %v66, %v297
  %299 = vmatmul.bf16.gmra.mxu0 %v90
  %v300 = vpop.f32.mrf.mxu0
  %v301 = vadd.f32 %v66, %v300
  %v302 = vpop.f32.mrf.mxu0
  %v303 = vadd.f32 %v66, %v302
  %304 = vmatmul.bf16.gmra.mxu0 %v91
  %v305 = vpop.f32.mrf.mxu0
  %v306 = vadd.f32 %v66, %v305
  %v307 = vpop.f32.mrf.mxu0
  %v308 = vadd.f32 %v66, %v307
  %309 = vmatmul.bf16.gmra.mxu0 %v92
  %v310 = vpop.f32.mrf.mxu0
  %v311 = vadd.f32 %v66, %v310
  %v312 = vpop.f32.mrf.mxu0
  %v313 = vadd.f32 %v66, %v312
  %314 = vdwg.mxu0
  %315 = vmatpush.bf16.msra.mxu0 %v223
  %316 = vmatpush.bf16.msra.mxu0 %v219
  %317 = vmatpush.bf16.msra.mxu0 %v215
  %318 = vmatpush.bf16.msra.mxu0 %v211
  %319 = vmatpush.bf16.msra.mxu0 %v207
  %320 = vmatpush.bf16.msra.mxu0 %v203
  %321 = vmatpush.bf16.msra.mxu0 %v199
  %322 = vmatpush.bf16.msra.mxu0 %v195
  %323 = vmatmul.bf16.gmra.mxu0 %v89
  %v324 = vpop.f32.mrf.mxu0
  %v325 = vadd.f32 %v67, %v324
  %v326 = vpop.f32.mrf.mxu0
  %v327 = vadd.f32 %v67, %v326
  %328 = vmatmul.bf16.gmra.mxu0 %v90
  %v329 = vpop.f32.mrf.mxu0
  %v330 = vadd.f32 %v67, %v329
  %v331 = vpop.f32.mrf.mxu0
  %v332 = vadd.f32 %v67, %v331
  %333 = vmatmul.bf16.gmra.mxu0 %v91
  %v334 = vpop.f32.mrf.mxu0
  %v335 = vadd.f32 %v67, %v334
  %v336 = vpop.f32.mrf.mxu0
  %v337 = vadd.f32 %v67, %v336
  %338 = vmatmul.bf16.gmra.mxu0 %v92
  %v339 = vpop.f32.mrf.mxu0
  %v340 = vadd.f32 %v67, %v339
  %v341 = vpop.f32.mrf.mxu0
  %v342 = vadd.f32 %v67, %v341
  %343 = vdwg.mxu0
  %344 = vmatpush.bf16.msra.mxu0 %v224
  %345 = vmatpush.bf16.msra.mxu0 %v220
  %346 = vmatpush.bf16.msra.mxu0 %v216
  %347 = vmatpush.bf16.msra.mxu0 %v212
  %348 = vmatpush.bf16.msra.mxu0 %v208
  %349 = vmatpush.bf16.msra.mxu0 %v204
  %350 = vmatpush.bf16.msra.mxu0 %v200
  %351 = vmatpush.bf16.msra.mxu0 %v196
  %352 = vmatmul.bf16.gmra.mxu0 %v89
  %v353 = vpop.f32.mrf.mxu0
  %v354 = vadd.f32 %v68, %v353
  %v355 = vpop.f32.mrf.mxu0
  %v356 = vadd.f32 %v68, %v355
  %357 = vmatmul.bf16.gmra.mxu0 %v90
  %v358 = vpop.f32.mrf.mxu0
  %v359 = vadd.f32 %v68, %v358
  %v360 = vpop.f32.mrf.mxu0
  %v361 = vadd.f32 %v68, %v360
  %362 = vmatmul.bf16.gmra.mxu0 %v91
  %v363 = vpop.f32.mrf.mxu0
  %v364 = vadd.f32 %v68, %v363
  %v365 = vpop.f32.mrf.mxu0
  %v366 = vadd.f32 %v68, %v365
  %367 = vmatmul.bf16.gmra.mxu0 %v92
  %v368 = vpop.f32.mrf.mxu0
  %v369 = vadd.f32 %v68, %v368
  %v370 = vpop.f32.mrf.mxu0
  %v371 = vadd.f32 %v68, %v370
  %372 = vdwg.mxu0
  %373 = vst [vmem:[#allocation2] sm:$0xff] %v267
  %374 = vst [vmem:[#allocation2 + $0x8] sm:$0xff] %v296
  %375 = vst [vmem:[#allocation2 + $0x10] sm:$0xff] %v325
  %376 = vst [vmem:[#allocation2 + $0x18] sm:$0xff] %v354
  %377 = vst [vmem:[#allocation2 + $0x20] sm:$0xff] %v269
  %378 = vst [vmem:[#allocation2 + $0x28] sm:$0xff] %v298
  %379 = vst [vmem:[#allocation2 + $0x30] sm:$0xff] %v327
  %380 = vst [vmem:[#allocation2 + $0x38] sm:$0xff] %v356
  %381 = vst [vmem:[#allocation2 + $0x40] sm:$0xff] %v272
  %382 = vst [vmem:[#allocation2 + $0x48] sm:$0xff] %v301
  %383 = vst [vmem:[#allocation2 + $0x50] sm:$0xff] %v330
  %384 = vst [vmem:[#allocation2 + $0x58] sm:$0xff] %v359
  %385 = vst [vmem:[#allocation2 + $0x60] sm:$0xff] %v274
  %386 = vst [vmem:[#allocation2 + $0x68] sm:$0xff] %v303
  %387 = vst [vmem:[#allocation2 + $0x70] sm:$0xff] %v332
  %388 = vst [vmem:[#allocation2 + $0x78] sm:$0xff] %v361
  %389 = vst [vmem:[#allocation2 + $0x80] sm:$0xff] %v277
  %390 = vst [vmem:[#allocation2 + $0x88] sm:$0xff] %v306
  %391 = vst [vmem:[#allocation2 + $0x90] sm:$0xff] %v335
  %392 = vst [vmem:[#allocation2 + $0x98] sm:$0xff] %v364
  %393 = vst [vmem:[#allocation2 + $0xa0] sm:$0xff] %v279
  %394 = vst [vmem:[#allocation2 + $0xa8] sm:$0xff] %v308
  %395 = vst [vmem:[#allocation2 + $0xb0] sm:$0xff] %v337
  %396 = vst [vmem:[#allocation2 + $0xb8] sm:$0xff] %v366
  %397 = vst [vmem:[#allocation2 + $0xc0] sm:$0xff] %v282
  %398 = vst [vmem:[#allocation2 + $0xc8] sm:$0xff] %v311
  %399 = vst [vmem:[#allocation2 + $0xd0] sm:$0xff] %v340
  %400 = vst [vmem:[#allocation2 + $0xd8] sm:$0xff] %v369
  %401 = vst [vmem:[#allocation2 + $0xe0] sm:$0xff] %v284
  %402 = vst [vmem:[#allocation2 + $0xe8] sm:$0xff] %v313
  %403 = vst [vmem:[#allocation2 + $0xf0] sm:$0xff] %v342
  %404 = vst [vmem:[#allocation2 + $0xf8] sm:$0xff] %v371
  %v405 = vld [vmem:[%s2] sm:$0xff]
  %v406 = vld [vmem:[%s2 + $0x8] sm:$0xff]
  %v407 = vld [vmem:[%s2 + $0x10] sm:$0xff]
  %v408 = vld [vmem:[%s2 + $0x18] sm:$0xff]
  %v409 = vld [vmem:[%s2 + $0x20] sm:$0xff]
  %v410 = vld [vmem:[%s2 + $0x28] sm:$0xff]
  %v411 = vld [vmem:[%s2 + $0x30] sm:$0xff]
  %v412 = vld [vmem:[%s2 + $0x38] sm:$0xff]
  %v413 = vld [vmem:[%s2 + $0x40] sm:$0xff]
  %v414 = vld [vmem:[%s2 + $0x48] sm:$0xff]
  %v415 = vld [vmem:[%s2 + $0x50] sm:$0xff]
  %v416 = vld [vmem:[%s2 + $0x58] sm:$0xff]
  %v417 = vld [vmem:[%s2 + $0x60] sm:$0xff]
  %v418 = vld [vmem:[%s2 + $0x68] sm:$0xff]
  %v419 = vld [vmem:[%s2 + $0x70] sm:$0xff]
  %v420 = vld [vmem:[%s2 + $0x78] sm:$0xff]
  %v421 = vld [vmem:[%s2 + $0x80] sm:$0xff]
  %v422 = vld [vmem:[%s2 + $0x88] sm:$0xff]
  %v423 = vld [vmem:[%s2 + $0x90] sm:$0xff]
  %v424 = vld [vmem:[%s2 + $0x98] sm:$0xff]
  %v425 = vld [vmem:[%s2 + $0xa0] sm:$0xff]
  %v426 = vld [vmem:[%s2 + $0xa8] sm:$0xff]
  %v427 = vld [vmem:[%s2 + $0xb0] sm:$0xff]
  %v428 = vld [vmem:[%s2 + $0xb8] sm:$0xff]
  %v429 = vld [vmem:[%s2 + $0xc0] sm:$0xff]
  %v430 = vld [vmem:[%s2 + $0xc8] sm:$0xff]
  %v431 = vld [vmem:[%s2 + $0xd0] sm:$0xff]
  %v432 = vld [vmem:[%s2 + $0xd8] sm:$0xff]
  %v433 = vld [vmem:[%s2 + $0xe0] sm:$0xff]
  %v434 = vld [vmem:[%s2 + $0xe8] sm:$0xff]
  %v435 = vld [vmem:[%s2 + $0xf0] sm:$0xff]
  %v436 = vld [vmem:[%s2 + $0xf8] sm:$0xff]
  %v437 = vld [vmem:[#allocation3] sm:$0xff]
  %v438 = vld [vmem:[#allocation4] sm:$0xff]
  %v439 = vld [vmem:[#allocation2] sm:$0xff]
  %v440 = vld [vmem:[#allocation2 + $0x8] sm:$0xff]
  %v441 = vld [vmem:[#allocation2 + $0x10] sm:$0xff]
  %v442 = vld [vmem:[#allocation2 + $0x18] sm:$0xff]
  %v443 = vpack.c.bf16 %v437, %v437
  %v476 = vunpack.c.l.b16 %v405
  %v477 = vunpack.c.h.b16 %v405
  %v478 = vunpack.c.l.b16 %v406
  %v479 = vunpack.c.h.b16 %v406
  %v480 = vunpack.c.l.b16 %v407
  %v481 = vunpack.c.h.b16 %v407
  %v482 = vunpack.c.l.b16 %v408
  %v483 = vunpack.c.h.b16 %v408
  %v484 = vunpack.c.l.b16 %v409
  %v485 = vunpack.c.h.b16 %v409
  %v486 = vunpack.c.l.b16 %v410
  %v487 = vunpack.c.h.b16 %v410
  %v488 = vunpack.c.l.b16 %v411
  %v489 = vunpack.c.h.b16 %v411
  %v490 = vunpack.c.l.b16 %v412
  %v491 = vunpack.c.h.b16 %v412
  %v492 = vunpack.c.l.b16 %v413
  %v493 = vunpack.c.h.b16 %v413
  %v494 = vunpack.c.l.b16 %v414
  %v495 = vunpack.c.h.b16 %v414
  %v496 = vunpack.c.l.b16 %v415
  %v497 = vunpack.c.h.b16 %v415
  %v498 = vunpack.c.l.b16 %v416
  %v499 = vunpack.c.h.b16 %v416
  %v500 = vunpack.c.l.b16 %v417
  %v501 = vunpack.c.h.b16 %v417
  %v502 = vunpack.c.l.b16 %v418
  %v503 = vunpack.c.h.b16 %v418
  %v504 = vunpack.c.l.b16 %v419
  %v505 = vunpack.c.h.b16 %v419
  %v506 = vunpack.c.l.b16 %v420
  %v507 = vunpack.c.h.b16 %v420
  %v508 = vunpack.c.l.b16 %v421
  %v509 = vunpack.c.h.b16 %v421
  %v510 = vunpack.c.l.b16 %v422
  %v511 = vunpack.c.h.b16 %v422
  %v512 = vunpack.c.l.b16 %v423
  %v513 = vunpack.c.h.b16 %v423
  %v514 = vunpack.c.l.b16 %v424
  %v515 = vunpack.c.h.b16 %v424
  %v516 = vunpack.c.l.b16 %v425
  %v517 = vunpack.c.h.b16 %v425
  %v518 = vunpack.c.l.b16 %v426
  %v519 = vunpack.c.h.b16 %v426
  %v520 = vunpack.c.l.b16 %v427
  %v521 = vunpack.c.h.b16 %v427
  %v522 = vunpack.c.l.b16 %v428
  %v523 = vunpack.c.h.b16 %v428
  %v524 = vunpack.c.l.b16 %v429
  %v525 = vunpack.c.h.b16 %v429
  %v526 = vunpack.c.l.b16 %v430
  %v527 = vunpack.c.h.b16 %v430
  %v528 = vunpack.c.l.b16 %v431
  %v529 = vunpack.c.h.b16 %v431
  %v530 = vunpack.c.l.b16 %v432
  %v531 = vunpack.c.h.b16 %v432
  %v532 = vunpack.c.l.b16 %v433
  %v533 = vunpack.c.h.b16 %v433
  %v534 = vunpack.c.l.b16 %v434
  %v535 = vunpack.c.h.b16 %v434
  %v536 = vunpack.c.l.b16 %v435
  %v537 = vunpack.c.h.b16 %v435
  %v538 = vunpack.c.l.b16 %v436
  %v539 = vunpack.c.h.b16 %v436
  %v540 = vpack.c.b16 %v480, %v476
  %v541 = vpack.c.b16 %v481, %v477
  %v542 = vpack.c.b16 %v482, %v478
  %v543 = vpack.c.b16 %v483, %v479
  %v544 = vpack.c.b16 %v488, %v484
  %v545 = vpack.c.b16 %v489, %v485
  %v546 = vpack.c.b16 %v490, %v486
  %v547 = vpack.c.b16 %v491, %v487
  %v548 = vpack.c.b16 %v496, %v492
  %v549 = vpack.c.b16 %v497, %v493
  %v550 = vpack.c.b16 %v498, %v494
  %v551 = vpack.c.b16 %v499, %v495
  %v552 = vpack.c.b16 %v504, %v500
  %v553 = vpack.c.b16 %v505, %v501
  %v554 = vpack.c.b16 %v506, %v502
  %v555 = vpack.c.b16 %v507, %v503
  %v556 = vpack.c.b16 %v512, %v508
  %v557 = vpack.c.b16 %v513, %v509
  %v558 = vpack.c.b16 %v514, %v510
  %v559 = vpack.c.b16 %v515, %v511
  %v560 = vpack.c.b16 %v520, %v516
  %v561 = vpack.c.b16 %v521, %v517
  %v562 = vpack.c.b16 %v522, %v518
  %v563 = vpack.c.b16 %v523, %v519
  %v564 = vpack.c.b16 %v528, %v524
  %v565 = vpack.c.b16 %v529, %v525
  %v566 = vpack.c.b16 %v530, %v526
  %v567 = vpack.c.b16 %v531, %v527
  %v568 = vpack.c.b16 %v536, %v532
  %v569 = vpack.c.b16 %v537, %v533
  %v570 = vpack.c.b16 %v538, %v534
  %v571 = vpack.c.b16 %v539, %v535
  %604 = vmatpush.bf16.msra.mxu0 %v568
  %605 = vmatpush.bf16.msra.mxu0 %v564
  %606 = vmatpush.bf16.msra.mxu0 %v560
  %607 = vmatpush.bf16.msra.mxu0 %v556
  %608 = vmatpush.bf16.msra.mxu0 %v552
  %609 = vmatpush.bf16.msra.mxu0 %v548
  %610 = vmatpush.bf16.msra.mxu0 %v544
  %611 = vmatpush.bf16.msra.mxu0 %v540
  %612 = vmatmul.bf16.gmra.mxu0 %v443
  %v613 = vpop.f32.mrf.mxu0
  %v614 = vadd.f32 0.0, %v613
  %v615 = vpop.f32.mrf.mxu0
  %616 = vdwg.mxu0
  %617 = vmatpush.bf16.msra.mxu0 %v569
  %618 = vmatpush.bf16.msra.mxu0 %v565
  %619 = vmatpush.bf16.msra.mxu0 %v561
  %620 = vmatpush.bf16.msra.mxu0 %v557
  %621 = vmatpush.bf16.msra.mxu0 %v553
  %622 = vmatpush.bf16.msra.mxu0 %v549
  %623 = vmatpush.bf16.msra.mxu0 %v545
  %624 = vmatpush.bf16.msra.mxu0 %v541
  %625 = vmatmul.bf16.gmra.mxu0 %v443
  %v626 = vpop.f32.mrf.mxu0
  %v627 = vadd.f32 0.0, %v626
  %v628 = vpop.f32.mrf.mxu0
  %629 = vdwg.mxu0
  %630 = vmatpush.bf16.msra.mxu0 %v570
  %631 = vmatpush.bf16.msra.mxu0 %v566
  %632 = vmatpush.bf16.msra.mxu0 %v562
  %633 = vmatpush.bf16.msra.mxu0 %v558
  %634 = vmatpush.bf16.msra.mxu0 %v554
  %635 = vmatpush.bf16.msra.mxu0 %v550
  %636 = vmatpush.bf16.msra.mxu0 %v546
  %637 = vmatpush.bf16.msra.mxu0 %v542
  %638 = vmatmul.bf16.gmra.mxu0 %v443
  %v639 = vpop.f32.mrf.mxu0
  %v640 = vadd.f32 0.0, %v639
  %v641 = vpop.f32.mrf.mxu0
  %642 = vdwg.mxu0
  %643 = vmatpush.bf16.msra.mxu0 %v571
  %644 = vmatpush.bf16.msra.mxu0 %v567
  %645 = vmatpush.bf16.msra.mxu0 %v563
  %646 = vmatpush.bf16.msra.mxu0 %v559
  %647 = vmatpush.bf16.msra.mxu0 %v555
  %648 = vmatpush.bf16.msra.mxu0 %v551
  %649 = vmatpush.bf16.msra.mxu0 %v547
  %650 = vmatpush.bf16.msra.mxu0 %v543
  %651 = vmatmul.bf16.gmra.mxu0 %v443
  %v652 = vpop.f32.mrf.mxu0
  %v653 = vadd.f32 0.0, %v652
  %v654 = vpop.f32.mrf.mxu0
  %655 = vdwg.mxu0
  %v656 = vadd.f32 %v439, %v614
  %v657 = vadd.f32 %v440, %v627
  %v658 = vadd.f32 %v441, %v640
  %v659 = vadd.f32 %v442, %v653
  %v660 = vtanh.pop %v656
  %v661 = vtanh.pop %v657
  %v662 = vtanh.pop %v658
  %v663 = vtanh.pop %v659
  %v664 = vmul.f32 %v660, 0.5
  %v665 = vadd.f32 %v664, 0.5
  %v666 = vmul.f32 %v661, 0.5
  %v667 = vadd.f32 %v666, 0.5
  %v668 = vmul.f32 %v663, 0.5
  %v669 = vadd.f32 %v668, 0.5
  %v670 = vmul.f32 %v667, %v438
  %v671 = vmul.f32 %v665, %v662
  %v672 = vadd.f32 %v670, %v671
  %v673 = vtanh.pop %v672
  %v674 = vmul.f32 %v669, %v673
  %675 = vst [vmem:[#allocation3] sm:$0xff] %v674
  %676 = vst [vmem:[#allocation4] sm:$0xff] %v672
  %v677 = vld [vmem:[#allocation3] sm:$0xff]
  %v678 = vld [vmem:[#allocation4] sm:$0xff]
  %s679 = scalar_lea.vmem [#allocation2], 32
  %v680 = vld [vmem:[%s679] sm:$0xff]
  %v681 = vld [vmem:[%s679 + $0x8] sm:$0xff]
  %v682 = vld [vmem:[%s679 + $0x10] sm:$0xff]
  %v683 = vld [vmem:[%s679 + $0x18] sm:$0xff]
  %v684 = vpack.c.bf16 %v677, %v677
  %685 = vmatpush.bf16.msra.mxu0 %v568
  %686 = vmatpush.bf16.msra.mxu0 %v564
  %687 = vmatpush.bf16.msra.mxu0 %v560
  %688 = vmatpush.bf16.msra.mxu0 %v556
  %689 = vmatpush.bf16.msra.mxu0 %v552
  %690 = vmatpush.bf16.msra.mxu0 %v548
  %691 = vmatpush.bf16.msra.mxu0 %v544
  %692 = vmatpush.bf16.msra.mxu0 %v540
  %693 = vmatmul.bf16.gmra.mxu0 %v684
  %v694 = vpop.f32.mrf.mxu0
  %v695 = vadd.f32 0.0, %v694
  %v696 = vpop.f32.mrf.mxu0
  %697 = vdwg.mxu0
  %698 = vmatpush.bf16.msra.mxu0 %v569
  %699 = vmatpush.bf16.msra.mxu0 %v565
  %700 = vmatpush.bf16.msra.mxu0 %v561
  %701 = vmatpush.bf16.msra.mxu0 %v557
  %702 = vmatpush.bf16.msra.mxu0 %v553
  %703 = vmatpush.bf16.msra.mxu0 %v549
  %704 = vmatpush.bf16.msra.mxu0 %v545
  %705 = vmatpush.bf16.msra.mxu0 %v541
  %706 = vmatmul.bf16.gmra.mxu0 %v684
  %v707 = vpop.f32.mrf.mxu0
  %v708 = vadd.f32 0.0, %v707
  %v709 = vpop.f32.mrf.mxu0
  %710 = vdwg.mxu0
  %711 = vmatpush.bf16.msra.mxu0 %v570
  %712 = vmatpush.bf16.msra.mxu0 %v566
  %713 = vmatpush.bf16.msra.mxu0 %v562
  %714 = vmatpush.bf16.msra.mxu0 %v558
  %715 = vmatpush.bf16.msra.mxu0 %v554
  %716 = vmatpush.bf16.msra.mxu0 %v550
  %717 = vmatpush.bf16.msra.mxu0 %v546
  %718 = vmatpush.bf16.msra.mxu0 %v542
  %719 = vmatmul.bf16.gmra.mxu0 %v684
  %v720 = vpop.f32.mrf.mxu0
  %v721 = vadd.f32 0.0, %v720
  %v722 = vpop.f32.mrf.mxu0
  %723 = vdwg.mxu0
  %724 = vmatpush.bf16.msra.mxu0 %v571
  %725 = vmatpush.bf16.msra.mxu0 %v567
  %726 = vmatpush.bf16.msra.mxu0 %v563
  %727 = vmatpush.bf16.msra.mxu0 %v559
  %728 = vmatpush.bf16.msra.mxu0 %v555
  %729 = vmatpush.bf16.msra.mxu0 %v551
  %730 = vmatpush.bf16.msra.mxu0 %v547
  %731 = vmatpush.bf16.msra.mxu0 %v543
  %732 = vmatmul.bf16.gmra.mxu0 %v684
  %v733 = vpop.f32.mrf.mxu0
  %v734 = vadd.f32 0.0, %v733
  %v735 = vpop.f32.mrf.mxu0
  %736 = vdwg.mxu0
  %v737 = vadd.f32 %v680, %v695
  %v738 = vadd.f32 %v681, %v708
  %v739 = vadd.f32 %v682, %v721
  %v740 = vadd.f32 %v683, %v734
  %v741 = vtanh.pop %v737
  %v742 = vtanh.pop %v738
  %v743 = vtanh.pop %v739
  %v744 = vtanh.pop %v740
  %v745 = vmul.f32 %v741, 0.5
  %v746 = vadd.f32 %v745, 0.5
  %v747 = vmul.f32 %v742, 0.5
  %v748 = vadd.f32 %v747, 0.5
  %v749 = vmul.f32 %v744, 0.5
  %v750 = vadd.f32 %v749, 0.5
  %v751 = vmul.f32 %v748, %v678
  %v752 = vmul.f32 %v746, %v743
  %v753 = vadd.f32 %v751, %v752
  %v754 = vtanh.pop %v753
  %v755 = vmul.f32 %v750, %v754
  %756 = vst [vmem:[#allocation3] sm:$0xff] %v755
  %757 = vst [vmem:[#allocation4] sm:$0xff] %v753
  %v758 = vld [vmem:[#allocation3] sm:$0xff]
  %v759 = vld [vmem:[#allocation4] sm:$0xff]
  %s760 = scalar_lea.vmem [#allocation2], 64
  %v761 = vld [vmem:[%s760] sm:$0xff]
  %v762 = vld [vmem:[%s760 + $0x8] sm:$0xff]
  %v763 = vld [vmem:[%s760 + $0x10] sm:$0xff]
  %v764 = vld [vmem:[%s760 + $0x18] sm:$0xff]
  %v765 = vpack.c.bf16 %v758, %v758
  %766 = vmatpush.bf16.msra.mxu0 %v568
  %767 = vmatpush.bf16.msra.mxu0 %v564
  %768 = vmatpush.bf16.msra.mxu0 %v560
  %769 = vmatpush.bf16.msra.mxu0 %v556
  %770 = vmatpush.bf16.msra.mxu0 %v552
  %771 = vmatpush.bf16.msra.mxu0 %v548
  %772 = vmatpush.bf16.msra.mxu0 %v544
  %773 = vmatpush.bf16.msra.mxu0 %v540
  %774 = vmatmul.bf16.gmra.mxu0 %v765
  %v775 = vpop.f32.mrf.mxu0
  %v776 = vadd.f32 0.0, %v775
  %v777 = vpop.f32.mrf.mxu0
  %778 = vdwg.mxu0
  %779 = vmatpush.bf16.msra.mxu0 %v569
  %780 = vmatpush.bf16.msra.mxu0 %v565
  %781 = vmatpush.bf16.msra.mxu0 %v561
  %782 = vmatpush.bf16.msra.mxu0 %v557
  %783 = vmatpush.bf16.msra.mxu0 %v553
  %784 = vmatpush.bf16.msra.mxu0 %v549
  %785 = vmatpush.bf16.msra.mxu0 %v545
  %786 = vmatpush.bf16.msra.mxu0 %v541
  %787 = vmatmul.bf16.gmra.mxu0 %v765
  %v788 = vpop.f32.mrf.mxu0
  %v789 = vadd.f32 0.0, %v788
  %v790 = vpop.f32.mrf.mxu0
  %791 = vdwg.mxu0
  %792 = vmatpush.bf16.msra.mxu0 %v570
  %793 = vmatpush.bf16.msra.mxu0 %v566
  %794 = vmatpush.bf16.msra.mxu0 %v562
  %795 = vmatpush.bf16.msra.mxu0 %v558
  %796 = vmatpush.bf16.msra.mxu0 %v554
  %797 = vmatpush.bf16.msra.mxu0 %v550
  %798 = vmatpush.bf16.msra.mxu0 %v546
  %799 = vmatpush.bf16.msra.mxu0 %v542
  %800 = vmatmul.bf16.gmra.mxu0 %v765
  %v801 = vpop.f32.mrf.mxu0
  %v802 = vadd.f32 0.0, %v801
  %v803 = vpop.f32.mrf.mxu0
  %804 = vdwg.mxu0
  %805 = vmatpush.bf16.msra.mxu0 %v571
  %806 = vmatpush.bf16.msra.mxu0 %v567
  %807 = vmatpush.bf16.msra.mxu0 %v563
  %808 = vmatpush.bf16.msra.mxu0 %v559
  %809 = vmatpush.bf16.msra.mxu0 %v555
  %810 = vmatpush.bf16.msra.mxu0 %v551
  %811 = vmatpush.bf16.msra.mxu0 %v547
  %812 = vmatpush.bf16.msra.mxu0 %v543
  %813 = vmatmul.bf16.gmra.mxu0 %v765
  %v814 = vpop.f32.mrf.mxu0
  %v815 = vadd.f32 0.0, %v814
  %v816 = vpop.f32.mrf.mxu0
  %817 = vdwg.mxu0
  %v818 = vadd.f32 %v761, %v776
  %v819 = vadd.f32 %v762, %v789
  %v820 = vadd.f32 %v763, %v802
  %v821 = vadd.f32 %v764, %v815
  %v822 = vtanh.pop %v818
  %v823 = vtanh.pop %v819
  %v824 = vtanh.pop %v820
  %v825 = vtanh.pop %v821
  %v826 = vmul.f32 %v822, 0.5
  %v827 = vadd.f32 %v826, 0.5
  %v828 = vmul.f32 %v823, 0.5
  %v829 = vadd.f32 %v828, 0.5
  %v830 = vmul.f32 %v825, 0.5
  %v831 = vadd.f32 %v830, 0.5
  %v832 = vmul.f32 %v829, %v759
  %v833 = vmul.f32 %v827, %v824
  %v834 = vadd.f32 %v832, %v833
  %v835 = vtanh.pop %v834
  %v836 = vmul.f32 %v831, %v835
  %837 = vst [vmem:[#allocation3] sm:$0xff] %v836
  %838 = vst [vmem:[#allocation4] sm:$0xff] %v834
  %v839 = vld [vmem:[#allocation3] sm:$0xff]
  %v840 = vld [vmem:[#allocation4] sm:$0xff]
  %s841 = scalar_lea.vmem [#allocation2], 96
  %v842 = vld [vmem:[%s841] sm:$0xff]
  %v843 = vld [vmem:[%s841 + $0x8] sm:$0xff]
  %v844 = vld [vmem:[%s841 + $0x10] sm:$0xff]
  %v845 = vld [vmem:[%s841 + $0x18] sm:$0xff]
  %v846 = vpack.c.bf16 %v839, %v839
  %847 = vmatpush.bf16.msra.mxu0 %v568
  %848 = vmatpush.bf16.msra.mxu0 %v564
  %849 = vmatpush.bf16.msra.mxu0 %v560
  %850 = vmatpush.bf16.msra.mxu0 %v556
  %851 = vmatpush.bf16.msra.mxu0 %v552
  %852 = vmatpush.bf16.msra.mxu0 %v548
  %853 = vmatpush.bf16.msra.mxu0 %v544
  %854 = vmatpush.bf16.msra.mxu0 %v540
  %855 = vmatmul.bf16.gmra.mxu0 %v846
  %v856 = vpop.f32.mrf.mxu0
  %v857 = vadd.f32 0.0, %v856
  %v858 = vpop.f32.mrf.mxu0
  %859 = vdwg.mxu0
  %860 = vmatpush.bf16.msra.mxu0 %v569
  %861 = vmatpush.bf16.msra.mxu0 %v565
  %862 = vmatpush.bf16.msra.mxu0 %v561
  %863 = vmatpush.bf16.msra.mxu0 %v557
  %864 = vmatpush.bf16.msra.mxu0 %v553
  %865 = vmatpush.bf16.msra.mxu0 %v549
  %866 = vmatpush.bf16.msra.mxu0 %v545
  %867 = vmatpush.bf16.msra.mxu0 %v541
  %868 = vmatmul.bf16.gmra.mxu0 %v846
  %v869 = vpop.f32.mrf.mxu0
  %v870 = vadd.f32 0.0, %v869
  %v871 = vpop.f32.mrf.mxu0
  %872 = vdwg.mxu0
  %873 = vmatpush.bf16.msra.mxu0 %v570
  %874 = vmatpush.bf16.msra.mxu0 %v566
  %875 = vmatpush.bf16.msra.mxu0 %v562
  %876 = vmatpush.bf16.msra.mxu0 %v558
  %877 = vmatpush.bf16.msra.mxu0 %v554
  %878 = vmatpush.bf16.msra.mxu0 %v550
  %879 = vmatpush.bf16.msra.mxu0 %v546
  %880 = vmatpush.bf16.msra.mxu0 %v542
  %881 = vmatmul.bf16.gmra.mxu0 %v846
  %v882 = vpop.f32.mrf.mxu0
  %v883 = vadd.f32 0.0, %v882
  %v884 = vpop.f32.mrf.mxu0
  %885 = vdwg.mxu0
  %886 = vmatpush.bf16.msra.mxu0 %v571
  %887 = vmatpush.bf16.msra.mxu0 %v567
  %888 = vmatpush.bf16.msra.mxu0 %v563
  %889 = vmatpush.bf16.msra.mxu0 %v559
  %890 = vmatpush.bf16.msra.mxu0 %v555
  %891 = vmatpush.bf16.msra.mxu0 %v551
  %892 = vmatpush.bf16.msra.mxu0 %v547
  %893 = vmatpush.bf16.msra.mxu0 %v543
  %894 = vmatmul.bf16.gmra.mxu0 %v846
  %v895 = vpop.f32.mrf.mxu0
  %v896 = vadd.f32 0.0, %v895
  %v897 = vpop.f32.mrf.mxu0
  %898 = vdwg.mxu0
  %v899 = vadd.f32 %v842, %v857
  %v900 = vadd.f32 %v843, %v870
  %v901 = vadd.f32 %v844, %v883
  %v902 = vadd.f32 %v845, %v896
  %v903 = vtanh.pop %v899
  %v904 = vtanh.pop %v900
  %v905 = vtanh.pop %v901
  %v906 = vtanh.pop %v902
  %v907 = vmul.f32 %v903, 0.5
  %v908 = vadd.f32 %v907, 0.5
  %v909 = vmul.f32 %v904, 0.5
  %v910 = vadd.f32 %v909, 0.5
  %v911 = vmul.f32 %v906, 0.5
  %v912 = vadd.f32 %v911, 0.5
  %v913 = vmul.f32 %v910, %v840
  %v914 = vmul.f32 %v908, %v905
  %v915 = vadd.f32 %v913, %v914
  %v916 = vtanh.pop %v915
  %v917 = vmul.f32 %v912, %v916
  %918 = vst [vmem:[#allocation3] sm:$0xff] %v917
  %919 = vst [vmem:[#allocation4] sm:$0xff] %v915
  %v920 = vld [vmem:[#allocation3] sm:$0xff]
  %v921 = vld [vmem:[#allocation4] sm:$0xff]
  %s922 = scalar_lea.vmem [#allocation2], 128
  %v923 = vld [vmem:[%s922] sm:$0xff]
  %v924 = vld [vmem:[%s922 + $0x8] sm:$0xff]
  %v925 = vld [vmem:[%s922 + $0x10] sm:$0xff]
  %v926 = vld [vmem:[%s922 + $0x18] sm:$0xff]
  %v927 = vpack.c.bf16 %v920, %v920
  %928 = vmatpush.bf16.msra.mxu0 %v568
  %929 = vmatpush.bf16.msra.mxu0 %v564
  %930 = vmatpush.bf16.msra.mxu0 %v560
  %931 = vmatpush.bf16.msra.mxu0 %v556
  %932 = vmatpush.bf16.msra.mxu0 %v552
  %933 = vmatpush.bf16.msra.mxu0 %v548
  %934 = vmatpush.bf16.msra.mxu0 %v544
  %935 = vmatpush.bf16.msra.mxu0 %v540
  %936 = vmatmul.bf16.gmra.mxu0 %v927
  %v937 = vpop.f32.mrf.mxu0
  %v938 = vadd.f32 0.0, %v937
  %v939 = vpop.f32.mrf.mxu0
  %940 = vdwg.mxu0
  %941 = vmatpush.bf16.msra.mxu0 %v569
  %942 = vmatpush.bf16.msra.mxu0 %v565
  %943 = vmatpush.bf16.msra.mxu0 %v561
  %944 = vmatpush.bf16.msra.mxu0 %v557
  %945 = vmatpush.bf16.msra.mxu0 %v553
  %946 = vmatpush.bf16.msra.mxu0 %v549
  %947 = vmatpush.bf16.msra.mxu0 %v545
  %948 = vmatpush.bf16.msra.mxu0 %v541
  %949 = vmatmul.bf16.gmra.mxu0 %v927
  %v950 = vpop.f32.mrf.mxu0
  %v951 = vadd.f32 0.0, %v950
  %v952 = vpop.f32.mrf.mxu0
  %953 = vdwg.mxu0
  %954 = vmatpush.bf16.msra.mxu0 %v570
  %955 = vmatpush.bf16.msra.mxu0 %v566
  %956 = vmatpush.bf16.msra.mxu0 %v562
  %957 = vmatpush.bf16.msra.mxu0 %v558
  %958 = vmatpush.bf16.msra.mxu0 %v554
  %959 = vmatpush.bf16.msra.mxu0 %v550
  %960 = vmatpush.bf16.msra.mxu0 %v546
  %961 = vmatpush.bf16.msra.mxu0 %v542
  %962 = vmatmul.bf16.gmra.mxu0 %v927
  %v963 = vpop.f32.mrf.mxu0
  %v964 = vadd.f32 0.0, %v963
  %v965 = vpop.f32.mrf.mxu0
  %966 = vdwg.mxu0
  %967 = vmatpush.bf16.msra.mxu0 %v571
  %968 = vmatpush.bf16.msra.mxu0 %v567
  %969 = vmatpush.bf16.msra.mxu0 %v563
  %970 = vmatpush.bf16.msra.mxu0 %v559
  %971 = vmatpush.bf16.msra.mxu0 %v555
  %972 = vmatpush.bf16.msra.mxu0 %v551
  %973 = vmatpush.bf16.msra.mxu0 %v547
  %974 = vmatpush.bf16.msra.mxu0 %v543
  %975 = vmatmul.bf16.gmra.mxu0 %v927
  %v976 = vpop.f32.mrf.mxu0
  %v977 = vadd.f32 0.0, %v976
  %v978 = vpop.f32.mrf.mxu0
  %979 = vdwg.mxu0
  %v980 = vadd.f32 %v923, %v938
  %v981 = vadd.f32 %v924, %v951
  %v982 = vadd.f32 %v925, %v964
  %v983 = vadd.f32 %v926, %v977
  %v984 = vtanh.pop %v980
  %v985 = vtanh.pop %v981
  %v986 = vtanh.pop %v982
  %v987 = vtanh.pop %v983
  %v988 = vmul.f32 %v984, 0.5
  %v989 = vadd.f32 %v988, 0.5
  %v990 = vmul.f32 %v985, 0.5
  %v991 = vadd.f32 %v990, 0.5
  %v992 = vmul.f32 %v987, 0.5
  %v993 = vadd.f32 %v992, 0.5
  %v994 = vmul.f32 %v991, %v921
  %v995 = vmul.f32 %v989, %v986
  %v996 = vadd.f32 %v994, %v995
  %v997 = vtanh.pop %v996
  %v998 = vmul.f32 %v993, %v997
  %999 = vst [vmem:[#allocation3] sm:$0xff] %v998
  %1000 = vst [vmem:[#allocation4] sm:$0xff] %v996
  %v1001 = vld [vmem:[#allocation3] sm:$0xff]
  %v1002 = vld [vmem:[#allocation4] sm:$0xff]
  %s1003 = scalar_lea.vmem [#allocation2], 160
  %v1004 = vld [vmem:[%s1003] sm:$0xff]
  %v1005 = vld [vmem:[%s1003 + $0x8] sm:$0xff]
  %v1006 = vld [vmem:[%s1003 + $0x10] sm:$0xff]
  %v1007 = vld [vmem:[%s1003 + $0x18] sm:$0xff]
  %v1008 = vpack.c.bf16 %v1001, %v1001
  %1009 = vmatpush.bf16.msra.mxu0 %v568
  %1010 = vmatpush.bf16.msra.mxu0 %v564
  %1011 = vmatpush.bf16.msra.mxu0 %v560
  %1012 = vmatpush.bf16.msra.mxu0 %v556
  %1013 = vmatpush.bf16.msra.mxu0 %v552
  %1014 = vmatpush.bf16.msra.mxu0 %v548
  %1015 = vmatpush.bf16.msra.mxu0 %v544
  %1016 = vmatpush.bf16.msra.mxu0 %v540
  %1017 = vmatmul.bf16.gmra.mxu0 %v1008
  %v1018 = vpop.f32.mrf.mxu0
  %v1019 = vadd.f32 0.0, %v1018
  %v1020 = vpop.f32.mrf.mxu0
  %1021 = vdwg.mxu0
  %1022 = vmatpush.bf16.msra.mxu0 %v569
  %1023 = vmatpush.bf16.msra.mxu0 %v565
  %1024 = vmatpush.bf16.msra.mxu0 %v561
  %1025 = vmatpush.bf16.msra.mxu0 %v557
  %1026 = vmatpush.bf16.msra.mxu0 %v553
  %1027 = vmatpush.bf16.msra.mxu0 %v549
  %1028 = vmatpush.bf16.msra.mxu0 %v545
  %1029 = vmatpush.bf16.msra.mxu0 %v541
  %1030 = vmatmul.bf16.gmra.mxu0 %v1008
  %v1031 = vpop.f32.mrf.mxu0
  %v1032 = vadd.f32 0.0, %v1031
  %v1033 = vpop.f32.mrf.mxu0
  %1034 = vdwg.mxu0
  %1035 = vmatpush.bf16.msra.mxu0 %v570
  %1036 = vmatpush.bf16.msra.mxu0 %v566
  %1037 = vmatpush.bf16.msra.mxu0 %v562
  %1038 = vmatpush.bf16.msra.mxu0 %v558
  %1039 = vmatpush.bf16.msra.mxu0 %v554
  %1040 = vmatpush.bf16.msra.mxu0 %v550
  %1041 = vmatpush.bf16.msra.mxu0 %v546
  %1042 = vmatpush.bf16.msra.mxu0 %v542
  %1043 = vmatmul.bf16.gmra.mxu0 %v1008
  %v1044 = vpop.f32.mrf.mxu0
  %v1045 = vadd.f32 0.0, %v1044
  %v1046 = vpop.f32.mrf.mxu0
  %1047 = vdwg.mxu0
  %1048 = vmatpush.bf16.msra.mxu0 %v571
  %1049 = vmatpush.bf16.msra.mxu0 %v567
  %1050 = vmatpush.bf16.msra.mxu0 %v563
  %1051 = vmatpush.bf16.msra.mxu0 %v559
  %1052 = vmatpush.bf16.msra.mxu0 %v555
  %1053 = vmatpush.bf16.msra.mxu0 %v551
  %1054 = vmatpush.bf16.msra.mxu0 %v547
  %1055 = vmatpush.bf16.msra.mxu0 %v543
  %1056 = vmatmul.bf16.gmra.mxu0 %v1008
  %v1057 = vpop.f32.mrf.mxu0
  %v1058 = vadd.f32 0.0, %v1057
  %v1059 = vpop.f32.mrf.mxu0
  %1060 = vdwg.mxu0
  %v1061 = vadd.f32 %v1004, %v1019
  %v1062 = vadd.f32 %v1005, %v1032
  %v1063 = vadd.f32 %v1006, %v1045
  %v1064 = vadd.f32 %v1007, %v1058
  %v1065 = vtanh.pop %v1061
  %v1066 = vtanh.pop %v1062
  %v1067 = vtanh.pop %v1063
  %v1068 = vtanh.pop %v1064
  %v1069 = vmul.f32 %v1065, 0.5
  %v1070 = vadd.f32 %v1069, 0.5
  %v1071 = vmul.f32 %v1066, 0.5
  %v1072 = vadd.f32 %v1071, 0.5
  %v1073 = vmul.f32 %v1068, 0.5
  %v1074 = vadd.f32 %v1073, 0.5
  %v1075 = vmul.f32 %v1072, %v1002
  %v1076 = vmul.f32 %v1070, %v1067
  %v1077 = vadd.f32 %v1075, %v1076
  %v1078 = vtanh.pop %v1077
  %v1079 = vmul.f32 %v1074, %v1078
  %1080 = vst [vmem:[#allocation3] sm:$0xff] %v1079
  %1081 = vst [vmem:[#allocation4] sm:$0xff] %v1077
  %v1082 = vld [vmem:[#allocation3] sm:$0xff]
  %v1083 = vld [vmem:[#allocation4] sm:$0xff]
  %s1084 = scalar_lea.vmem [#allocation2], 192
  %v1085 = vld [vmem:[%s1084] sm:$0xff]
  %v1086 = vld [vmem:[%s1084 + $0x8] sm:$0xff]
  %v1087 = vld [vmem:[%s1084 + $0x10] sm:$0xff]
  %v1088 = vld [vmem:[%s1084 + $0x18] sm:$0xff]
  %v1089 = vpack.c.bf16 %v1082, %v1082
  %1090 = vmatpush.bf16.msra.mxu0 %v568
  %1091 = vmatpush.bf16.msra.mxu0 %v564
  %1092 = vmatpush.bf16.msra.mxu0 %v560
  %1093 = vmatpush.bf16.msra.mxu0 %v556
  %1094 = vmatpush.bf16.msra.mxu0 %v552
  %1095 = vmatpush.bf16.msra.mxu0 %v548
  %1096 = vmatpush.bf16.msra.mxu0 %v544
  %1097 = vmatpush.bf16.msra.mxu0 %v540
  %1098 = vmatmul.bf16.gmra.mxu0 %v1089
  %v1099 = vpop.f32.mrf.mxu0
  %v1100 = vadd.f32 0.0, %v1099
  %v1101 = vpop.f32.mrf.mxu0
  %1102 = vdwg.mxu0
  %1103 = vmatpush.bf16.msra.mxu0 %v569
  %1104 = vmatpush.bf16.msra.mxu0 %v565
  %1105 = vmatpush.bf16.msra.mxu0 %v561
  %1106 = vmatpush.bf16.msra.mxu0 %v557
  %1107 = vmatpush.bf16.msra.mxu0 %v553
  %1108 = vmatpush.bf16.msra.mxu0 %v549
  %1109 = vmatpush.bf16.msra.mxu0 %v545
  %1110 = vmatpush.bf16.msra.mxu0 %v541
  %1111 = vmatmul.bf16.gmra.mxu0 %v1089
  %v1112 = vpop.f32.mrf.mxu0
  %v1113 = vadd.f32 0.0, %v1112
  %v1114 = vpop.f32.mrf.mxu0
  %1115 = vdwg.mxu0
  %1116 = vmatpush.bf16.msra.mxu0 %v570
  %1117 = vmatpush.bf16.msra.mxu0 %v566
  %1118 = vmatpush.bf16.msra.mxu0 %v562
  %1119 = vmatpush.bf16.msra.mxu0 %v558
  %1120 = vmatpush.bf16.msra.mxu0 %v554
  %1121 = vmatpush.bf16.msra.mxu0 %v550
  %1122 = vmatpush.bf16.msra.mxu0 %v546
  %1123 = vmatpush.bf16.msra.mxu0 %v542
  %1124 = vmatmul.bf16.gmra.mxu0 %v1089
  %v1125 = vpop.f32.mrf.mxu0
  %v1126 = vadd.f32 0.0, %v1125
  %v1127 = vpop.f32.mrf.mxu0
  %1128 = vdwg.mxu0
  %1129 = vmatpush.bf16.msra.mxu0 %v571
  %1130 = vmatpush.bf16.msra.mxu0 %v567
  %1131 = vmatpush.bf16.msra.mxu0 %v563
  %1132 = vmatpush.bf16.msra.mxu0 %v559
  %1133 = vmatpush.bf16.msra.mxu0 %v555
  %1134 = vmatpush.bf16.msra.mxu0 %v551
  %1135 = vmatpush.bf16.msra.mxu0 %v547
  %1136 = vmatpush.bf16.msra.mxu0 %v543
  %1137 = vmatmul.bf16.gmra.mxu0 %v1089
  %v1138 = vpop.f32.mrf.mxu0
  %v1139 = vadd.f32 0.0, %v1138
  %v1140 = vpop.f32.mrf.mxu0
  %1141 = vdwg.mxu0
  %v1142 = vadd.f32 %v1085, %v1100
  %v1143 = vadd.f32 %v1086, %v1113
  %v1144 = vadd.f32 %v1087, %v1126
  %v1145 = vadd.f32 %v1088, %v1139
  %v1146 = vtanh.pop %v1142
  %v1147 = vtanh.pop %v1143
  %v1148 = vtanh.pop %v1144
  %v1149 = vtanh.pop %v1145
  %v1150 = vmul.f32 %v1146, 0.5
  %v1151 = vadd.f32 %v1150, 0.5
  %v1152 = vmul.f32 %v1147, 0.5
  %v1153 = vadd.f32 %v1152, 0.5
  %v1154 = vmul.f32 %v1149, 0.5
  %v1155 = vadd.f32 %v1154, 0.5
  %v1156 = vmul.f32 %v1153, %v1083
  %v1157 = vmul.f32 %v1151, %v1148
  %v1158 = vadd.f32 %v1156, %v1157
  %v1159 = vtanh.pop %v1158
  %v1160 = vmul.f32 %v1155, %v1159
  %1161 = vst [vmem:[#allocation3] sm:$0xff] %v1160
  %1162 = vst [vmem:[#allocation4] sm:$0xff] %v1158
  %v1163 = vld [vmem:[#allocation3] sm:$0xff]
  %v1164 = vld [vmem:[#allocation4] sm:$0xff]
  %s1165 = scalar_lea.vmem [#allocation2], 224
  %v1166 = vld [vmem:[%s1165] sm:$0xff]
  %v1167 = vld [vmem:[%s1165 + $0x8] sm:$0xff]
  %v1168 = vld [vmem:[%s1165 + $0x10] sm:$0xff]
  %v1169 = vld [vmem:[%s1165 + $0x18] sm:$0xff]
  %v1170 = vpack.c.bf16 %v1163, %v1163
  %1171 = vmatpush.bf16.msra.mxu0 %v568
  %1172 = vmatpush.bf16.msra.mxu0 %v564
  %1173 = vmatpush.bf16.msra.mxu0 %v560
  %1174 = vmatpush.bf16.msra.mxu0 %v556
  %1175 = vmatpush.bf16.msra.mxu0 %v552
  %1176 = vmatpush.bf16.msra.mxu0 %v548
  %1177 = vmatpush.bf16.msra.mxu0 %v544
  %1178 = vmatpush.bf16.msra.mxu0 %v540
  %1179 = vmatmul.bf16.gmra.mxu0 %v1170
  %v1180 = vpop.f32.mrf.mxu0
  %v1181 = vadd.f32 0.0, %v1180
  %v1182 = vpop.f32.mrf.mxu0
  %1183 = vdwg.mxu0
  %1184 = vmatpush.bf16.msra.mxu0 %v569
  %1185 = vmatpush.bf16.msra.mxu0 %v565
  %1186 = vmatpush.bf16.msra.mxu0 %v561
  %1187 = vmatpush.bf16.msra.mxu0 %v557
  %1188 = vmatpush.bf16.msra.mxu0 %v553
  %1189 = vmatpush.bf16.msra.mxu0 %v549
  %1190 = vmatpush.bf16.msra.mxu0 %v545
  %1191 = vmatpush.bf16.msra.mxu0 %v541
  %1192 = vmatmul.bf16.gmra.mxu0 %v1170
  %v1193 = vpop.f32.mrf.mxu0
  %v1194 = vadd.f32 0.0, %v1193
  %v1195 = vpop.f32.mrf.mxu0
  %1196 = vdwg.mxu0
  %1197 = vmatpush.bf16.msra.mxu0 %v570
  %1198 = vmatpush.bf16.msra.mxu0 %v566
  %1199 = vmatpush.bf16.msra.mxu0 %v562
  %1200 = vmatpush.bf16.msra.mxu0 %v558
  %1201 = vmatpush.bf16.msra.mxu0 %v554
  %1202 = vmatpush.bf16.msra.mxu0 %v550
  %1203 = vmatpush.bf16.msra.mxu0 %v546
  %1204 = vmatpush.bf16.msra.mxu0 %v542
  %1205 = vmatmul.bf16.gmra.mxu0 %v1170
  %v1206 = vpop.f32.mrf.mxu0
  %v1207 = vadd.f32 0.0, %v1206
  %v1208 = vpop.f32.mrf.mxu0
  %1209 = vdwg.mxu0
  %1210 = vmatpush.bf16.msra.mxu0 %v571
  %1211 = vmatpush.bf16.msra.mxu0 %v567
  %1212 = vmatpush.bf16.msra.mxu0 %v563
  %1213 = vmatpush.bf16.msra.mxu0 %v559
  %1214 = vmatpush.bf16.msra.mxu0 %v555
  %1215 = vmatpush.bf16.msra.mxu0 %v551
  %1216 = vmatpush.bf16.msra.mxu0 %v547
  %1217 = vmatpush.bf16.msra.mxu0 %v543
  %1218 = vmatmul.bf16.gmra.mxu0 %v1170
  %v1219 = vpop.f32.mrf.mxu0
  %v1220 = vadd.f32 0.0, %v1219
  %v1221 = vpop.f32.mrf.mxu0
  %1222 = vdwg.mxu0
  %v1223 = vadd.f32 %v1166, %v1181
  %v1224 = vadd.f32 %v1167, %v1194
  %v1225 = vadd.f32 %v1168, %v1207
  %v1226 = vadd.f32 %v1169, %v1220
  %v1227 = vtanh.pop %v1223
  %v1228 = vtanh.pop %v1224
  %v1229 = vtanh.pop %v1225
  %v1230 = vtanh.pop %v1226
  %v1231 = vmul.f32 %v1227, 0.5
  %v1232 = vadd.f32 %v1231, 0.5
  %v1233 = vmul.f32 %v1228, 0.5
  %v1234 = vadd.f32 %v1233, 0.5
  %v1235 = vmul.f32 %v1230, 0.5
  %v1236 = vadd.f32 %v1235, 0.5
  %v1237 = vmul.f32 %v1234, %v1164
  %v1238 = vmul.f32 %v1232, %v1229
  %v1239 = vadd.f32 %v1237, %v1238
  %v1240 = vtanh.pop %v1239
  %v1241 = vmul.f32 %v1236, %v1240
  %1242 = vst [vmem:[#allocation3] sm:$0xff] %v1241
  %1243 = vst [vmem:[#allocation4] sm:$0xff] %v1239
  // Predicated region
  $region22: #{lstm_model_forward.3} parent=0 // pred_check
    %p1244 = pneg %p17
  $region23: #{lstm_model_forward.3} parent=0 // pred_check_branch
    %1246 = sbr.rel (%p1244) target = $region25
  $region24: #{lstm_model_forward.3} parent=0 // pred_region
    %1247 = vst [vmem:[%s4] sm:$0xff] %v1241
  $region25: #{lstm_model_forward.3} parent=0 // pred_fallthru
    _
  // Predicated region
  $region26: #{lstm_model_forward.3} parent=0 // pred_check
    _
  $region27: #{lstm_model_forward.3} parent=0 // pred_check_branch
    %1249 = sbr.rel (0) target = $region29
  $region28: #{lstm_model_forward.3} parent=0 // pred_region
    _
  $region29: #{lstm_model_forward.3} parent=0 // pred_fallthru
    _
  // Predicated region
  $region30: #{lstm_model_forward.3} parent=0 // pred_check
    _
  $region31: #{lstm_model_forward.3} parent=0 // pred_check_branch
    %1251 = sbr.rel (0) target = $region33
  $region32: #{lstm_model_forward.3} parent=0 // pred_region
    _
  $region33: #{lstm_model_forward.3} parent=0 // pred_fallthru
    _

</llo_original>
